<compile_context>
chip_gen: v7x
topology: tpu7x:2x2x1
jax: 0.10.0
libtpu: 0.0.40
codegen_flags: <defaults>
</compile_context>

<pallas_src>
import jax
import jax.numpy as jnp
from jax.experimental import pallas as pl
from jax.experimental.pallas import tpu as pltpu

Z_DIM = 10
IM_DIM = 784
HIDDEN = 128
BN_EPS = 1e-5

DIMS = (Z_DIM, HIDDEN, HIDDEN * 2, HIDDEN * 4, HIDDEN * 8, IM_DIM)


def _build_pack_offsets():
    """Static offsets for the packed small-parameter vector.

    Layout: [b1, g1, be1, b2, g2, be2, b3, g3, be3, b4, g4, be4, b5]
    All offsets are multiples of 128 -> lane-aligned in-kernel slices.
    """
    offs = {}
    off = 0
    for li in range(4):
        dout = DIMS[li + 1]
        for name in ("b", "g", "be"):
            offs[(li, name)] = off
            off += dout
    offs[(4, "b")] = off
    off += DIMS[5]
    return offs, off


_PACK_OFFSETS, PACK_SIZE = _build_pack_offsets()


def _pslice(packed_ref, li, name, dout):
    off = _PACK_OFFSETS[(li, name)]
    return packed_ref[:, off:off + dout]          # (1, dout), static slice


def _bn_relu_block(x, w_ref, packed_ref, li):
    """bf16 matmul (f32 acc) -> folded BatchNorm1d (training stats) -> ReLU."""
    dout = DIMS[li + 1]
    b = _pslice(packed_ref, li, "b", dout)
    gamma = _pslice(packed_ref, li, "g", dout)
    beta = _pslice(packed_ref, li, "be", dout)

    h = jnp.dot(x.astype(jnp.bfloat16), w_ref[...],
                preferred_element_type=jnp.float32) + b
    mean = jnp.mean(h, axis=0, keepdims=True)
    var = jnp.mean((h - mean) ** 2, axis=0, keepdims=True)   # biased var (PyTorch BN train)
    scale = gamma * jax.lax.rsqrt(var + BN_EPS)
    shift = beta - mean * scale
    return jnp.maximum(h * scale + shift, 0.0)               # ReLU


def generator_kernel(noise_ref, w1_ref, w2_ref, w3_ref, w4_ref, w5_ref,
                     packed_ref, out_ref):
    x = noise_ref[...]                                        # already f32
    x = _bn_relu_block(x, w1_ref, packed_ref, 0)
    x = _bn_relu_block(x, w2_ref, packed_ref, 1)
    x = _bn_relu_block(x, w3_ref, packed_ref, 2)
    x = _bn_relu_block(x, w4_ref, packed_ref, 3)
    b5 = _pslice(packed_ref, 4, "b", IM_DIM)
    logits = jnp.dot(x.astype(jnp.bfloat16), w5_ref[...],
                     preferred_element_type=jnp.float32) + b5
    out_ref[...] = jax.nn.sigmoid(logits)


def init_params(key):
    """Synthetic params matching nn.Module shapes; weights cast to bf16 once."""
    weights = []
    smalls = []
    keys = jax.random.split(key, 5)
    for li in range(5):
        din, dout = DIMS[li], DIMS[li + 1]
        kw, kb, kg, kbe = jax.random.split(keys[li], 4)
        bound = 1.0 / jnp.sqrt(float(din))
        w = jax.random.uniform(kw, (din, dout), jnp.float32, -bound, bound)
        b = jax.random.uniform(kb, (1, dout), jnp.float32, -bound, bound)
        weights.append(w.astype(jnp.bfloat16))     # bf16 storage: halves HBM bytes
        smalls.append(b)
        if li < 4:                                  # BN only on the 4 hidden blocks
            gamma = 1.0 + 0.1 * jax.random.normal(kg, (1, dout), jnp.float32)
            beta = 0.1 * jax.random.normal(kbe, (1, dout), jnp.float32)
            smalls.extend([gamma, beta])
    packed = jnp.concatenate(smalls, axis=1)        # (1, PACK_SIZE) f32
    assert packed.shape == (1, PACK_SIZE)
    return weights, packed


def generator_forward(noise, weights, packed):
    batch = noise.shape[0]
    vmem = pl.BlockSpec(memory_space=pltpu.MemorySpace.VMEM)
    n_in = 1 + len(weights) + 1                     # noise + 5 weights + packed
    return pl.pallas_call(
        generator_kernel,
        out_shape=jax.ShapeDtypeStruct((batch, IM_DIM), jnp.float32),
        in_specs=[vmem] * n_in,
        out_specs=vmem,
    )(noise, *weights, packed)


def generator_reference(noise, weights, packed):
    """Pure-JAX reference mirroring the kernel math (bf16 weights, f32 acc)."""
    x = noise
    for li in range(4):
        dout = DIMS[li + 1]
        b = packed[:, _PACK_OFFSETS[(li, "b")]:_PACK_OFFSETS[(li, "b")] + dout]
        g = packed[:, _PACK_OFFSETS[(li, "g")]:_PACK_OFFSETS[(li, "g")] + dout]
        be = packed[:, _PACK_OFFSETS[(li, "be")]:_PACK_OFFSETS[(li, "be")] + dout]
        h = jnp.dot(x.astype(jnp.bfloat16), weights[li],
                    preferred_element_type=jnp.float32) + b
        mean = jnp.mean(h, axis=0, keepdims=True)
        var = jnp.mean((h - mean) ** 2, axis=0, keepdims=True)
        scale = g * jax.lax.rsqrt(var + BN_EPS)
        shift = be - mean * scale
        x = jnp.maximum(h * scale + shift, 0.0)
    off = _PACK_OFFSETS[(4, "b")]
    logits = jnp.dot(x.astype(jnp.bfloat16), weights[4],
                     preferred_element_type=jnp.float32) + packed[:, off:off + IM_DIM]
    return jax.nn.sigmoid(logits)


if __name__ == "__main__":
    key = jax.random.PRNGKey(0)
    k_noise, k_params = jax.random.split(key)

    batch = 8
    noise = jax.random.normal(k_noise, (batch, Z_DIM), jnp.float32)
    weights, packed = init_params(k_params)

    out = generator_forward(noise, weights, packed)
    out = jax.block_until_ready(out)

    assert out.shape == (batch, IM_DIM)
    assert bool(jnp.all(jnp.isfinite(out)))
    assert bool(jnp.all((out >= 0.0) & (out <= 1.0)))      # sigmoid range

    ref = jax.block_until_ready(generator_reference(noise, weights, packed))
    assert bool(jnp.allclose(out, ref, atol=5e-3)), float(jnp.max(jnp.abs(out - ref)))

    print("KERNEL_OK")
</pallas_src>

<mosaic_0001>
module attributes {stable_mosaic.version = 11 : i64} {
  func.func @generator_kernel(%arg0: memref<8x10xf32, #tpu.memory_space<vmem>>, %arg1: memref<10x128xbf16, #tpu.memory_space<vmem>>, %arg2: memref<128x256xbf16, #tpu.memory_space<vmem>>, %arg3: memref<256x512xbf16, #tpu.memory_space<vmem>>, %arg4: memref<512x1024xbf16, #tpu.memory_space<vmem>>, %arg5: memref<1024x784xbf16, #tpu.memory_space<vmem>>, %arg6: memref<1x6544xf32, #tpu.memory_space<vmem>>, %arg7: memref<8x784xf32, #tpu.memory_space<vmem>>) attributes {dimension_semantics = [], scalar_prefetch = 0 : i64, scratch_operands = 0 : i64, tpu.core_type = #tpu.core_type<tc>} {
    %c0 = arith.constant 0 : index
    %c0_0 = arith.constant 0 : index
    %0 = vector.load %arg0[%c0, %c0_0] : memref<8x10xf32, #tpu.memory_space<vmem>>, vector<8x10xf32>
    %c0_1 = arith.constant 0 : index
    %c0_2 = arith.constant 0 : index
    %1 = vector.load %arg6[%c0_1, %c0_2] : memref<1x6544xf32, #tpu.memory_space<vmem>>, vector<1x128xf32>
    %c0_3 = arith.constant 0 : index
    %c128 = arith.constant 128 : index
    %2 = vector.load %arg6[%c0_3, %c128] : memref<1x6544xf32, #tpu.memory_space<vmem>>, vector<1x128xf32>
    %c0_4 = arith.constant 0 : index
    %c256 = arith.constant 256 : index
    %3 = vector.load %arg6[%c0_4, %c256] : memref<1x6544xf32, #tpu.memory_space<vmem>>, vector<1x128xf32>
    %4 = arith.truncf %0 : vector<8x10xf32> to vector<8x10xbf16>
    %c0_5 = arith.constant 0 : index
    %c0_6 = arith.constant 0 : index
    %5 = vector.load %arg1[%c0_5, %c0_6] : memref<10x128xbf16, #tpu.memory_space<vmem>>, vector<10x128xbf16>
    %cst = arith.constant dense<0.000000e+00> : vector<8x128xf32>
    %6 = tpu.matmul %4, %5, %cst {dimension_numbers = #tpu.dot_dimension_numbers<[1], [0], [0], [1], [0, 0, 1, 1], [], []>} : vector<8x10xbf16>, vector<10x128xbf16>, vector<8x128xf32> -> vector<8x128xf32>
    %7 = vector.broadcast %1 : vector<1x128xf32> to vector<8x128xf32>
    %8 = arith.addf %6, %7 : vector<8x128xf32>
    %cst_7 = arith.constant dense<0.000000e+00> : vector<128xf32>
    %9 = vector.multi_reduction <add>, %8, %cst_7 [0] : vector<8x128xf32> to vector<128xf32>
    %10 = vector.shape_cast %9 : vector<128xf32> to vector<1x128xf32>
    %cst_8 = arith.constant 8.000000e+00 : f32
    %11 = vector.broadcast %cst_8 : f32 to vector<1x128xf32>
    %12 = arith.divf %10, %11 : vector<1x128xf32>
    %13 = vector.broadcast %12 : vector<1x128xf32> to vector<8x128xf32>
    %14 = arith.subf %8, %13 : vector<8x128xf32>
    %15 = arith.mulf %14, %14 : vector<8x128xf32>
    %cst_9 = arith.constant dense<0.000000e+00> : vector<128xf32>
    %16 = vector.multi_reduction <add>, %15, %cst_9 [0] : vector<8x128xf32> to vector<128xf32>
    %17 = vector.shape_cast %16 : vector<128xf32> to vector<1x128xf32>
    %cst_10 = arith.constant 8.000000e+00 : f32
    %18 = vector.broadcast %cst_10 : f32 to vector<1x128xf32>
    %19 = arith.divf %17, %18 : vector<1x128xf32>
    %cst_11 = arith.constant 9.99999974E-6 : f32
    %20 = vector.broadcast %cst_11 : f32 to vector<1x128xf32>
    %21 = arith.addf %19, %20 : vector<1x128xf32>
    %22 = math.rsqrt %21 : vector<1x128xf32>
    %23 = arith.mulf %2, %22 : vector<1x128xf32>
    %24 = arith.mulf %12, %23 : vector<1x128xf32>
    %25 = arith.subf %3, %24 : vector<1x128xf32>
    %26 = vector.broadcast %23 : vector<1x128xf32> to vector<8x128xf32>
    %27 = arith.mulf %8, %26 : vector<8x128xf32>
    %28 = vector.broadcast %25 : vector<1x128xf32> to vector<8x128xf32>
    %29 = arith.addf %27, %28 : vector<8x128xf32>
    %cst_12 = arith.constant 0.000000e+00 : f32
    %30 = vector.broadcast %cst_12 : f32 to vector<8x128xf32>
    %31 = arith.maximumf %29, %30 : vector<8x128xf32>
    %c0_13 = arith.constant 0 : index
    %c384 = arith.constant 384 : index
    %32 = vector.load %arg6[%c0_13, %c384] : memref<1x6544xf32, #tpu.memory_space<vmem>>, vector<1x256xf32>
    %c0_14 = arith.constant 0 : index
    %c640 = arith.constant 640 : index
    %33 = vector.load %arg6[%c0_14, %c640] : memref<1x6544xf32, #tpu.memory_space<vmem>>, vector<1x256xf32>
    %c0_15 = arith.constant 0 : index
    %c896 = arith.constant 896 : index
    %34 = vector.load %arg6[%c0_15, %c896] : memref<1x6544xf32, #tpu.memory_space<vmem>>, vector<1x256xf32>
    %35 = arith.truncf %31 : vector<8x128xf32> to vector<8x128xbf16>
    %c0_16 = arith.constant 0 : index
    %c0_17 = arith.constant 0 : index
    %36 = vector.load %arg2[%c0_16, %c0_17] : memref<128x256xbf16, #tpu.memory_space<vmem>>, vector<128x256xbf16>
    %cst_18 = arith.constant dense<0.000000e+00> : vector<8x256xf32>
    %37 = tpu.matmul %35, %36, %cst_18 {dimension_numbers = #tpu.dot_dimension_numbers<[1], [0], [0], [1], [0, 0, 1, 1], [], []>} : vector<8x128xbf16>, vector<128x256xbf16>, vector<8x256xf32> -> vector<8x256xf32>
    %38 = vector.broadcast %32 : vector<1x256xf32> to vector<8x256xf32>
    %39 = arith.addf %37, %38 : vector<8x256xf32>
    %cst_19 = arith.constant dense<0.000000e+00> : vector<256xf32>
    %40 = vector.multi_reduction <add>, %39, %cst_19 [0] : vector<8x256xf32> to vector<256xf32>
    %41 = vector.shape_cast %40 : vector<256xf32> to vector<1x256xf32>
    %cst_20 = arith.constant 8.000000e+00 : f32
    %42 = vector.broadcast %cst_20 : f32 to vector<1x256xf32>
    %43 = arith.divf %41, %42 : vector<1x256xf32>
    %44 = vector.broadcast %43 : vector<1x256xf32> to vector<8x256xf32>
    %45 = arith.subf %39, %44 : vector<8x256xf32>
    %46 = arith.mulf %45, %45 : vector<8x256xf32>
    %cst_21 = arith.constant dense<0.000000e+00> : vector<256xf32>
    %47 = vector.multi_reduction <add>, %46, %cst_21 [0] : vector<8x256xf32> to vector<256xf32>
    %48 = vector.shape_cast %47 : vector<256xf32> to vector<1x256xf32>
    %cst_22 = arith.constant 8.000000e+00 : f32
    %49 = vector.broadcast %cst_22 : f32 to vector<1x256xf32>
    %50 = arith.divf %48, %49 : vector<1x256xf32>
    %cst_23 = arith.constant 9.99999974E-6 : f32
    %51 = vector.broadcast %cst_23 : f32 to vector<1x256xf32>
    %52 = arith.addf %50, %51 : vector<1x256xf32>
    %53 = math.rsqrt %52 : vector<1x256xf32>
    %54 = arith.mulf %33, %53 : vector<1x256xf32>
    %55 = arith.mulf %43, %54 : vector<1x256xf32>
    %56 = arith.subf %34, %55 : vector<1x256xf32>
    %57 = vector.broadcast %54 : vector<1x256xf32> to vector<8x256xf32>
    %58 = arith.mulf %39, %57 : vector<8x256xf32>
    %59 = vector.broadcast %56 : vector<1x256xf32> to vector<8x256xf32>
    %60 = arith.addf %58, %59 : vector<8x256xf32>
    %cst_24 = arith.constant 0.000000e+00 : f32
    %61 = vector.broadcast %cst_24 : f32 to vector<8x256xf32>
    %62 = arith.maximumf %60, %61 : vector<8x256xf32>
    %c0_25 = arith.constant 0 : index
    %c1152 = arith.constant 1152 : index
    %63 = vector.load %arg6[%c0_25, %c1152] : memref<1x6544xf32, #tpu.memory_space<vmem>>, vector<1x512xf32>
    %c0_26 = arith.constant 0 : index
    %c1664 = arith.constant 1664 : index
    %64 = vector.load %arg6[%c0_26, %c1664] : memref<1x6544xf32, #tpu.memory_space<vmem>>, vector<1x512xf32>
    %c0_27 = arith.constant 0 : index
    %c2176 = arith.constant 2176 : index
    %65 = vector.load %arg6[%c0_27, %c2176] : memref<1x6544xf32, #tpu.memory_space<vmem>>, vector<1x512xf32>
    %66 = arith.truncf %62 : vector<8x256xf32> to vector<8x256xbf16>
    %c0_28 = arith.constant 0 : index
    %c0_29 = arith.constant 0 : index
    %67 = vector.load %arg3[%c0_28, %c0_29] : memref<256x512xbf16, #tpu.memory_space<vmem>>, vector<256x512xbf16>
    %cst_30 = arith.constant dense<0.000000e+00> : vector<8x512xf32>
    %68 = tpu.matmul %66, %67, %cst_30 {dimension_numbers = #tpu.dot_dimension_numbers<[1], [0], [0], [1], [0, 0, 1, 1], [], []>} : vector<8x256xbf16>, vector<256x512xbf16>, vector<8x512xf32> -> vector<8x512xf32>
    %69 = vector.broadcast %63 : vector<1x512xf32> to vector<8x512xf32>
    %70 = arith.addf %68, %69 : vector<8x512xf32>
    %cst_31 = arith.constant dense<0.000000e+00> : vector<512xf32>
    %71 = vector.multi_reduction <add>, %70, %cst_31 [0] : vector<8x512xf32> to vector<512xf32>
    %72 = vector.shape_cast %71 : vector<512xf32> to vector<1x512xf32>
    %cst_32 = arith.constant 8.000000e+00 : f32
    %73 = vector.broadcast %cst_32 : f32 to vector<1x512xf32>
    %74 = arith.divf %72, %73 : vector<1x512xf32>
    %75 = vector.broadcast %74 : vector<1x512xf32> to vector<8x512xf32>
    %76 = arith.subf %70, %75 : vector<8x512xf32>
    %77 = arith.mulf %76, %76 : vector<8x512xf32>
    %cst_33 = arith.constant dense<0.000000e+00> : vector<512xf32>
    %78 = vector.multi_reduction <add>, %77, %cst_33 [0] : vector<8x512xf32> to vector<512xf32>
    %79 = vector.shape_cast %78 : vector<512xf32> to vector<1x512xf32>
    %cst_34 = arith.constant 8.000000e+00 : f32
    %80 = vector.broadcast %cst_34 : f32 to vector<1x512xf32>
    %81 = arith.divf %79, %80 : vector<1x512xf32>
    %cst_35 = arith.constant 9.99999974E-6 : f32
    %82 = vector.broadcast %cst_35 : f32 to vector<1x512xf32>
    %83 = arith.addf %81, %82 : vector<1x512xf32>
    %84 = math.rsqrt %83 : vector<1x512xf32>
    %85 = arith.mulf %64, %84 : vector<1x512xf32>
    %86 = arith.mulf %74, %85 : vector<1x512xf32>
    %87 = arith.subf %65, %86 : vector<1x512xf32>
    %88 = vector.broadcast %85 : vector<1x512xf32> to vector<8x512xf32>
    %89 = arith.mulf %70, %88 : vector<8x512xf32>
    %90 = vector.broadcast %87 : vector<1x512xf32> to vector<8x512xf32>
    %91 = arith.addf %89, %90 : vector<8x512xf32>
    %cst_36 = arith.constant 0.000000e+00 : f32
    %92 = vector.broadcast %cst_36 : f32 to vector<8x512xf32>
    %93 = arith.maximumf %91, %92 : vector<8x512xf32>
    %c0_37 = arith.constant 0 : index
    %c2688 = arith.constant 2688 : index
    %94 = vector.load %arg6[%c0_37, %c2688] : memref<1x6544xf32, #tpu.memory_space<vmem>>, vector<1x1024xf32>
    %c0_38 = arith.constant 0 : index
    %c3712 = arith.constant 3712 : index
    %95 = vector.load %arg6[%c0_38, %c3712] : memref<1x6544xf32, #tpu.memory_space<vmem>>, vector<1x1024xf32>
    %c0_39 = arith.constant 0 : index
    %c4736 = arith.constant 4736 : index
    %96 = vector.load %arg6[%c0_39, %c4736] : memref<1x6544xf32, #tpu.memory_space<vmem>>, vector<1x1024xf32>
    %97 = arith.truncf %93 : vector<8x512xf32> to vector<8x512xbf16>
    %c0_40 = arith.constant 0 : index
    %c0_41 = arith.constant 0 : index
    %98 = vector.load %arg4[%c0_40, %c0_41] : memref<512x1024xbf16, #tpu.memory_space<vmem>>, vector<512x1024xbf16>
    %cst_42 = arith.constant dense<0.000000e+00> : vector<8x1024xf32>
    %99 = tpu.matmul %97, %98, %cst_42 {dimension_numbers = #tpu.dot_dimension_numbers<[1], [0], [0], [1], [0, 0, 1, 1], [], []>} : vector<8x512xbf16>, vector<512x1024xbf16>, vector<8x1024xf32> -> vector<8x1024xf32>
    %100 = vector.broadcast %94 : vector<1x1024xf32> to vector<8x1024xf32>
    %101 = arith.addf %99, %100 : vector<8x1024xf32>
    %cst_43 = arith.constant dense<0.000000e+00> : vector<1024xf32>
    %102 = vector.multi_reduction <add>, %101, %cst_43 [0] : vector<8x1024xf32> to vector<1024xf32>
    %103 = vector.shape_cast %102 : vector<1024xf32> to vector<1x1024xf32>
    %cst_44 = arith.constant 8.000000e+00 : f32
    %104 = vector.broadcast %cst_44 : f32 to vector<1x1024xf32>
    %105 = arith.divf %103, %104 : vector<1x1024xf32>
    %106 = vector.broadcast %105 : vector<1x1024xf32> to vector<8x1024xf32>
    %107 = arith.subf %101, %106 : vector<8x1024xf32>
    %108 = arith.mulf %107, %107 : vector<8x1024xf32>
    %cst_45 = arith.constant dense<0.000000e+00> : vector<1024xf32>
    %109 = vector.multi_reduction <add>, %108, %cst_45 [0] : vector<8x1024xf32> to vector<1024xf32>
    %110 = vector.shape_cast %109 : vector<1024xf32> to vector<1x1024xf32>
    %cst_46 = arith.constant 8.000000e+00 : f32
    %111 = vector.broadcast %cst_46 : f32 to vector<1x1024xf32>
    %112 = arith.divf %110, %111 : vector<1x1024xf32>
    %cst_47 = arith.constant 9.99999974E-6 : f32
    %113 = vector.broadcast %cst_47 : f32 to vector<1x1024xf32>
    %114 = arith.addf %112, %113 : vector<1x1024xf32>
    %115 = math.rsqrt %114 : vector<1x1024xf32>
    %116 = arith.mulf %95, %115 : vector<1x1024xf32>
    %117 = arith.mulf %105, %116 : vector<1x1024xf32>
    %118 = arith.subf %96, %117 : vector<1x1024xf32>
    %119 = vector.broadcast %116 : vector<1x1024xf32> to vector<8x1024xf32>
    %120 = arith.mulf %101, %119 : vector<8x1024xf32>
    %121 = vector.broadcast %118 : vector<1x1024xf32> to vector<8x1024xf32>
    %122 = arith.addf %120, %121 : vector<8x1024xf32>
    %cst_48 = arith.constant 0.000000e+00 : f32
    %123 = vector.broadcast %cst_48 : f32 to vector<8x1024xf32>
    %124 = arith.maximumf %122, %123 : vector<8x1024xf32>
    %c0_49 = arith.constant 0 : index
    %c5760 = arith.constant 5760 : index
    %125 = vector.load %arg6[%c0_49, %c5760] : memref<1x6544xf32, #tpu.memory_space<vmem>>, vector<1x784xf32>
    %126 = arith.truncf %124 : vector<8x1024xf32> to vector<8x1024xbf16>
    %c0_50 = arith.constant 0 : index
    %c0_51 = arith.constant 0 : index
    %127 = vector.load %arg5[%c0_50, %c0_51] : memref<1024x784xbf16, #tpu.memory_space<vmem>>, vector<1024x784xbf16>
    %cst_52 = arith.constant dense<0.000000e+00> : vector<8x784xf32>
    %128 = tpu.matmul %126, %127, %cst_52 {dimension_numbers = #tpu.dot_dimension_numbers<[1], [0], [0], [1], [0, 0, 1, 1], [], []>} : vector<8x1024xbf16>, vector<1024x784xbf16>, vector<8x784xf32> -> vector<8x784xf32>
    %129 = vector.broadcast %125 : vector<1x784xf32> to vector<8x784xf32>
    %130 = arith.addf %128, %129 : vector<8x784xf32>
    %131 = arith.negf %130 : vector<8x784xf32>
    %132 = math.exp %131 : vector<8x784xf32>
    %cst_53 = arith.constant 1.000000e+00 : f32
    %133 = vector.broadcast %cst_53 : f32 to vector<8x784xf32>
    %134 = arith.addf %133, %132 : vector<8x784xf32>
    %135 = arith.divf %133, %134 : vector<8x784xf32>
    %c0_54 = arith.constant 0 : index
    %c0_55 = arith.constant 0 : index
    %136 = vector.load %arg7[%c0_54, %c0_55] : memref<8x784xf32, #tpu.memory_space<vmem>>, vector<8x784xf32>
    tpu.vector_store %arg7[%c0_54, %c0_55], %135 {strides = array<i32>} : memref<8x784xf32, #tpu.memory_space<vmem>>, vector<8x784xf32>,
    return
  }
}

</mosaic_0001>

<llo_original>
// kernel: tpu_custom_call.1
$region0: #{tpu_custom_call.1}
  #allocation0 [shape = 'u32[]', space=smem, size = 0x4, offset = 0x4, fixed_abs, tag = 'smem constant byte address 0x4 - core index']
  #allocation1 [shape = 'u32[144,128]{1,0:T(1,128)}', space=vmem, size = 0x12000, scoped, tag = 'internal scratch']
  %s0 = inlined_call_operand.vmem [shape: f32[8,10], index: 0, kind: input, shape index: {}]
  %s1 = inlined_call_operand.vmem [shape: bf16[10,128], index: 1, kind: input, shape index: {}]
  %s2 = inlined_call_operand.vmem [shape: bf16[128,256], index: 2, kind: input, shape index: {}]
  %s3 = inlined_call_operand.vmem [shape: bf16[256,512], index: 3, kind: input, shape index: {}]
  %s4 = inlined_call_operand.vmem [shape: bf16[512,1024], index: 4, kind: input, shape index: {}]
  %s5 = inlined_call_operand.vmem [shape: bf16[1024,784], index: 5, kind: input, shape index: {}]
  %s6 = inlined_call_operand.vmem [shape: f32[1,6544], index: 6, kind: input, shape index: {}]
  %s7 = inlined_call_operand.hbm [shape: f32[8,784], index: 7, kind: output, shape index: {}]
  %s8 = sld [smem:[#allocation0]]
  $region38: #{tpu_custom_call.1} parent=0
    _
  %s10 = ssub.s32 1, %s8
  %s11 = scalar_select 0, %s10, %s8
  $region1: #{tpu_custom_call.1} parent=0
    #allocation2 [shape = 'u8[28672]{0}', space=vmem, size = 0x7000, scoped, tag = 'output window, operand 0, single buffered']
    #allocation3 [shape = 's32[1]{0}', space=sflag, size = 0x4, scoped, tag = 'scoped memory for tpu_custom_call.1']
    %12 = vsyncpa [#allocation3], 0
    // Predicated region
    $region2: #{tpu_custom_call.1} parent=1 // pred_check
      _
    $region3: #{tpu_custom_call.1} parent=1 // pred_check_branch
      %14 = sbr.rel (0) target = $region5
    $region4: #{tpu_custom_call.1} parent=1 // pred_region
      _
    $region5: #{tpu_custom_call.1} parent=1 // pred_fallthru
      _
    // Predicated region
    $region6: #{tpu_custom_call.1} parent=1 // pred_check
      _
    $region7: #{tpu_custom_call.1} parent=1 // pred_check_branch
      %16 = sbr.rel (0) target = $region9
    $region8: #{tpu_custom_call.1} parent=1 // pred_region
      _
    $region9: #{tpu_custom_call.1} parent=1 // pred_fallthru
      _
    // Predicated region
    $region10: #{tpu_custom_call.1} parent=1 // pred_check
      _
    $region11: #{tpu_custom_call.1} parent=1 // pred_check_branch
      %18 = sbr.rel (0) target = $region13
    $region12: #{tpu_custom_call.1} parent=1 // pred_region
      _
    $region13: #{tpu_custom_call.1} parent=1 // pred_fallthru
      _
    // Predicated region
    $region14: #{tpu_custom_call.1} parent=1 // pred_check
      _
    $region15: #{tpu_custom_call.1} parent=1 // pred_check_branch
      %20 = sbr.rel (0) target = $region17
    $region16: #{tpu_custom_call.1} parent=1 // pred_region
      _
    $region17: #{tpu_custom_call.1} parent=1 // pred_fallthru
      _
    // Predicated region
    $region18: #{tpu_custom_call.1} parent=1 // pred_check
      _
    $region19: #{tpu_custom_call.1} parent=1 // pred_check_branch
      %22 = sbr.rel (0) target = $region21
    $region20: #{tpu_custom_call.1} parent=1 // pred_region
      _
    $region21: #{tpu_custom_call.1} parent=1 // pred_fallthru
      _
    // Predicated region
    $region22: #{tpu_custom_call.1} parent=1 // pred_check
      _
    $region23: #{tpu_custom_call.1} parent=1 // pred_check_branch
      %24 = sbr.rel (0) target = $region25
    $region24: #{tpu_custom_call.1} parent=1 // pred_region
      _
    $region25: #{tpu_custom_call.1} parent=1 // pred_fallthru
      _
    // Predicated region
    $region26: #{tpu_custom_call.1} parent=1 // pred_check
      _
    $region27: #{tpu_custom_call.1} parent=1 // pred_check_branch
      %26 = sbr.rel (0) target = $region29
    $region28: #{tpu_custom_call.1} parent=1 // pred_region
      _
    $region29: #{tpu_custom_call.1} parent=1 // pred_fallthru
      _
    %v28 = vld [vmem:[%s0] sm:$0xff]
    %v29 = vld [vmem:[%s6] sm:$0x1]
    %v30 = vld [vmem:[%s6 + $0x1] sm:$0x1]
    %v31 = vld [vmem:[%s6 + $0x2] sm:$0x1]
    %v32 = vpack.c.bf16 %v28, %v28
    %v33 = vld [vmem:[%s1] sm:$0xf]
    %v34 = vld [vmem:[%s1 + $0x4] sm:$0x1]
    %v36 = vlaneseq
    %v37 = vshrl.u32 %v36, 7
    %v38 = vsub.s32 0, %v37
    %v39 = vrot.slane %v29, %v38
    %v43 = vunpack.c.l.b16 %v33
    %v44 = vunpack.c.l.b16 %v34
    %v45 = vpack.c.b16 %v44, %v43
    %vm46 = vcmask 80896
    %v48 = vsel %vm46, %v32, 0
    %vm50 = vcmask 1044480
    %v52 = vsel %vm50, %v45, 0
    %54 = vmatprep.subr.bf16.mxu0 0
    %55 = vmatpush1.bf16.msra.mxu0 %v52
    %56 = vmatprep.subr.bf16.mxu0 0
    %57 = vmatpush1.bf16.msra.mxu0 0
    %58 = vmatprep.subr.bf16.mxu0 0
    %59 = vmatpush1.bf16.msra.mxu0 0
    %60 = vmatprep.subr.bf16.mxu0 0
    %61 = vmatpush1.bf16.msra.mxu0 0
    %62 = vmatprep.subr.bf16.mxu0 0
    %63 = vmatpush1.bf16.msra.mxu0 0
    %64 = vmatprep.subr.bf16.mxu0 0
    %65 = vmatpush1.bf16.msra.mxu0 0
    %66 = vmatprep.subr.bf16.mxu0 0
    %67 = vmatpush1.bf16.msra.mxu0 0
    %68 = vmatprep.subr.bf16.mxu0 0
    %69 = vmatpush1.bf16.msra.mxu0 0
    %70 = vmatprep.subr.bf16.mxu0 0
    %71 = vmatpush1.bf16.msra.mxu0 0
    %72 = vmatprep.subr.bf16.mxu0 0
    %73 = vmatpush1.bf16.msra.mxu0 0
    %74 = vmatprep.subr.bf16.mxu0 0
    %75 = vmatpush1.bf16.msra.mxu0 0
    %76 = vmatprep.subr.bf16.mxu0 0
    %77 = vmatpush1.bf16.msra.mxu0 0
    %78 = vmatprep.subr.bf16.mxu0 0
    %79 = vmatpush1.bf16.msra.mxu0 0
    %80 = vmatprep.subr.bf16.mxu0 0
    %81 = vmatpush1.bf16.msra.mxu0 0
    %82 = vmatprep.subr.bf16.mxu0 0
    %83 = vmatpush1.bf16.msra.mxu0 0
    %84 = vmatprep.subr.bf16.mxu0 0
    %85 = vmatpush1.bf16.msra.mxu0 0
    %86 = vmatprep.mubr.bf16.mxu0 0
    %87 = vmatmul.mubr.bf16.gmra.mrb[0].mxu0 %v48
    %v88 = vpop.f32.mrb[0].mxu0
    %v89 = vadd.f32 %v39, %v88
    %v90 = vpop.f32.mrb[0].mxu0
    %v91 = vpop.f32.mrb[0].mxu0
    %v92 = vpop.f32.mrb[0].mxu0
    %93 = vdwg.mxu0
    %v94 = vrot.slane %v89, 4
    %v95 = vadd.f32 %v89, %v94
    %v96 = vrot.slane %v95, 2
    %v97 = vadd.f32 %v95, %v96
    %v98 = vrot.slane %v97, 1
    %v99 = vadd.f32 %v97, %v98
    %v100 = vrcp.pop 8.0
    %v101 = vmul.f32 %v99, %v100
    %v102 = vsub.f32 %v89, %v101
    %v103 = vmul.f32 %v102, %v102
    %v104 = vrot.slane %v103, 4
    %v105 = vadd.f32 %v103, %v104
    %v106 = vrot.slane %v105, 2
    %v107 = vadd.f32 %v105, %v106
    %v108 = vrot.slane %v107, 1
    %v109 = vadd.f32 %v107, %v108
    %v110 = vmul.f32 %v109, %v100
    %v111 = vadd.f32 %v110, 1e-05
    %v112 = vrsqrt.pop %v111
    %v113 = vmul.f32 %v30, %v112
    %v114 = vmul.f32 %v101, %v113
    %v115 = vsub.f32 %v31, %v114
    %v117 = vlaneseq
    %v118 = vshrl.u32 %v117, 7
    %v119 = vsub.s32 0, %v118
    %v120 = vrot.slane %v113, %v119
    %v122 = vmul.f32 %v89, %v120
    %v124 = vlaneseq
    %v125 = vshrl.u32 %v124, 7
    %v126 = vsub.s32 0, %v125
    %v127 = vrot.slane %v115, %v126
    %v129 = vadd.f32 %v122, %v127
    %v130 = vmax.f32 %v129, 0.0
    %v131 = vld [vmem:[%s6 + $0x3] sm:$0x3]
    %v132 = vld [vmem:[%s6 + $0x5] sm:$0x3]
    %v133 = vld [vmem:[%s6 + $0x7] sm:$0x3]
    %v134 = vpack.c.bf16 %v130, %v130
    %v135 = vld [vmem:[%s2] sm:$0xff]
    %v136 = vld [vmem:[%s2 + $0x8] sm:$0xff]
    %v137 = vld [vmem:[%s2 + $0x10] sm:$0xff]
    %v138 = vld [vmem:[%s2 + $0x18] sm:$0xff]
    %v139 = vld [vmem:[%s2 + $0x20] sm:$0xff]
    %v140 = vld [vmem:[%s2 + $0x28] sm:$0xff]
    %v141 = vld [vmem:[%s2 + $0x30] sm:$0xff]
    %v142 = vld [vmem:[%s2 + $0x38] sm:$0xff]
    %v143 = vld [vmem:[%s2 + $0x40] sm:$0xff]
    %v144 = vld [vmem:[%s2 + $0x48] sm:$0xff]
    %v145 = vld [vmem:[%s2 + $0x50] sm:$0xff]
    %v146 = vld [vmem:[%s2 + $0x58] sm:$0xff]
    %v147 = vld [vmem:[%s2 + $0x60] sm:$0xff]
    %v148 = vld [vmem:[%s2 + $0x68] sm:$0xff]
    %v149 = vld [vmem:[%s2 + $0x70] sm:$0xff]
    %v150 = vld [vmem:[%s2 + $0x78] sm:$0xff]
    %v152 = vlaneseq
    %v153 = vshrl.u32 %v152, 7
    %v154 = vsub.s32 0, %v153
    %v155 = vrot.slane %v131, %v154
    %v156 = vlaneseq
    %v157 = vshrl.u32 %v156, 7
    %v158 = vsub.s32 1, %v157
    %v159 = vrot.slane %v131, %v158
    %v178 = vunpack.c.l.b16 %v135
    %v179 = vunpack.c.h.b16 %v135
    %v180 = vunpack.c.l.b16 %v136
    %v181 = vunpack.c.h.b16 %v136
    %v182 = vunpack.c.l.b16 %v137
    %v183 = vunpack.c.h.b16 %v137
    %v184 = vunpack.c.l.b16 %v138
    %v185 = vunpack.c.h.b16 %v138
    %v186 = vunpack.c.l.b16 %v139
    %v187 = vunpack.c.h.b16 %v139
    %v188 = vunpack.c.l.b16 %v140
    %v189 = vunpack.c.h.b16 %v140
    %v190 = vunpack.c.l.b16 %v141
    %v191 = vunpack.c.h.b16 %v141
    %v192 = vunpack.c.l.b16 %v142
    %v193 = vunpack.c.h.b16 %v142
    %v194 = vunpack.c.l.b16 %v143
    %v195 = vunpack.c.h.b16 %v143
    %v196 = vunpack.c.l.b16 %v144
    %v197 = vunpack.c.h.b16 %v144
    %v198 = vunpack.c.l.b16 %v145
    %v199 = vunpack.c.h.b16 %v145
    %v200 = vunpack.c.l.b16 %v146
    %v201 = vunpack.c.h.b16 %v146
    %v202 = vunpack.c.l.b16 %v147
    %v203 = vunpack.c.h.b16 %v147
    %v204 = vunpack.c.l.b16 %v148
    %v205 = vunpack.c.h.b16 %v148
    %v206 = vunpack.c.l.b16 %v149
    %v207 = vunpack.c.h.b16 %v149
    %v208 = vunpack.c.l.b16 %v150
    %v209 = vunpack.c.h.b16 %v150
    %v210 = vpack.c.b16 %v180, %v178
    %v211 = vpack.c.b16 %v181, %v179
    %v212 = vpack.c.b16 %v184, %v182
    %v213 = vpack.c.b16 %v185, %v183
    %v214 = vpack.c.b16 %v188, %v186
    %v215 = vpack.c.b16 %v189, %v187
    %v216 = vpack.c.b16 %v192, %v190
    %v217 = vpack.c.b16 %v193, %v191
    %v218 = vpack.c.b16 %v196, %v194
    %v219 = vpack.c.b16 %v197, %v195
    %v220 = vpack.c.b16 %v200, %v198
    %v221 = vpack.c.b16 %v201, %v199
    %v222 = vpack.c.b16 %v204, %v202
    %v223 = vpack.c.b16 %v205, %v203
    %v224 = vpack.c.b16 %v208, %v206
    %v225 = vpack.c.b16 %v209, %v207
    %242 = vmatprep.subr.bf16.mxu0 %v211
    %243 = vmatpush1.bf16.msra.mxu0 %v210
    %244 = vmatprep.subr.bf16.mxu0 %v213
    %245 = vmatpush1.bf16.msra.mxu0 %v212
    %246 = vmatprep.subr.bf16.mxu0 %v215
    %247 = vmatpush1.bf16.msra.mxu0 %v214
    %248 = vmatprep.subr.bf16.mxu0 %v217
    %249 = vmatpush1.bf16.msra.mxu0 %v216
    %250 = vmatprep.subr.bf16.mxu0 %v219
    %251 = vmatpush1.bf16.msra.mxu0 %v218
    %252 = vmatprep.subr.bf16.mxu0 %v221
    %253 = vmatpush1.bf16.msra.mxu0 %v220
    %254 = vmatprep.subr.bf16.mxu0 %v223
    %255 = vmatpush1.bf16.msra.mxu0 %v222
    %256 = vmatprep.subr.bf16.mxu0 %v225
    %257 = vmatpush1.bf16.msra.mxu0 %v224
    %258 = vmatprep.subr.bf16.mxu0 0
    %259 = vmatpush1.bf16.msra.mxu0 0
    %260 = vmatprep.subr.bf16.mxu0 0
    %261 = vmatpush1.bf16.msra.mxu0 0
    %262 = vmatprep.subr.bf16.mxu0 0
    %263 = vmatpush1.bf16.msra.mxu0 0
    %264 = vmatprep.subr.bf16.mxu0 0
    %265 = vmatpush1.bf16.msra.mxu0 0
    %266 = vmatprep.subr.bf16.mxu0 0
    %267 = vmatpush1.bf16.msra.mxu0 0
    %268 = vmatprep.subr.bf16.mxu0 0
    %269 = vmatpush1.bf16.msra.mxu0 0
    %270 = vmatprep.subr.bf16.mxu0 0
    %271 = vmatpush1.bf16.msra.mxu0 0
    %272 = vmatprep.subr.bf16.mxu0 0
    %273 = vmatpush1.bf16.msra.mxu0 0
    %274 = vmatprep.mubr.bf16.mxu0 0
    %275 = vmatmul.mubr.bf16.gmra.mrb[0].mxu0 %v134
    %v276 = vpop.f32.mrb[0].mxu0
    %v277 = vadd.f32 %v155, %v276
    %v278 = vpop.f32.mrb[0].mxu0
    %v279 = vadd.f32 %v159, %v278
    %v280 = vpop.f32.mrb[0].mxu0
    %v281 = vpop.f32.mrb[0].mxu0
    %282 = vdwg.mxu0
    %v283 = vrot.slane %v277, 4
    %v284 = vadd.f32 %v277, %v283
    %v285 = vrot.slane %v284, 2
    %v286 = vadd.f32 %v284, %v285
    %v287 = vrot.slane %v286, 1
    %v288 = vadd.f32 %v286, %v287
    %v289 = vrot.slane %v279, 4
    %v290 = vadd.f32 %v279, %v289
    %v291 = vrot.slane %v290, 2
    %v292 = vadd.f32 %v290, %v291
    %v293 = vrot.slane %v292, 1
    %v294 = vadd.f32 %v292, %v293
    %v295 = vmul.f32 %v288, %v100
    %v296 = vmul.f32 %v294, %v100
    %v297 = vsub.f32 %v277, %v295
    %v298 = vsub.f32 %v279, %v296
    %v299 = vmul.f32 %v297, %v297
    %v300 = vmul.f32 %v298, %v298
    %v301 = vrot.slane %v299, 4
    %v302 = vadd.f32 %v299, %v301
    %v303 = vrot.slane %v302, 2
    %v304 = vadd.f32 %v302, %v303
    %v305 = vrot.slane %v304, 1
    %v306 = vadd.f32 %v304, %v305
    %v307 = vrot.slane %v300, 4
    %v308 = vadd.f32 %v300, %v307
    %v309 = vrot.slane %v308, 2
    %v310 = vadd.f32 %v308, %v309
    %v311 = vrot.slane %v310, 1
    %v312 = vadd.f32 %v310, %v311
    %v313 = vmul.f32 %v306, %v100
    %v314 = vmul.f32 %v312, %v100
    %v315 = vadd.f32 %v313, 1e-05
    %v316 = vadd.f32 %v314, 1e-05
    %v317 = vrsqrt.pop %v315
    %v318 = vrsqrt.pop %v316
    %v321 = vcombine.low %v317, %v318
    %v323 = vunpack.c.l.s4 1966171168
    %v324 = vunpack.c.0.s8 %v323
    %v325 = vlaneseq
    %v326 = vshrl.u32 %v325, 7
    %v327 = vsub.s32 %v324, %v326
    %v328 = vrot.slane %v321, %v327
    %v330 = vunpack.c.l.s4 1966171168
    %v331 = vunpack.c.0.s8 %v330
    %v332 = vlaneseq
    %v333 = vshrl.u32 %v332, 7
    %v334 = vsub.s32 %v331, %v333
    %v335 = vrot.slane %v328, %v334
    %v337 = vmul.f32 %v132, %v335
    %v339 = vlaneseq
    %v340 = vshrl.u32 %v339, 7
    %v341 = vsub.s32 0, %v340
    %v342 = vrot.slane %v337, %v341
    %v343 = vlaneseq
    %v344 = vshrl.u32 %v343, 7
    %v345 = vsub.s32 1, %v344
    %v346 = vrot.slane %v337, %v345
    %v349 = vmul.f32 %v295, %v342
    %v350 = vmul.f32 %v296, %v346
    %v353 = vcombine.low %v349, %v350
    %v355 = vunpack.c.l.s4 1966171168
    %v356 = vunpack.c.0.s8 %v355
    %v357 = vlaneseq
    %v358 = vshrl.u32 %v357, 7
    %v359 = vsub.s32 %v356, %v358
    %v360 = vrot.slane %v353, %v359
    %v362 = vunpack.c.l.s4 1966171168
    %v363 = vunpack.c.0.s8 %v362
    %v364 = vlaneseq
    %v365 = vshrl.u32 %v364, 7
    %v366 = vsub.s32 %v363, %v365
    %v367 = vrot.slane %v360, %v366
    %v369 = vsub.f32 %v133, %v367
    %v370 = vmul.f32 %v277, %v342
    %v371 = vmul.f32 %v279, %v346
    %v373 = vlaneseq
    %v374 = vshrl.u32 %v373, 7
    %v375 = vsub.s32 0, %v374
    %v376 = vrot.slane %v369, %v375
    %v377 = vlaneseq
    %v378 = vshrl.u32 %v377, 7
    %v379 = vsub.s32 1, %v378
    %v380 = vrot.slane %v369, %v379
    %v383 = vadd.f32 %v370, %v376
    %v384 = vadd.f32 %v371, %v380
    %v385 = vmax.f32 %v383, 0.0
    %v386 = vmax.f32 %v384, 0.0
    %v387 = vld [vmem:[%s6 + $0x9] sm:$0xf]
    %v388 = vld [vmem:[%s6 + $0xd] sm:$0xf]
    %v389 = vld [vmem:[%s6 + $0x11] sm:$0xf]
    %v390 = vpack.c.bf16 %v385, %v385
    %v391 = vpack.c.bf16 %v386, %v386
    %v392 = vld [vmem:[%s3] sm:$0xff]
    %v393 = vld [vmem:[%s3 + $0x8] sm:$0xff]
    %v394 = vld [vmem:[%s3 + $0x10] sm:$0xff]
    %v395 = vld [vmem:[%s3 + $0x18] sm:$0xff]
    %v396 = vld [vmem:[%s3 + $0x20] sm:$0xff]
    %v397 = vld [vmem:[%s3 + $0x28] sm:$0xff]
    %v398 = vld [vmem:[%s3 + $0x30] sm:$0xff]
    %v399 = vld [vmem:[%s3 + $0x38] sm:$0xff]
    %v400 = vld [vmem:[%s3 + $0x40] sm:$0xff]
    %v401 = vld [vmem:[%s3 + $0x48] sm:$0xff]
    %v402 = vld [vmem:[%s3 + $0x50] sm:$0xff]
    %v403 = vld [vmem:[%s3 + $0x58] sm:$0xff]
    %v404 = vld [vmem:[%s3 + $0x60] sm:$0xff]
    %v405 = vld [vmem:[%s3 + $0x68] sm:$0xff]
    %v406 = vld [vmem:[%s3 + $0x70] sm:$0xff]
    %v407 = vld [vmem:[%s3 + $0x78] sm:$0xff]
    %v408 = vld [vmem:[%s3 + $0x80] sm:$0xff]
    %v409 = vld [vmem:[%s3 + $0x88] sm:$0xff]
    %v410 = vld [vmem:[%s3 + $0x90] sm:$0xff]
    %v411 = vld [vmem:[%s3 + $0x98] sm:$0xff]
    %v412 = vld [vmem:[%s3 + $0xa0] sm:$0xff]
    %v413 = vld [vmem:[%s3 + $0xa8] sm:$0xff]
    %v414 = vld [vmem:[%s3 + $0xb0] sm:$0xff]
    %v415 = vld [vmem:[%s3 + $0xb8] sm:$0xff]
    %v416 = vld [vmem:[%s3 + $0xc0] sm:$0xff]
    %v417 = vld [vmem:[%s3 + $0xc8] sm:$0xff]
    %v418 = vld [vmem:[%s3 + $0xd0] sm:$0xff]
    %v419 = vld [vmem:[%s3 + $0xd8] sm:$0xff]
    %v420 = vld [vmem:[%s3 + $0xe0] sm:$0xff]
    %v421 = vld [vmem:[%s3 + $0xe8] sm:$0xff]
    %v422 = vld [vmem:[%s3 + $0xf0] sm:$0xff]
    %v423 = vld [vmem:[%s3 + $0xf8] sm:$0xff]
    %v424 = vld [vmem:[%s3 + $0x100] sm:$0xff]
    %v425 = vld [vmem:[%s3 + $0x108] sm:$0xff]
    %v426 = vld [vmem:[%s3 + $0x110] sm:$0xff]
    %v427 = vld [vmem:[%s3 + $0x118] sm:$0xff]
    %v428 = vld [vmem:[%s3 + $0x120] sm:$0xff]
    %v429 = vld [vmem:[%s3 + $0x128] sm:$0xff]
    %v430 = vld [vmem:[%s3 + $0x130] sm:$0xff]
    %v431 = vld [vmem:[%s3 + $0x138] sm:$0xff]
    %v432 = vld [vmem:[%s3 + $0x140] sm:$0xff]
    %v433 = vld [vmem:[%s3 + $0x148] sm:$0xff]
    %v434 = vld [vmem:[%s3 + $0x150] sm:$0xff]
    %v435 = vld [vmem:[%s3 + $0x158] sm:$0xff]
    %v436 = vld [vmem:[%s3 + $0x160] sm:$0xff]
    %v437 = vld [vmem:[%s3 + $0x168] sm:$0xff]
    %v438 = vld [vmem:[%s3 + $0x170] sm:$0xff]
    %v439 = vld [vmem:[%s3 + $0x178] sm:$0xff]
    %v440 = vld [vmem:[%s3 + $0x180] sm:$0xff]
    %v441 = vld [vmem:[%s3 + $0x188] sm:$0xff]
    %v442 = vld [vmem:[%s3 + $0x190] sm:$0xff]
    %v443 = vld [vmem:[%s3 + $0x198] sm:$0xff]
    %v444 = vld [vmem:[%s3 + $0x1a0] sm:$0xff]
    %v445 = vld [vmem:[%s3 + $0x1a8] sm:$0xff]
    %v446 = vld [vmem:[%s3 + $0x1b0] sm:$0xff]
    %v447 = vld [vmem:[%s3 + $0x1b8] sm:$0xff]
    %v448 = vld [vmem:[%s3 + $0x1c0] sm:$0xff]
    %v449 = vld [vmem:[%s3 + $0x1c8] sm:$0xff]
    %v450 = vld [vmem:[%s3 + $0x1d0] sm:$0xff]
    %v451 = vld [vmem:[%s3 + $0x1d8] sm:$0xff]
    %v452 = vld [vmem:[%s3 + $0x1e0] sm:$0xff]
    %v453 = vld [vmem:[%s3 + $0x1e8] sm:$0xff]
    %v454 = vld [vmem:[%s3 + $0x1f0] sm:$0xff]
    %v455 = vld [vmem:[%s3 + $0x1f8] sm:$0xff]
    %v457 = vlaneseq
    %v458 = vshrl.u32 %v457, 7
    %v459 = vsub.s32 0, %v458
    %v460 = vrot.slane %v387, %v459
    %v461 = vlaneseq
    %v462 = vshrl.u32 %v461, 7
    %v463 = vsub.s32 1, %v462
    %v464 = vrot.slane %v387, %v463
    %v465 = vlaneseq
    %v466 = vshrl.u32 %v465, 7
    %v467 = vsub.s32 2, %v466
    %v468 = vrot.slane %v387, %v467
    %v469 = vlaneseq
    %v470 = vshrl.u32 %v469, 7
    %v471 = vsub.s32 3, %v470
    %v472 = vrot.slane %v387, %v471
    %v541 = vunpack.c.l.b16 %v392
    %v542 = vunpack.c.h.b16 %v392
    %v543 = vunpack.c.l.b16 %v393
    %v544 = vunpack.c.h.b16 %v393
    %v545 = vunpack.c.l.b16 %v394
    %v546 = vunpack.c.h.b16 %v394
    %v547 = vunpack.c.l.b16 %v395
    %v548 = vunpack.c.h.b16 %v395
    %v549 = vunpack.c.l.b16 %v396
    %v550 = vunpack.c.h.b16 %v396
    %v551 = vunpack.c.l.b16 %v397
    %v552 = vunpack.c.h.b16 %v397
    %v553 = vunpack.c.l.b16 %v398
    %v554 = vunpack.c.h.b16 %v398
    %v555 = vunpack.c.l.b16 %v399
    %v556 = vunpack.c.h.b16 %v399
    %v557 = vunpack.c.l.b16 %v400
    %v558 = vunpack.c.h.b16 %v400
    %v559 = vunpack.c.l.b16 %v401
    %v560 = vunpack.c.h.b16 %v401
    %v561 = vunpack.c.l.b16 %v402
    %v562 = vunpack.c.h.b16 %v402
    %v563 = vunpack.c.l.b16 %v403
    %v564 = vunpack.c.h.b16 %v403
    %v565 = vunpack.c.l.b16 %v404
    %v566 = vunpack.c.h.b16 %v404
    %v567 = vunpack.c.l.b16 %v405
    %v568 = vunpack.c.h.b16 %v405
    %v569 = vunpack.c.l.b16 %v406
    %v570 = vunpack.c.h.b16 %v406
    %v571 = vunpack.c.l.b16 %v407
    %v572 = vunpack.c.h.b16 %v407
    %v573 = vunpack.c.l.b16 %v408
    %v574 = vunpack.c.h.b16 %v408
    %v575 = vunpack.c.l.b16 %v409
    %v576 = vunpack.c.h.b16 %v409
    %v577 = vunpack.c.l.b16 %v410
    %v578 = vunpack.c.h.b16 %v410
    %v579 = vunpack.c.l.b16 %v411
    %v580 = vunpack.c.h.b16 %v411
    %v581 = vunpack.c.l.b16 %v412
    %v582 = vunpack.c.h.b16 %v412
    %v583 = vunpack.c.l.b16 %v413
    %v584 = vunpack.c.h.b16 %v413
    %v585 = vunpack.c.l.b16 %v414
    %v586 = vunpack.c.h.b16 %v414
    %v587 = vunpack.c.l.b16 %v415
    %v588 = vunpack.c.h.b16 %v415
    %v589 = vunpack.c.l.b16 %v416
    %v590 = vunpack.c.h.b16 %v416
    %v591 = vunpack.c.l.b16 %v417
    %v592 = vunpack.c.h.b16 %v417
    %v593 = vunpack.c.l.b16 %v418
    %v594 = vunpack.c.h.b16 %v418
    %v595 = vunpack.c.l.b16 %v419
    %v596 = vunpack.c.h.b16 %v419
    %v597 = vunpack.c.l.b16 %v420
    %v598 = vunpack.c.h.b16 %v420
    %v599 = vunpack.c.l.b16 %v421
    %v600 = vunpack.c.h.b16 %v421
    %v601 = vunpack.c.l.b16 %v422
    %v602 = vunpack.c.h.b16 %v422
    %v603 = vunpack.c.l.b16 %v423
    %v604 = vunpack.c.h.b16 %v423
    %v605 = vunpack.c.l.b16 %v424
    %v606 = vunpack.c.h.b16 %v424
    %v607 = vunpack.c.l.b16 %v425
    %v608 = vunpack.c.h.b16 %v425
    %v609 = vunpack.c.l.b16 %v426
    %v610 = vunpack.c.h.b16 %v426
    %v611 = vunpack.c.l.b16 %v427
    %v612 = vunpack.c.h.b16 %v427
    %v613 = vunpack.c.l.b16 %v428
    %v614 = vunpack.c.h.b16 %v428
    %v615 = vunpack.c.l.b16 %v429
    %v616 = vunpack.c.h.b16 %v429
    %v617 = vunpack.c.l.b16 %v430
    %v618 = vunpack.c.h.b16 %v430
    %v619 = vunpack.c.l.b16 %v431
    %v620 = vunpack.c.h.b16 %v431
    %v621 = vunpack.c.l.b16 %v432
    %v622 = vunpack.c.h.b16 %v432
    %v623 = vunpack.c.l.b16 %v433
    %v624 = vunpack.c.h.b16 %v433
    %v625 = vunpack.c.l.b16 %v434
    %v626 = vunpack.c.h.b16 %v434
    %v627 = vunpack.c.l.b16 %v435
    %v628 = vunpack.c.h.b16 %v435
    %v629 = vunpack.c.l.b16 %v436
    %v630 = vunpack.c.h.b16 %v436
    %v631 = vunpack.c.l.b16 %v437
    %v632 = vunpack.c.h.b16 %v437
    %v633 = vunpack.c.l.b16 %v438
    %v634 = vunpack.c.h.b16 %v438
    %v635 = vunpack.c.l.b16 %v439
    %v636 = vunpack.c.h.b16 %v439
    %v637 = vunpack.c.l.b16 %v440
    %v638 = vunpack.c.h.b16 %v440
    %v639 = vunpack.c.l.b16 %v441
    %v640 = vunpack.c.h.b16 %v441
    %v641 = vunpack.c.l.b16 %v442
    %v642 = vunpack.c.h.b16 %v442
    %v643 = vunpack.c.l.b16 %v443
    %v644 = vunpack.c.h.b16 %v443
    %v645 = vunpack.c.l.b16 %v444
    %v646 = vunpack.c.h.b16 %v444
    %v647 = vunpack.c.l.b16 %v445
    %v648 = vunpack.c.h.b16 %v445
    %v649 = vunpack.c.l.b16 %v446
    %v650 = vunpack.c.h.b16 %v446
    %v651 = vunpack.c.l.b16 %v447
    %v652 = vunpack.c.h.b16 %v447
    %v653 = vunpack.c.l.b16 %v448
    %v654 = vunpack.c.h.b16 %v448
    %v655 = vunpack.c.l.b16 %v449
    %v656 = vunpack.c.h.b16 %v449
    %v657 = vunpack.c.l.b16 %v450
    %v658 = vunpack.c.h.b16 %v450
    %v659 = vunpack.c.l.b16 %v451
    %v660 = vunpack.c.h.b16 %v451
    %v661 = vunpack.c.l.b16 %v452
    %v662 = vunpack.c.h.b16 %v452
    %v663 = vunpack.c.l.b16 %v453
    %v664 = vunpack.c.h.b16 %v453
    %v665 = vunpack.c.l.b16 %v454
    %v666 = vunpack.c.h.b16 %v454
    %v667 = vunpack.c.l.b16 %v455
    %v668 = vunpack.c.h.b16 %v455
    %v669 = vpack.c.b16 %v545, %v541
    %v670 = vpack.c.b16 %v546, %v542
    %v671 = vpack.c.b16 %v547, %v543
    %v672 = vpack.c.b16 %v548, %v544
    %v673 = vpack.c.b16 %v553, %v549
    %v674 = vpack.c.b16 %v554, %v550
    %v675 = vpack.c.b16 %v555, %v551
    %v676 = vpack.c.b16 %v556, %v552
    %v677 = vpack.c.b16 %v561, %v557
    %v678 = vpack.c.b16 %v562, %v558
    %v679 = vpack.c.b16 %v563, %v559
    %v680 = vpack.c.b16 %v564, %v560
    %v681 = vpack.c.b16 %v569, %v565
    %v682 = vpack.c.b16 %v570, %v566
    %v683 = vpack.c.b16 %v571, %v567
    %v684 = vpack.c.b16 %v572, %v568
    %v685 = vpack.c.b16 %v577, %v573
    %v686 = vpack.c.b16 %v578, %v574
    %v687 = vpack.c.b16 %v579, %v575
    %v688 = vpack.c.b16 %v580, %v576
    %v689 = vpack.c.b16 %v585, %v581
    %v690 = vpack.c.b16 %v586, %v582
    %v691 = vpack.c.b16 %v587, %v583
    %v692 = vpack.c.b16 %v588, %v584
    %v693 = vpack.c.b16 %v593, %v589
    %v694 = vpack.c.b16 %v594, %v590
    %v695 = vpack.c.b16 %v595, %v591
    %v696 = vpack.c.b16 %v596, %v592
    %v697 = vpack.c.b16 %v601, %v597
    %v698 = vpack.c.b16 %v602, %v598
    %v699 = vpack.c.b16 %v603, %v599
    %v700 = vpack.c.b16 %v604, %v600
    %v701 = vpack.c.b16 %v609, %v605
    %v702 = vpack.c.b16 %v610, %v606
    %v703 = vpack.c.b16 %v611, %v607
    %v704 = vpack.c.b16 %v612, %v608
    %v705 = vpack.c.b16 %v617, %v613
    %v706 = vpack.c.b16 %v618, %v614
    %v707 = vpack.c.b16 %v619, %v615
    %v708 = vpack.c.b16 %v620, %v616
    %v709 = vpack.c.b16 %v625, %v621
    %v710 = vpack.c.b16 %v626, %v622
    %v711 = vpack.c.b16 %v627, %v623
    %v712 = vpack.c.b16 %v628, %v624
    %v713 = vpack.c.b16 %v633, %v629
    %v714 = vpack.c.b16 %v634, %v630
    %v715 = vpack.c.b16 %v635, %v631
    %v716 = vpack.c.b16 %v636, %v632
    %v717 = vpack.c.b16 %v641, %v637
    %v718 = vpack.c.b16 %v642, %v638
    %v719 = vpack.c.b16 %v643, %v639
    %v720 = vpack.c.b16 %v644, %v640
    %v721 = vpack.c.b16 %v649, %v645
    %v722 = vpack.c.b16 %v650, %v646
    %v723 = vpack.c.b16 %v651, %v647
    %v724 = vpack.c.b16 %v652, %v648
    %v725 = vpack.c.b16 %v657, %v653
    %v726 = vpack.c.b16 %v658, %v654
    %v727 = vpack.c.b16 %v659, %v655
    %v728 = vpack.c.b16 %v660, %v656
    %v729 = vpack.c.b16 %v665, %v661
    %v730 = vpack.c.b16 %v666, %v662
    %v731 = vpack.c.b16 %v667, %v663
    %v732 = vpack.c.b16 %v668, %v664
    %797 = vmatprep.subr.bf16.mxu0 %v670
    %798 = vmatpush1.bf16.msra.mxu0 %v669
    %799 = vmatprep.subr.bf16.mxu0 %v674
    %800 = vmatpush1.bf16.msra.mxu0 %v673
    %801 = vmatprep.subr.bf16.mxu0 %v678
    %802 = vmatpush1.bf16.msra.mxu0 %v677
    %803 = vmatprep.subr.bf16.mxu0 %v682
    %804 = vmatpush1.bf16.msra.mxu0 %v681
    %805 = vmatprep.subr.bf16.mxu0 %v686
    %806 = vmatpush1.bf16.msra.mxu0 %v685
    %807 = vmatprep.subr.bf16.mxu0 %v690
    %808 = vmatpush1.bf16.msra.mxu0 %v689
    %809 = vmatprep.subr.bf16.mxu0 %v694
    %810 = vmatpush1.bf16.msra.mxu0 %v693
    %811 = vmatprep.subr.bf16.mxu0 %v698
    %812 = vmatpush1.bf16.msra.mxu0 %v697
    %813 = vmatprep.subr.bf16.mxu0 %v702
    %814 = vmatpush1.bf16.msra.mxu0 %v701
    %815 = vmatprep.subr.bf16.mxu0 %v706
    %816 = vmatpush1.bf16.msra.mxu0 %v705
    %817 = vmatprep.subr.bf16.mxu0 %v710
    %818 = vmatpush1.bf16.msra.mxu0 %v709
    %819 = vmatprep.subr.bf16.mxu0 %v714
    %820 = vmatpush1.bf16.msra.mxu0 %v713
    %821 = vmatprep.subr.bf16.mxu0 %v718
    %822 = vmatpush1.bf16.msra.mxu0 %v717
    %823 = vmatprep.subr.bf16.mxu0 %v722
    %824 = vmatpush1.bf16.msra.mxu0 %v721
    %825 = vmatprep.subr.bf16.mxu0 %v726
    %826 = vmatpush1.bf16.msra.mxu0 %v725
    %827 = vmatprep.subr.bf16.mxu0 %v730
    %828 = vmatpush1.bf16.msra.mxu0 %v729
    %829 = vmatprep.mubr.bf16.mxu0 %v391
    %830 = vmatmul.mubr.bf16.gmra.mrb[0].mxu0 %v390
    %v831 = vpop.f32.mrb[0].mxu0
    %v832 = vadd.f32 %v460, %v831
    %v833 = vpop.f32.mrb[0].mxu0
    %v834 = vadd.f32 %v464, %v833
    %v835 = vpop.f32.mrb[0].mxu0
    %v836 = vpop.f32.mrb[0].mxu0
    %837 = vdwg.mxu0
    %838 = vmatprep.subr.bf16.mxu0 %v672
    %839 = vmatpush1.bf16.msra.mxu0 %v671
    %840 = vmatprep.subr.bf16.mxu0 %v676
    %841 = vmatpush1.bf16.msra.mxu0 %v675
    %842 = vmatprep.subr.bf16.mxu0 %v680
    %843 = vmatpush1.bf16.msra.mxu0 %v679
    %844 = vmatprep.subr.bf16.mxu0 %v684
    %845 = vmatpush1.bf16.msra.mxu0 %v683
    %846 = vmatprep.subr.bf16.mxu0 %v688
    %847 = vmatpush1.bf16.msra.mxu0 %v687
    %848 = vmatprep.subr.bf16.mxu0 %v692
    %849 = vmatpush1.bf16.msra.mxu0 %v691
    %850 = vmatprep.subr.bf16.mxu0 %v696
    %851 = vmatpush1.bf16.msra.mxu0 %v695
    %852 = vmatprep.subr.bf16.mxu0 %v700
    %853 = vmatpush1.bf16.msra.mxu0 %v699
    %854 = vmatprep.subr.bf16.mxu0 %v704
    %855 = vmatpush1.bf16.msra.mxu0 %v703
    %856 = vmatprep.subr.bf16.mxu0 %v708
    %857 = vmatpush1.bf16.msra.mxu0 %v707
    %858 = vmatprep.subr.bf16.mxu0 %v712
    %859 = vmatpush1.bf16.msra.mxu0 %v711
    %860 = vmatprep.subr.bf16.mxu0 %v716
    %861 = vmatpush1.bf16.msra.mxu0 %v715
    %862 = vmatprep.subr.bf16.mxu0 %v720
    %863 = vmatpush1.bf16.msra.mxu0 %v719
    %864 = vmatprep.subr.bf16.mxu0 %v724
    %865 = vmatpush1.bf16.msra.mxu0 %v723
    %866 = vmatprep.subr.bf16.mxu0 %v728
    %867 = vmatpush1.bf16.msra.mxu0 %v727
    %868 = vmatprep.subr.bf16.mxu0 %v732
    %869 = vmatpush1.bf16.msra.mxu0 %v731
    %870 = vmatprep.mubr.bf16.mxu0 %v391
    %871 = vmatmul.mubr.bf16.gmra.mrb[0].mxu0 %v390
    %v872 = vpop.f32.mrb[0].mxu0
    %v873 = vadd.f32 %v468, %v872
    %v874 = vpop.f32.mrb[0].mxu0
    %v875 = vadd.f32 %v472, %v874
    %v876 = vpop.f32.mrb[0].mxu0
    %v877 = vpop.f32.mrb[0].mxu0
    %878 = vdwg.mxu0
    %v879 = vrot.slane %v832, 4
    %v880 = vadd.f32 %v832, %v879
    %v881 = vrot.slane %v880, 2
    %v882 = vadd.f32 %v880, %v881
    %v883 = vrot.slane %v882, 1
    %v884 = vadd.f32 %v882, %v883
    %v885 = vrot.slane %v834, 4
    %v886 = vadd.f32 %v834, %v885
    %v887 = vrot.slane %v886, 2
    %v888 = vadd.f32 %v886, %v887
    %v889 = vrot.slane %v888, 1
    %v890 = vadd.f32 %v888, %v889
    %v891 = vrot.slane %v873, 4
    %v892 = vadd.f32 %v873, %v891
    %v893 = vrot.slane %v892, 2
    %v894 = vadd.f32 %v892, %v893
    %v895 = vrot.slane %v894, 1
    %v896 = vadd.f32 %v894, %v895
    %v897 = vrot.slane %v875, 4
    %v898 = vadd.f32 %v875, %v897
    %v899 = vrot.slane %v898, 2
    %v900 = vadd.f32 %v898, %v899
    %v901 = vrot.slane %v900, 1
    %v902 = vadd.f32 %v900, %v901
    %v903 = vmul.f32 %v884, %v100
    %v904 = vmul.f32 %v890, %v100
    %v905 = vmul.f32 %v896, %v100
    %v906 = vmul.f32 %v902, %v100
    %v907 = vsub.f32 %v832, %v903
    %v908 = vsub.f32 %v834, %v904
    %v909 = vsub.f32 %v873, %v905
    %v910 = vsub.f32 %v875, %v906
    %v911 = vmul.f32 %v907, %v907
    %v912 = vmul.f32 %v908, %v908
    %v913 = vmul.f32 %v909, %v909
    %v914 = vmul.f32 %v910, %v910
    %v915 = vrot.slane %v911, 4
    %v916 = vadd.f32 %v911, %v915
    %v917 = vrot.slane %v916, 2
    %v918 = vadd.f32 %v916, %v917
    %v919 = vrot.slane %v918, 1
    %v920 = vadd.f32 %v918, %v919
    %v921 = vrot.slane %v912, 4
    %v922 = vadd.f32 %v912, %v921
    %v923 = vrot.slane %v922, 2
    %v924 = vadd.f32 %v922, %v923
    %v925 = vrot.slane %v924, 1
    %v926 = vadd.f32 %v924, %v925
    %v927 = vrot.slane %v913, 4
    %v928 = vadd.f32 %v913, %v927
    %v929 = vrot.slane %v928, 2
    %v930 = vadd.f32 %v928, %v929
    %v931 = vrot.slane %v930, 1
    %v932 = vadd.f32 %v930, %v931
    %v933 = vrot.slane %v914, 4
    %v934 = vadd.f32 %v914, %v933
    %v935 = vrot.slane %v934, 2
    %v936 = vadd.f32 %v934, %v935
    %v937 = vrot.slane %v936, 1
    %v938 = vadd.f32 %v936, %v937
    %v939 = vmul.f32 %v920, %v100
    %v940 = vmul.f32 %v926, %v100
    %v941 = vmul.f32 %v932, %v100
    %v942 = vmul.f32 %v938, %v100
    %v943 = vadd.f32 %v939, 1e-05
    %v944 = vadd.f32 %v940, 1e-05
    %v945 = vadd.f32 %v941, 1e-05
    %v946 = vadd.f32 %v942, 1e-05
    %v947 = vrsqrt.pop %v943
    %v948 = vrsqrt.pop %v944
    %v949 = vrsqrt.pop %v945
    %v950 = vrsqrt.pop %v946
    %v955 = vcombine.low %v947, %v948
    %v956 = vcombine.low %v949, %v950
    %v958 = vunpack.c.l.s4 1966171168
    %v959 = vunpack.c.0.s8 %v958
    %v960 = vlaneseq
    %v961 = vshrl.u32 %v960, 7
    %v962 = vsub.s32 %v959, %v961
    %v963 = vrot.slane %v955, %v962
    %v965 = vunpack.c.l.s4 1966171168
    %v966 = vunpack.c.0.s8 %v965
    %v967 = vlaneseq
    %v968 = vshrl.u32 %v967, 7
    %v969 = vsub.s32 %v966, %v968
    %v970 = vrot.slane %v956, %v969
    %v971 = vcombine.low %v963, %v970
    %v973 = vunpack.c.l.s4 1966171168
    %v974 = vunpack.c.0.s8 %v973
    %v975 = vlaneseq
    %v976 = vshrl.u32 %v975, 7
    %v977 = vsub.s32 %v974, %v976
    %v978 = vrot.slane %v971, %v977
    %v980 = vmul.f32 %v388, %v978
    %v982 = vlaneseq
    %v983 = vshrl.u32 %v982, 7
    %v984 = vsub.s32 0, %v983
    %v985 = vrot.slane %v980, %v984
    %v986 = vlaneseq
    %v987 = vshrl.u32 %v986, 7
    %v988 = vsub.s32 1, %v987
    %v989 = vrot.slane %v980, %v988
    %v990 = vlaneseq
    %v991 = vshrl.u32 %v990, 7
    %v992 = vsub.s32 2, %v991
    %v993 = vrot.slane %v980, %v992
    %v994 = vlaneseq
    %v995 = vshrl.u32 %v994, 7
    %v996 = vsub.s32 3, %v995
    %v997 = vrot.slane %v980, %v996
    %v1002 = vmul.f32 %v903, %v985
    %v1003 = vmul.f32 %v904, %v989
    %v1004 = vmul.f32 %v905, %v993
    %v1005 = vmul.f32 %v906, %v997
    %v1010 = vcombine.low %v1002, %v1003
    %v1011 = vcombine.low %v1004, %v1005
    %v1013 = vunpack.c.l.s4 1966171168
    %v1014 = vunpack.c.0.s8 %v1013
    %v1015 = vlaneseq
    %v1016 = vshrl.u32 %v1015, 7
    %v1017 = vsub.s32 %v1014, %v1016
    %v1018 = vrot.slane %v1010, %v1017
    %v1020 = vunpack.c.l.s4 1966171168
    %v1021 = vunpack.c.0.s8 %v1020
    %v1022 = vlaneseq
    %v1023 = vshrl.u32 %v1022, 7
    %v1024 = vsub.s32 %v1021, %v1023
    %v1025 = vrot.slane %v1011, %v1024
    %v1026 = vcombine.low %v1018, %v1025
    %v1028 = vunpack.c.l.s4 1966171168
    %v1029 = vunpack.c.0.s8 %v1028
    %v1030 = vlaneseq
    %v1031 = vshrl.u32 %v1030, 7
    %v1032 = vsub.s32 %v1029, %v1031
    %v1033 = vrot.slane %v1026, %v1032
    %v1035 = vsub.f32 %v389, %v1033
    %v1036 = vmul.f32 %v832, %v985
    %v1037 = vmul.f32 %v834, %v989
    %v1038 = vmul.f32 %v873, %v993
    %v1039 = vmul.f32 %v875, %v997
    %v1041 = vlaneseq
    %v1042 = vshrl.u32 %v1041, 7
    %v1043 = vsub.s32 0, %v1042
    %v1044 = vrot.slane %v1035, %v1043
    %v1045 = vlaneseq
    %v1046 = vshrl.u32 %v1045, 7
    %v1047 = vsub.s32 1, %v1046
    %v1048 = vrot.slane %v1035, %v1047
    %v1049 = vlaneseq
    %v1050 = vshrl.u32 %v1049, 7
    %v1051 = vsub.s32 2, %v1050
    %v1052 = vrot.slane %v1035, %v1051
    %v1053 = vlaneseq
    %v1054 = vshrl.u32 %v1053, 7
    %v1055 = vsub.s32 3, %v1054
    %v1056 = vrot.slane %v1035, %v1055
    %v1061 = vadd.f32 %v1036, %v1044
    %v1062 = vadd.f32 %v1037, %v1048
    %v1063 = vadd.f32 %v1038, %v1052
    %v1064 = vadd.f32 %v1039, %v1056
    %v1065 = vmax.f32 %v1061, 0.0
    %v1066 = vmax.f32 %v1062, 0.0
    %v1067 = vmax.f32 %v1063, 0.0
    %v1068 = vmax.f32 %v1064, 0.0
    %v1069 = vld [vmem:[%s6 + $0x15] sm:$0xff]
    %v1070 = vld [vmem:[%s6 + $0x1d] sm:$0xff]
    %v1071 = vld [vmem:[%s6 + $0x25] sm:$0xff]
    %v1072 = vpack.c.bf16 %v1065, %v1065
    %v1073 = vpack.c.bf16 %v1066, %v1066
    %v1074 = vpack.c.bf16 %v1067, %v1067
    %v1075 = vpack.c.bf16 %v1068, %v1068
    %v1076 = vld [vmem:[%s4] sm:$0xff]
    %v1077 = vld [vmem:[%s4 + $0x8] sm:$0xff]
    %v1078 = vld [vmem:[%s4 + $0x10] sm:$0xff]
    %v1079 = vld [vmem:[%s4 + $0x18] sm:$0xff]
    %v1080 = vld [vmem:[%s4 + $0x20] sm:$0xff]
    %v1081 = vld [vmem:[%s4 + $0x28] sm:$0xff]
    %v1082 = vld [vmem:[%s4 + $0x30] sm:$0xff]
    %v1083 = vld [vmem:[%s4 + $0x38] sm:$0xff]
    %v1084 = vld [vmem:[%s4 + $0x40] sm:$0xff]
    %v1085 = vld [vmem:[%s4 + $0x48] sm:$0xff]
    %v1086 = vld [vmem:[%s4 + $0x50] sm:$0xff]
    %v1087 = vld [vmem:[%s4 + $0x58] sm:$0xff]
    %v1088 = vld [vmem:[%s4 + $0x60] sm:$0xff]
    %v1089 = vld [vmem:[%s4 + $0x68] sm:$0xff]
    %v1090 = vld [vmem:[%s4 + $0x70] sm:$0xff]
    %v1091 = vld [vmem:[%s4 + $0x78] sm:$0xff]
    %v1092 = vld [vmem:[%s4 + $0x80] sm:$0xff]
    %v1093 = vld [vmem:[%s4 + $0x88] sm:$0xff]
    %v1094 = vld [vmem:[%s4 + $0x90] sm:$0xff]
    %v1095 = vld [vmem:[%s4 + $0x98] sm:$0xff]
    %v1096 = vld [vmem:[%s4 + $0xa0] sm:$0xff]
    %v1097 = vld [vmem:[%s4 + $0xa8] sm:$0xff]
    %v1098 = vld [vmem:[%s4 + $0xb0] sm:$0xff]
    %v1099 = vld [vmem:[%s4 + $0xb8] sm:$0xff]
    %v1100 = vld [vmem:[%s4 + $0xc0] sm:$0xff]
    %v1101 = vld [vmem:[%s4 + $0xc8] sm:$0xff]
    %v1102 = vld [vmem:[%s4 + $0xd0] sm:$0xff]
    %v1103 = vld [vmem:[%s4 + $0xd8] sm:$0xff]
    %v1104 = vld [vmem:[%s4 + $0xe0] sm:$0xff]
    %v1105 = vld [vmem:[%s4 + $0xe8] sm:$0xff]
    %v1106 = vld [vmem:[%s4 + $0xf0] sm:$0xff]
    %v1107 = vld [vmem:[%s4 + $0xf8] sm:$0xff]
    %v1108 = vld [vmem:[%s4 + $0x100] sm:$0xff]
    %v1109 = vld [vmem:[%s4 + $0x108] sm:$0xff]
    %v1110 = vld [vmem:[%s4 + $0x110] sm:$0xff]
    %v1111 = vld [vmem:[%s4 + $0x118] sm:$0xff]
    %v1112 = vld [vmem:[%s4 + $0x120] sm:$0xff]
    %v1113 = vld [vmem:[%s4 + $0x128] sm:$0xff]
    %v1114 = vld [vmem:[%s4 + $0x130] sm:$0xff]
    %v1115 = vld [vmem:[%s4 + $0x138] sm:$0xff]
    %v1116 = vld [vmem:[%s4 + $0x140] sm:$0xff]
    %v1117 = vld [vmem:[%s4 + $0x148] sm:$0xff]
    %v1118 = vld [vmem:[%s4 + $0x150] sm:$0xff]
    %v1119 = vld [vmem:[%s4 + $0x158] sm:$0xff]
    %v1120 = vld [vmem:[%s4 + $0x160] sm:$0xff]
    %v1121 = vld [vmem:[%s4 + $0x168] sm:$0xff]
    %v1122 = vld [vmem:[%s4 + $0x170] sm:$0xff]
    %v1123 = vld [vmem:[%s4 + $0x178] sm:$0xff]
    %v1124 = vld [vmem:[%s4 + $0x180] sm:$0xff]
    %v1125 = vld [vmem:[%s4 + $0x188] sm:$0xff]
    %v1126 = vld [vmem:[%s4 + $0x190] sm:$0xff]
    %v1127 = vld [vmem:[%s4 + $0x198] sm:$0xff]
    %v1128 = vld [vmem:[%s4 + $0x1a0] sm:$0xff]
    %v1129 = vld [vmem:[%s4 + $0x1a8] sm:$0xff]
    %v1130 = vld [vmem:[%s4 + $0x1b0] sm:$0xff]
    %v1131 = vld [vmem:[%s4 + $0x1b8] sm:$0xff]
    %v1132 = vld [vmem:[%s4 + $0x1c0] sm:$0xff]
    %v1133 = vld [vmem:[%s4 + $0x1c8] sm:$0xff]
    %v1134 = vld [vmem:[%s4 + $0x1d0] sm:$0xff]
    %v1135 = vld [vmem:[%s4 + $0x1d8] sm:$0xff]
    %v1136 = vld [vmem:[%s4 + $0x1e0] sm:$0xff]
    %v1137 = vld [vmem:[%s4 + $0x1e8] sm:$0xff]
    %v1138 = vld [vmem:[%s4 + $0x1f0] sm:$0xff]
    %v1139 = vld [vmem:[%s4 + $0x1f8] sm:$0xff]
    %v1140 = vld [vmem:[%s4 + $0x200] sm:$0xff]
    %v1141 = vld [vmem:[%s4 + $0x208] sm:$0xff]
    %v1142 = vld [vmem:[%s4 + $0x210] sm:$0xff]
    %v1143 = vld [vmem:[%s4 + $0x218] sm:$0xff]
    %v1144 = vld [vmem:[%s4 + $0x220] sm:$0xff]
    %v1145 = vld [vmem:[%s4 + $0x228] sm:$0xff]
    %v1146 = vld [vmem:[%s4 + $0x230] sm:$0xff]
    %v1147 = vld [vmem:[%s4 + $0x238] sm:$0xff]
    %v1148 = vld [vmem:[%s4 + $0x240] sm:$0xff]
    %v1149 = vld [vmem:[%s4 + $0x248] sm:$0xff]
    %v1150 = vld [vmem:[%s4 + $0x250] sm:$0xff]
    %v1151 = vld [vmem:[%s4 + $0x258] sm:$0xff]
    %v1152 = vld [vmem:[%s4 + $0x260] sm:$0xff]
    %v1153 = vld [vmem:[%s4 + $0x268] sm:$0xff]
    %v1154 = vld [vmem:[%s4 + $0x270] sm:$0xff]
    %v1155 = vld [vmem:[%s4 + $0x278] sm:$0xff]
    %v1156 = vld [vmem:[%s4 + $0x280] sm:$0xff]
    %v1157 = vld [vmem:[%s4 + $0x288] sm:$0xff]
    %v1158 = vld [vmem:[%s4 + $0x290] sm:$0xff]
    %v1159 = vld [vmem:[%s4 + $0x298] sm:$0xff]
    %v1160 = vld [vmem:[%s4 + $0x2a0] sm:$0xff]
    %v1161 = vld [vmem:[%s4 + $0x2a8] sm:$0xff]
    %v1162 = vld [vmem:[%s4 + $0x2b0] sm:$0xff]
    %v1163 = vld [vmem:[%s4 + $0x2b8] sm:$0xff]
    %v1164 = vld [vmem:[%s4 + $0x2c0] sm:$0xff]
    %v1165 = vld [vmem:[%s4 + $0x2c8] sm:$0xff]
    %v1166 = vld [vmem:[%s4 + $0x2d0] sm:$0xff]
    %v1167 = vld [vmem:[%s4 + $0x2d8] sm:$0xff]
    %v1168 = vld [vmem:[%s4 + $0x2e0] sm:$0xff]
    %v1169 = vld [vmem:[%s4 + $0x2e8] sm:$0xff]
    %v1170 = vld [vmem:[%s4 + $0x2f0] sm:$0xff]
    %v1171 = vld [vmem:[%s4 + $0x2f8] sm:$0xff]
    %v1172 = vld [vmem:[%s4 + $0x300] sm:$0xff]
    %v1173 = vld [vmem:[%s4 + $0x308] sm:$0xff]
    %v1174 = vld [vmem:[%s4 + $0x310] sm:$0xff]
    %v1175 = vld [vmem:[%s4 + $0x318] sm:$0xff]
    %v1176 = vld [vmem:[%s4 + $0x320] sm:$0xff]
    %v1177 = vld [vmem:[%s4 + $0x328] sm:$0xff]
    %v1178 = vld [vmem:[%s4 + $0x330] sm:$0xff]
    %v1179 = vld [vmem:[%s4 + $0x338] sm:$0xff]
    %v1180 = vld [vmem:[%s4 + $0x340] sm:$0xff]
    %v1181 = vld [vmem:[%s4 + $0x348] sm:$0xff]
    %v1182 = vld [vmem:[%s4 + $0x350] sm:$0xff]
    %v1183 = vld [vmem:[%s4 + $0x358] sm:$0xff]
    %v1184 = vld [vmem:[%s4 + $0x360] sm:$0xff]
    %v1185 = vld [vmem:[%s4 + $0x368] sm:$0xff]
    %v1186 = vld [vmem:[%s4 + $0x370] sm:$0xff]
    %v1187 = vld [vmem:[%s4 + $0x378] sm:$0xff]
    %v1188 = vld [vmem:[%s4 + $0x380] sm:$0xff]
    %v1189 = vld [vmem:[%s4 + $0x388] sm:$0xff]
    %v1190 = vld [vmem:[%s4 + $0x390] sm:$0xff]
    %v1191 = vld [vmem:[%s4 + $0x398] sm:$0xff]
    %v1192 = vld [vmem:[%s4 + $0x3a0] sm:$0xff]
    %v1193 = vld [vmem:[%s4 + $0x3a8] sm:$0xff]
    %v1194 = vld [vmem:[%s4 + $0x3b0] sm:$0xff]
    %v1195 = vld [vmem:[%s4 + $0x3b8] sm:$0xff]
    %v1196 = vld [vmem:[%s4 + $0x3c0] sm:$0xff]
    %v1197 = vld [vmem:[%s4 + $0x3c8] sm:$0xff]
    %v1198 = vld [vmem:[%s4 + $0x3d0] sm:$0xff]
    %v1199 = vld [vmem:[%s4 + $0x3d8] sm:$0xff]
    %v1200 = vld [vmem:[%s4 + $0x3e0] sm:$0xff]
    %v1201 = vld [vmem:[%s4 + $0x3e8] sm:$0xff]
    %v1202 = vld [vmem:[%s4 + $0x3f0] sm:$0xff]
    %v1203 = vld [vmem:[%s4 + $0x3f8] sm:$0xff]
    %v1204 = vld [vmem:[%s4 + $0x400] sm:$0xff]
    %v1205 = vld [vmem:[%s4 + $0x408] sm:$0xff]
    %v1206 = vld [vmem:[%s4 + $0x410] sm:$0xff]
    %v1207 = vld [vmem:[%s4 + $0x418] sm:$0xff]
    %v1208 = vld [vmem:[%s4 + $0x420] sm:$0xff]
    %v1209 = vld [vmem:[%s4 + $0x428] sm:$0xff]
    %v1210 = vld [vmem:[%s4 + $0x430] sm:$0xff]
    %v1211 = vld [vmem:[%s4 + $0x438] sm:$0xff]
    %v1212 = vld [vmem:[%s4 + $0x440] sm:$0xff]
    %v1213 = vld [vmem:[%s4 + $0x448] sm:$0xff]
    %v1214 = vld [vmem:[%s4 + $0x450] sm:$0xff]
    %v1215 = vld [vmem:[%s4 + $0x458] sm:$0xff]
    %v1216 = vld [vmem:[%s4 + $0x460] sm:$0xff]
    %v1217 = vld [vmem:[%s4 + $0x468] sm:$0xff]
    %v1218 = vld [vmem:[%s4 + $0x470] sm:$0xff]
    %v1219 = vld [vmem:[%s4 + $0x478] sm:$0xff]
    %v1220 = vld [vmem:[%s4 + $0x480] sm:$0xff]
    %v1221 = vld [vmem:[%s4 + $0x488] sm:$0xff]
    %v1222 = vld [vmem:[%s4 + $0x490] sm:$0xff]
    %v1223 = vld [vmem:[%s4 + $0x498] sm:$0xff]
    %v1224 = vld [vmem:[%s4 + $0x4a0] sm:$0xff]
    %v1225 = vld [vmem:[%s4 + $0x4a8] sm:$0xff]
    %v1226 = vld [vmem:[%s4 + $0x4b0] sm:$0xff]
    %v1227 = vld [vmem:[%s4 + $0x4b8] sm:$0xff]
    %v1228 = vld [vmem:[%s4 + $0x4c0] sm:$0xff]
    %v1229 = vld [vmem:[%s4 + $0x4c8] sm:$0xff]
    %v1230 = vld [vmem:[%s4 + $0x4d0] sm:$0xff]
    %v1231 = vld [vmem:[%s4 + $0x4d8] sm:$0xff]
    %v1232 = vld [vmem:[%s4 + $0x4e0] sm:$0xff]
    %v1233 = vld [vmem:[%s4 + $0x4e8] sm:$0xff]
    %v1234 = vld [vmem:[%s4 + $0x4f0] sm:$0xff]
    %v1235 = vld [vmem:[%s4 + $0x4f8] sm:$0xff]
    %v1236 = vld [vmem:[%s4 + $0x500] sm:$0xff]
    %v1237 = vld [vmem:[%s4 + $0x508] sm:$0xff]
    %v1238 = vld [vmem:[%s4 + $0x510] sm:$0xff]
    %v1239 = vld [vmem:[%s4 + $0x518] sm:$0xff]
    %v1240 = vld [vmem:[%s4 + $0x520] sm:$0xff]
    %v1241 = vld [vmem:[%s4 + $0x528] sm:$0xff]
    %v1242 = vld [vmem:[%s4 + $0x530] sm:$0xff]
    %v1243 = vld [vmem:[%s4 + $0x538] sm:$0xff]
    %v1244 = vld [vmem:[%s4 + $0x540] sm:$0xff]
    %v1245 = vld [vmem:[%s4 + $0x548] sm:$0xff]
    %v1246 = vld [vmem:[%s4 + $0x550] sm:$0xff]
    %v1247 = vld [vmem:[%s4 + $0x558] sm:$0xff]
    %v1248 = vld [vmem:[%s4 + $0x560] sm:$0xff]
    %v1249 = vld [vmem:[%s4 + $0x568] sm:$0xff]
    %v1250 = vld [vmem:[%s4 + $0x570] sm:$0xff]
    %v1251 = vld [vmem:[%s4 + $0x578] sm:$0xff]
    %v1252 = vld [vmem:[%s4 + $0x580] sm:$0xff]
    %v1253 = vld [vmem:[%s4 + $0x588] sm:$0xff]
    %v1254 = vld [vmem:[%s4 + $0x590] sm:$0xff]
    %v1255 = vld [vmem:[%s4 + $0x598] sm:$0xff]
    %v1256 = vld [vmem:[%s4 + $0x5a0] sm:$0xff]
    %v1257 = vld [vmem:[%s4 + $0x5a8] sm:$0xff]
    %v1258 = vld [vmem:[%s4 + $0x5b0] sm:$0xff]
    %v1259 = vld [vmem:[%s4 + $0x5b8] sm:$0xff]
    %v1260 = vld [vmem:[%s4 + $0x5c0] sm:$0xff]
    %v1261 = vld [vmem:[%s4 + $0x5c8] sm:$0xff]
    %v1262 = vld [vmem:[%s4 + $0x5d0] sm:$0xff]
    %v1263 = vld [vmem:[%s4 + $0x5d8] sm:$0xff]
    %v1264 = vld [vmem:[%s4 + $0x5e0] sm:$0xff]
    %v1265 = vld [vmem:[%s4 + $0x5e8] sm:$0xff]
    %v1266 = vld [vmem:[%s4 + $0x5f0] sm:$0xff]
    %v1267 = vld [vmem:[%s4 + $0x5f8] sm:$0xff]
    %v1268 = vld [vmem:[%s4 + $0x600] sm:$0xff]
    %v1269 = vld [vmem:[%s4 + $0x608] sm:$0xff]
    %v1270 = vld [vmem:[%s4 + $0x610] sm:$0xff]
    %v1271 = vld [vmem:[%s4 + $0x618] sm:$0xff]
    %v1272 = vld [vmem:[%s4 + $0x620] sm:$0xff]
    %v1273 = vld [vmem:[%s4 + $0x628] sm:$0xff]
    %v1274 = vld [vmem:[%s4 + $0x630] sm:$0xff]
    %v1275 = vld [vmem:[%s4 + $0x638] sm:$0xff]
    %v1276 = vld [vmem:[%s4 + $0x640] sm:$0xff]
    %v1277 = vld [vmem:[%s4 + $0x648] sm:$0xff]
    %v1278 = vld [vmem:[%s4 + $0x650] sm:$0xff]
    %v1279 = vld [vmem:[%s4 + $0x658] sm:$0xff]
    %v1280 = vld [vmem:[%s4 + $0x660] sm:$0xff]
    %v1281 = vld [vmem:[%s4 + $0x668] sm:$0xff]
    %v1282 = vld [vmem:[%s4 + $0x670] sm:$0xff]
    %v1283 = vld [vmem:[%s4 + $0x678] sm:$0xff]
    %v1284 = vld [vmem:[%s4 + $0x680] sm:$0xff]
    %v1285 = vld [vmem:[%s4 + $0x688] sm:$0xff]
    %v1286 = vld [vmem:[%s4 + $0x690] sm:$0xff]
    %v1287 = vld [vmem:[%s4 + $0x698] sm:$0xff]
    %v1288 = vld [vmem:[%s4 + $0x6a0] sm:$0xff]
    %v1289 = vld [vmem:[%s4 + $0x6a8] sm:$0xff]
    %v1290 = vld [vmem:[%s4 + $0x6b0] sm:$0xff]
    %v1291 = vld [vmem:[%s4 + $0x6b8] sm:$0xff]
    %v1292 = vld [vmem:[%s4 + $0x6c0] sm:$0xff]
    %v1293 = vld [vmem:[%s4 + $0x6c8] sm:$0xff]
    %v1294 = vld [vmem:[%s4 + $0x6d0] sm:$0xff]
    %v1295 = vld [vmem:[%s4 + $0x6d8] sm:$0xff]
    %v1296 = vld [vmem:[%s4 + $0x6e0] sm:$0xff]
    %v1297 = vld [vmem:[%s4 + $0x6e8] sm:$0xff]
    %v1298 = vld [vmem:[%s4 + $0x6f0] sm:$0xff]
    %v1299 = vld [vmem:[%s4 + $0x6f8] sm:$0xff]
    %v1300 = vld [vmem:[%s4 + $0x700] sm:$0xff]
    %v1301 = vld [vmem:[%s4 + $0x708] sm:$0xff]
    %v1302 = vld [vmem:[%s4 + $0x710] sm:$0xff]
    %v1303 = vld [vmem:[%s4 + $0x718] sm:$0xff]
    %v1304 = vld [vmem:[%s4 + $0x720] sm:$0xff]
    %v1305 = vld [vmem:[%s4 + $0x728] sm:$0xff]
    %v1306 = vld [vmem:[%s4 + $0x730] sm:$0xff]
    %v1307 = vld [vmem:[%s4 + $0x738] sm:$0xff]
    %v1308 = vld [vmem:[%s4 + $0x740] sm:$0xff]
    %v1309 = vld [vmem:[%s4 + $0x748] sm:$0xff]
    %v1310 = vld [vmem:[%s4 + $0x750] sm:$0xff]
    %v1311 = vld [vmem:[%s4 + $0x758] sm:$0xff]
    %v1312 = vld [vmem:[%s4 + $0x760] sm:$0xff]
    %v1313 = vld [vmem:[%s4 + $0x768] sm:$0xff]
    %v1314 = vld [vmem:[%s4 + $0x770] sm:$0xff]
    %v1315 = vld [vmem:[%s4 + $0x778] sm:$0xff]
    %v1316 = vld [vmem:[%s4 + $0x780] sm:$0xff]
    %v1317 = vld [vmem:[%s4 + $0x788] sm:$0xff]
    %v1318 = vld [vmem:[%s4 + $0x790] sm:$0xff]
    %v1319 = vld [vmem:[%s4 + $0x798] sm:$0xff]
    %v1320 = vld [vmem:[%s4 + $0x7a0] sm:$0xff]
    %v1321 = vld [vmem:[%s4 + $0x7a8] sm:$0xff]
    %v1322 = vld [vmem:[%s4 + $0x7b0] sm:$0xff]
    %v1323 = vld [vmem:[%s4 + $0x7b8] sm:$0xff]
    %v1324 = vld [vmem:[%s4 + $0x7c0] sm:$0xff]
    %v1325 = vld [vmem:[%s4 + $0x7c8] sm:$0xff]
    %v1326 = vld [vmem:[%s4 + $0x7d0] sm:$0xff]
    %v1327 = vld [vmem:[%s4 + $0x7d8] sm:$0xff]
    %v1328 = vld [vmem:[%s4 + $0x7e0] sm:$0xff]
    %v1329 = vld [vmem:[%s4 + $0x7e8] sm:$0xff]
    %v1330 = vld [vmem:[%s4 + $0x7f0] sm:$0xff]
    %v1331 = vld [vmem:[%s4 + $0x7f8] sm:$0xff]
    %v1333 = vlaneseq
    %v1334 = vshrl.u32 %v1333, 7
    %v1335 = vsub.s32 0, %v1334
    %v1336 = vrot.slane %v1069, %v1335
    %v1337 = vlaneseq
    %v1338 = vshrl.u32 %v1337, 7
    %v1339 = vsub.s32 1, %v1338
    %v1340 = vrot.slane %v1069, %v1339
    %v1341 = vlaneseq
    %v1342 = vshrl.u32 %v1341, 7
    %v1343 = vsub.s32 2, %v1342
    %v1344 = vrot.slane %v1069, %v1343
    %v1345 = vlaneseq
    %v1346 = vshrl.u32 %v1345, 7
    %v1347 = vsub.s32 3, %v1346
    %v1348 = vrot.slane %v1069, %v1347
    %v1349 = vlaneseq
    %v1350 = vshrl.u32 %v1349, 7
    %v1351 = vsub.s32 4, %v1350
    %v1352 = vrot.slane %v1069, %v1351
    %v1353 = vlaneseq
    %v1354 = vshrl.u32 %v1353, 7
    %v1355 = vsub.s32 5, %v1354
    %v1356 = vrot.slane %v1069, %v1355
    %v1357 = vlaneseq
    %v1358 = vshrl.u32 %v1357, 7
    %v1359 = vsub.s32 6, %v1358
    %v1360 = vrot.slane %v1069, %v1359
    %v1361 = vlaneseq
    %v1362 = vshrl.u32 %v1361, 7
    %v1363 = vsub.s32 7, %v1362
    %v1364 = vrot.slane %v1069, %v1363
    %v1629 = vunpack.c.l.b16 %v1076
    %v1630 = vunpack.c.h.b16 %v1076
    %v1631 = vunpack.c.l.b16 %v1077
    %v1632 = vunpack.c.h.b16 %v1077
    %v1633 = vunpack.c.l.b16 %v1078
    %v1634 = vunpack.c.h.b16 %v1078
    %v1635 = vunpack.c.l.b16 %v1079
    %v1636 = vunpack.c.h.b16 %v1079
    %v1637 = vunpack.c.l.b16 %v1080
    %v1638 = vunpack.c.h.b16 %v1080
    %v1639 = vunpack.c.l.b16 %v1081
    %v1640 = vunpack.c.h.b16 %v1081
    %v1641 = vunpack.c.l.b16 %v1082
    %v1642 = vunpack.c.h.b16 %v1082
    %v1643 = vunpack.c.l.b16 %v1083
    %v1644 = vunpack.c.h.b16 %v1083
    %v1645 = vunpack.c.l.b16 %v1084
    %v1646 = vunpack.c.h.b16 %v1084
    %v1647 = vunpack.c.l.b16 %v1085
    %v1648 = vunpack.c.h.b16 %v1085
    %v1649 = vunpack.c.l.b16 %v1086
    %v1650 = vunpack.c.h.b16 %v1086
    %v1651 = vunpack.c.l.b16 %v1087
    %v1652 = vunpack.c.h.b16 %v1087
    %v1653 = vunpack.c.l.b16 %v1088
    %v1654 = vunpack.c.h.b16 %v1088
    %v1655 = vunpack.c.l.b16 %v1089
    %v1656 = vunpack.c.h.b16 %v1089
    %v1657 = vunpack.c.l.b16 %v1090
    %v1658 = vunpack.c.h.b16 %v1090
    %v1659 = vunpack.c.l.b16 %v1091
    %v1660 = vunpack.c.h.b16 %v1091
    %v1661 = vunpack.c.l.b16 %v1092
    %v1662 = vunpack.c.h.b16 %v1092
    %v1663 = vunpack.c.l.b16 %v1093
    %v1664 = vunpack.c.h.b16 %v1093
    %v1665 = vunpack.c.l.b16 %v1094
    %v1666 = vunpack.c.h.b16 %v1094
    %v1667 = vunpack.c.l.b16 %v1095
    %v1668 = vunpack.c.h.b16 %v1095
    %v1669 = vunpack.c.l.b16 %v1096
    %v1670 = vunpack.c.h.b16 %v1096
    %v1671 = vunpack.c.l.b16 %v1097
    %v1672 = vunpack.c.h.b16 %v1097
    %v1673 = vunpack.c.l.b16 %v1098
    %v1674 = vunpack.c.h.b16 %v1098
    %v1675 = vunpack.c.l.b16 %v1099
    %v1676 = vunpack.c.h.b16 %v1099
    %v1677 = vunpack.c.l.b16 %v1100
    %v1678 = vunpack.c.h.b16 %v1100
    %v1679 = vunpack.c.l.b16 %v1101
    %v1680 = vunpack.c.h.b16 %v1101
    %v1681 = vunpack.c.l.b16 %v1102
    %v1682 = vunpack.c.h.b16 %v1102
    %v1683 = vunpack.c.l.b16 %v1103
    %v1684 = vunpack.c.h.b16 %v1103
    %v1685 = vunpack.c.l.b16 %v1104
    %v1686 = vunpack.c.h.b16 %v1104
    %v1687 = vunpack.c.l.b16 %v1105
    %v1688 = vunpack.c.h.b16 %v1105
    %v1689 = vunpack.c.l.b16 %v1106
    %v1690 = vunpack.c.h.b16 %v1106
    %v1691 = vunpack.c.l.b16 %v1107
    %v1692 = vunpack.c.h.b16 %v1107
    %v1693 = vunpack.c.l.b16 %v1108
    %v1694 = vunpack.c.h.b16 %v1108
    %v1695 = vunpack.c.l.b16 %v1109
    %v1696 = vunpack.c.h.b16 %v1109
    %v1697 = vunpack.c.l.b16 %v1110
    %v1698 = vunpack.c.h.b16 %v1110
    %v1699 = vunpack.c.l.b16 %v1111
    %v1700 = vunpack.c.h.b16 %v1111
    %v1701 = vunpack.c.l.b16 %v1112
    %v1702 = vunpack.c.h.b16 %v1112
    %v1703 = vunpack.c.l.b16 %v1113
    %v1704 = vunpack.c.h.b16 %v1113
    %v1705 = vunpack.c.l.b16 %v1114
    %v1706 = vunpack.c.h.b16 %v1114
    %v1707 = vunpack.c.l.b16 %v1115
    %v1708 = vunpack.c.h.b16 %v1115
    %v1709 = vunpack.c.l.b16 %v1116
    %v1710 = vunpack.c.h.b16 %v1116
    %v1711 = vunpack.c.l.b16 %v1117
    %v1712 = vunpack.c.h.b16 %v1117
    %v1713 = vunpack.c.l.b16 %v1118
    %v1714 = vunpack.c.h.b16 %v1118
    %v1715 = vunpack.c.l.b16 %v1119
    %v1716 = vunpack.c.h.b16 %v1119
    %v1717 = vunpack.c.l.b16 %v1120
    %v1718 = vunpack.c.h.b16 %v1120
    %v1719 = vunpack.c.l.b16 %v1121
    %v1720 = vunpack.c.h.b16 %v1121
    %v1721 = vunpack.c.l.b16 %v1122
    %v1722 = vunpack.c.h.b16 %v1122
    %v1723 = vunpack.c.l.b16 %v1123
    %v1724 = vunpack.c.h.b16 %v1123
    %v1725 = vunpack.c.l.b16 %v1124
    %v1726 = vunpack.c.h.b16 %v1124
    %v1727 = vunpack.c.l.b16 %v1125
    %v1728 = vunpack.c.h.b16 %v1125
    %v1729 = vunpack.c.l.b16 %v1126
    %v1730 = vunpack.c.h.b16 %v1126
    %v1731 = vunpack.c.l.b16 %v1127
    %v1732 = vunpack.c.h.b16 %v1127
    %v1733 = vunpack.c.l.b16 %v1128
    %v1734 = vunpack.c.h.b16 %v1128
    %v1735 = vunpack.c.l.b16 %v1129
    %v1736 = vunpack.c.h.b16 %v1129
    %v1737 = vunpack.c.l.b16 %v1130
    %v1738 = vunpack.c.h.b16 %v1130
    %v1739 = vunpack.c.l.b16 %v1131
    %v1740 = vunpack.c.h.b16 %v1131
    %v1741 = vunpack.c.l.b16 %v1132
    %v1742 = vunpack.c.h.b16 %v1132
    %v1743 = vunpack.c.l.b16 %v1133
    %v1744 = vunpack.c.h.b16 %v1133
    %v1745 = vunpack.c.l.b16 %v1134
    %v1746 = vunpack.c.h.b16 %v1134
    %v1747 = vunpack.c.l.b16 %v1135
    %v1748 = vunpack.c.h.b16 %v1135
    %v1749 = vunpack.c.l.b16 %v1136
    %v1750 = vunpack.c.h.b16 %v1136
    %v1751 = vunpack.c.l.b16 %v1137
    %v1752 = vunpack.c.h.b16 %v1137
    %v1753 = vunpack.c.l.b16 %v1138
    %v1754 = vunpack.c.h.b16 %v1138
    %v1755 = vunpack.c.l.b16 %v1139
    %v1756 = vunpack.c.h.b16 %v1139
    %v1757 = vunpack.c.l.b16 %v1140
    %v1758 = vunpack.c.h.b16 %v1140
    %v1759 = vunpack.c.l.b16 %v1141
    %v1760 = vunpack.c.h.b16 %v1141
    %v1761 = vunpack.c.l.b16 %v1142
    %v1762 = vunpack.c.h.b16 %v1142
    %v1763 = vunpack.c.l.b16 %v1143
    %v1764 = vunpack.c.h.b16 %v1143
    %v1765 = vunpack.c.l.b16 %v1144
    %v1766 = vunpack.c.h.b16 %v1144
    %v1767 = vunpack.c.l.b16 %v1145
    %v1768 = vunpack.c.h.b16 %v1145
    %v1769 = vunpack.c.l.b16 %v1146
    %v1770 = vunpack.c.h.b16 %v1146
    %v1771 = vunpack.c.l.b16 %v1147
    %v1772 = vunpack.c.h.b16 %v1147
    %v1773 = vunpack.c.l.b16 %v1148
    %v1774 = vunpack.c.h.b16 %v1148
    %v1775 = vunpack.c.l.b16 %v1149
    %v1776 = vunpack.c.h.b16 %v1149
    %v1777 = vunpack.c.l.b16 %v1150
    %v1778 = vunpack.c.h.b16 %v1150
    %v1779 = vunpack.c.l.b16 %v1151
    %v1780 = vunpack.c.h.b16 %v1151
    %v1781 = vunpack.c.l.b16 %v1152
    %v1782 = vunpack.c.h.b16 %v1152
    %v1783 = vunpack.c.l.b16 %v1153
    %v1784 = vunpack.c.h.b16 %v1153
    %v1785 = vunpack.c.l.b16 %v1154
    %v1786 = vunpack.c.h.b16 %v1154
    %v1787 = vunpack.c.l.b16 %v1155
    %v1788 = vunpack.c.h.b16 %v1155
    %v1789 = vunpack.c.l.b16 %v1156
    %v1790 = vunpack.c.h.b16 %v1156
    %v1791 = vunpack.c.l.b16 %v1157
    %v1792 = vunpack.c.h.b16 %v1157
    %v1793 = vunpack.c.l.b16 %v1158
    %v1794 = vunpack.c.h.b16 %v1158
    %v1795 = vunpack.c.l.b16 %v1159
    %v1796 = vunpack.c.h.b16 %v1159
    %v1797 = vunpack.c.l.b16 %v1160
    %v1798 = vunpack.c.h.b16 %v1160
    %v1799 = vunpack.c.l.b16 %v1161
    %v1800 = vunpack.c.h.b16 %v1161
    %v1801 = vunpack.c.l.b16 %v1162
    %v1802 = vunpack.c.h.b16 %v1162
    %v1803 = vunpack.c.l.b16 %v1163
    %v1804 = vunpack.c.h.b16 %v1163
    %v1805 = vunpack.c.l.b16 %v1164
    %v1806 = vunpack.c.h.b16 %v1164
    %v1807 = vunpack.c.l.b16 %v1165
    %v1808 = vunpack.c.h.b16 %v1165
    %v1809 = vunpack.c.l.b16 %v1166
    %v1810 = vunpack.c.h.b16 %v1166
    %v1811 = vunpack.c.l.b16 %v1167
    %v1812 = vunpack.c.h.b16 %v1167
    %v1813 = vunpack.c.l.b16 %v1168
    %v1814 = vunpack.c.h.b16 %v1168
    %v1815 = vunpack.c.l.b16 %v1169
    %v1816 = vunpack.c.h.b16 %v1169
    %v1817 = vunpack.c.l.b16 %v1170
    %v1818 = vunpack.c.h.b16 %v1170
    %v1819 = vunpack.c.l.b16 %v1171
    %v1820 = vunpack.c.h.b16 %v1171
    %v1821 = vunpack.c.l.b16 %v1172
    %v1822 = vunpack.c.h.b16 %v1172
    %v1823 = vunpack.c.l.b16 %v1173
    %v1824 = vunpack.c.h.b16 %v1173
    %v1825 = vunpack.c.l.b16 %v1174
    %v1826 = vunpack.c.h.b16 %v1174
    %v1827 = vunpack.c.l.b16 %v1175
    %v1828 = vunpack.c.h.b16 %v1175
    %v1829 = vunpack.c.l.b16 %v1176
    %v1830 = vunpack.c.h.b16 %v1176
    %v1831 = vunpack.c.l.b16 %v1177
    %v1832 = vunpack.c.h.b16 %v1177
    %v1833 = vunpack.c.l.b16 %v1178
    %v1834 = vunpack.c.h.b16 %v1178
    %v1835 = vunpack.c.l.b16 %v1179
    %v1836 = vunpack.c.h.b16 %v1179
    %v1837 = vunpack.c.l.b16 %v1180
    %v1838 = vunpack.c.h.b16 %v1180
    %v1839 = vunpack.c.l.b16 %v1181
    %v1840 = vunpack.c.h.b16 %v1181
    %v1841 = vunpack.c.l.b16 %v1182
    %v1842 = vunpack.c.h.b16 %v1182
    %v1843 = vunpack.c.l.b16 %v1183
    %v1844 = vunpack.c.h.b16 %v1183
    %v1845 = vunpack.c.l.b16 %v1184
    %v1846 = vunpack.c.h.b16 %v1184
    %v1847 = vunpack.c.l.b16 %v1185
    %v1848 = vunpack.c.h.b16 %v1185
    %v1849 = vunpack.c.l.b16 %v1186
    %v1850 = vunpack.c.h.b16 %v1186
    %v1851 = vunpack.c.l.b16 %v1187
    %v1852 = vunpack.c.h.b16 %v1187
    %v1853 = vunpack.c.l.b16 %v1188
    %v1854 = vunpack.c.h.b16 %v1188
    %v1855 = vunpack.c.l.b16 %v1189
    %v1856 = vunpack.c.h.b16 %v1189
    %v1857 = vunpack.c.l.b16 %v1190
    %v1858 = vunpack.c.h.b16 %v1190
    %v1859 = vunpack.c.l.b16 %v1191
    %v1860 = vunpack.c.h.b16 %v1191
    %v1861 = vunpack.c.l.b16 %v1192
    %v1862 = vunpack.c.h.b16 %v1192
    %v1863 = vunpack.c.l.b16 %v1193
    %v1864 = vunpack.c.h.b16 %v1193
    %v1865 = vunpack.c.l.b16 %v1194
    %v1866 = vunpack.c.h.b16 %v1194
    %v1867 = vunpack.c.l.b16 %v1195
    %v1868 = vunpack.c.h.b16 %v1195
    %v1869 = vunpack.c.l.b16 %v1196
    %v1870 = vunpack.c.h.b16 %v1196
    %v1871 = vunpack.c.l.b16 %v1197
    %v1872 = vunpack.c.h.b16 %v1197
    %v1873 = vunpack.c.l.b16 %v1198
    %v1874 = vunpack.c.h.b16 %v1198
    %v1875 = vunpack.c.l.b16 %v1199
    %v1876 = vunpack.c.h.b16 %v1199
    %v1877 = vunpack.c.l.b16 %v1200
    %v1878 = vunpack.c.h.b16 %v1200
    %v1879 = vunpack.c.l.b16 %v1201
    %v1880 = vunpack.c.h.b16 %v1201
    %v1881 = vunpack.c.l.b16 %v1202
    %v1882 = vunpack.c.h.b16 %v1202
    %v1883 = vunpack.c.l.b16 %v1203
    %v1884 = vunpack.c.h.b16 %v1203
    %v1885 = vunpack.c.l.b16 %v1204
    %v1886 = vunpack.c.h.b16 %v1204
    %v1887 = vunpack.c.l.b16 %v1205
    %v1888 = vunpack.c.h.b16 %v1205
    %v1889 = vunpack.c.l.b16 %v1206
    %v1890 = vunpack.c.h.b16 %v1206
    %v1891 = vunpack.c.l.b16 %v1207
    %v1892 = vunpack.c.h.b16 %v1207
    %v1893 = vunpack.c.l.b16 %v1208
    %v1894 = vunpack.c.h.b16 %v1208
    %v1895 = vunpack.c.l.b16 %v1209
    %v1896 = vunpack.c.h.b16 %v1209
    %v1897 = vunpack.c.l.b16 %v1210
    %v1898 = vunpack.c.h.b16 %v1210
    %v1899 = vunpack.c.l.b16 %v1211
    %v1900 = vunpack.c.h.b16 %v1211
    %v1901 = vunpack.c.l.b16 %v1212
    %v1902 = vunpack.c.h.b16 %v1212
    %v1903 = vunpack.c.l.b16 %v1213
    %v1904 = vunpack.c.h.b16 %v1213
    %v1905 = vunpack.c.l.b16 %v1214
    %v1906 = vunpack.c.h.b16 %v1214
    %v1907 = vunpack.c.l.b16 %v1215
    %v1908 = vunpack.c.h.b16 %v1215
    %v1909 = vunpack.c.l.b16 %v1216
    %v1910 = vunpack.c.h.b16 %v1216
    %v1911 = vunpack.c.l.b16 %v1217
    %v1912 = vunpack.c.h.b16 %v1217
    %v1913 = vunpack.c.l.b16 %v1218
    %v1914 = vunpack.c.h.b16 %v1218
    %v1915 = vunpack.c.l.b16 %v1219
    %v1916 = vunpack.c.h.b16 %v1219
    %v1917 = vunpack.c.l.b16 %v1220
    %v1918 = vunpack.c.h.b16 %v1220
    %v1919 = vunpack.c.l.b16 %v1221
    %v1920 = vunpack.c.h.b16 %v1221
    %v1921 = vunpack.c.l.b16 %v1222
    %v1922 = vunpack.c.h.b16 %v1222
    %v1923 = vunpack.c.l.b16 %v1223
    %v1924 = vunpack.c.h.b16 %v1223
    %v1925 = vunpack.c.l.b16 %v1224
    %v1926 = vunpack.c.h.b16 %v1224
    %v1927 = vunpack.c.l.b16 %v1225
    %v1928 = vunpack.c.h.b16 %v1225
    %v1929 = vunpack.c.l.b16 %v1226
    %v1930 = vunpack.c.h.b16 %v1226
    %v1931 = vunpack.c.l.b16 %v1227
    %v1932 = vunpack.c.h.b16 %v1227
    %v1933 = vunpack.c.l.b16 %v1228
    %v1934 = vunpack.c.h.b16 %v1228
    %v1935 = vunpack.c.l.b16 %v1229
    %v1936 = vunpack.c.h.b16 %v1229
    %v1937 = vunpack.c.l.b16 %v1230
    %v1938 = vunpack.c.h.b16 %v1230
    %v1939 = vunpack.c.l.b16 %v1231
    %v1940 = vunpack.c.h.b16 %v1231
    %v1941 = vunpack.c.l.b16 %v1232
    %v1942 = vunpack.c.h.b16 %v1232
    %v1943 = vunpack.c.l.b16 %v1233
    %v1944 = vunpack.c.h.b16 %v1233
    %v1945 = vunpack.c.l.b16 %v1234
    %v1946 = vunpack.c.h.b16 %v1234
    %v1947 = vunpack.c.l.b16 %v1235
    %v1948 = vunpack.c.h.b16 %v1235
    %v1949 = vunpack.c.l.b16 %v1236
    %v1950 = vunpack.c.h.b16 %v1236
    %v1951 = vunpack.c.l.b16 %v1237
    %v1952 = vunpack.c.h.b16 %v1237
    %v1953 = vunpack.c.l.b16 %v1238
    %v1954 = vunpack.c.h.b16 %v1238
    %v1955 = vunpack.c.l.b16 %v1239
    %v1956 = vunpack.c.h.b16 %v1239
    %v1957 = vunpack.c.l.b16 %v1240
    %v1958 = vunpack.c.h.b16 %v1240
    %v1959 = vunpack.c.l.b16 %v1241
    %v1960 = vunpack.c.h.b16 %v1241
    %v1961 = vunpack.c.l.b16 %v1242
    %v1962 = vunpack.c.h.b16 %v1242
    %v1963 = vunpack.c.l.b16 %v1243
    %v1964 = vunpack.c.h.b16 %v1243
    %v1965 = vunpack.c.l.b16 %v1244
    %v1966 = vunpack.c.h.b16 %v1244
    %v1967 = vunpack.c.l.b16 %v1245
    %v1968 = vunpack.c.h.b16 %v1245
    %v1969 = vunpack.c.l.b16 %v1246
    %v1970 = vunpack.c.h.b16 %v1246
    %v1971 = vunpack.c.l.b16 %v1247
    %v1972 = vunpack.c.h.b16 %v1247
    %v1973 = vunpack.c.l.b16 %v1248
    %v1974 = vunpack.c.h.b16 %v1248
    %v1975 = vunpack.c.l.b16 %v1249
    %v1976 = vunpack.c.h.b16 %v1249
    %v1977 = vunpack.c.l.b16 %v1250
    %v1978 = vunpack.c.h.b16 %v1250
    %v1979 = vunpack.c.l.b16 %v1251
    %v1980 = vunpack.c.h.b16 %v1251
    %v1981 = vunpack.c.l.b16 %v1252
    %v1982 = vunpack.c.h.b16 %v1252
    %v1983 = vunpack.c.l.b16 %v1253
    %v1984 = vunpack.c.h.b16 %v1253
    %v1985 = vunpack.c.l.b16 %v1254
    %v1986 = vunpack.c.h.b16 %v1254
    %v1987 = vunpack.c.l.b16 %v1255
    %v1988 = vunpack.c.h.b16 %v1255
    %v1989 = vunpack.c.l.b16 %v1256
    %v1990 = vunpack.c.h.b16 %v1256
    %v1991 = vunpack.c.l.b16 %v1257
    %v1992 = vunpack.c.h.b16 %v1257
    %v1993 = vunpack.c.l.b16 %v1258
    %v1994 = vunpack.c.h.b16 %v1258
    %v1995 = vunpack.c.l.b16 %v1259
    %v1996 = vunpack.c.h.b16 %v1259
    %v1997 = vunpack.c.l.b16 %v1260
    %v1998 = vunpack.c.h.b16 %v1260
    %v1999 = vunpack.c.l.b16 %v1261
    %v2000 = vunpack.c.h.b16 %v1261
    %v2001 = vunpack.c.l.b16 %v1262
    %v2002 = vunpack.c.h.b16 %v1262
    %v2003 = vunpack.c.l.b16 %v1263
    %v2004 = vunpack.c.h.b16 %v1263
    %v2005 = vunpack.c.l.b16 %v1264
    %v2006 = vunpack.c.h.b16 %v1264
    %v2007 = vunpack.c.l.b16 %v1265
    %v2008 = vunpack.c.h.b16 %v1265
    %v2009 = vunpack.c.l.b16 %v1266
    %v2010 = vunpack.c.h.b16 %v1266
    %v2011 = vunpack.c.l.b16 %v1267
    %v2012 = vunpack.c.h.b16 %v1267
    %v2013 = vunpack.c.l.b16 %v1268
    %v2014 = vunpack.c.h.b16 %v1268
    %v2015 = vunpack.c.l.b16 %v1269
    %v2016 = vunpack.c.h.b16 %v1269
    %v2017 = vunpack.c.l.b16 %v1270
    %v2018 = vunpack.c.h.b16 %v1270
    %v2019 = vunpack.c.l.b16 %v1271
    %v2020 = vunpack.c.h.b16 %v1271
    %v2021 = vunpack.c.l.b16 %v1272
    %v2022 = vunpack.c.h.b16 %v1272
    %v2023 = vunpack.c.l.b16 %v1273
    %v2024 = vunpack.c.h.b16 %v1273
    %v2025 = vunpack.c.l.b16 %v1274
    %v2026 = vunpack.c.h.b16 %v1274
    %v2027 = vunpack.c.l.b16 %v1275
    %v2028 = vunpack.c.h.b16 %v1275
    %v2029 = vunpack.c.l.b16 %v1276
    %v2030 = vunpack.c.h.b16 %v1276
    %v2031 = vunpack.c.l.b16 %v1277
    %v2032 = vunpack.c.h.b16 %v1277
    %v2033 = vunpack.c.l.b16 %v1278
    %v2034 = vunpack.c.h.b16 %v1278
    %v2035 = vunpack.c.l.b16 %v1279
    %v2036 = vunpack.c.h.b16 %v1279
    %v2037 = vunpack.c.l.b16 %v1280
    %v2038 = vunpack.c.h.b16 %v1280
    %v2039 = vunpack.c.l.b16 %v1281
    %v2040 = vunpack.c.h.b16 %v1281
    %v2041 = vunpack.c.l.b16 %v1282
    %v2042 = vunpack.c.h.b16 %v1282
    %v2043 = vunpack.c.l.b16 %v1283
    %v2044 = vunpack.c.h.b16 %v1283
    %v2045 = vunpack.c.l.b16 %v1284
    %v2046 = vunpack.c.h.b16 %v1284
    %v2047 = vunpack.c.l.b16 %v1285
    %v2048 = vunpack.c.h.b16 %v1285
    %v2049 = vunpack.c.l.b16 %v1286
    %v2050 = vunpack.c.h.b16 %v1286
    %v2051 = vunpack.c.l.b16 %v1287
    %v2052 = vunpack.c.h.b16 %v1287
    %v2053 = vunpack.c.l.b16 %v1288
    %v2054 = vunpack.c.h.b16 %v1288
    %v2055 = vunpack.c.l.b16 %v1289
    %v2056 = vunpack.c.h.b16 %v1289
    %v2057 = vunpack.c.l.b16 %v1290
    %v2058 = vunpack.c.h.b16 %v1290
    %v2059 = vunpack.c.l.b16 %v1291
    %v2060 = vunpack.c.h.b16 %v1291
    %v2061 = vunpack.c.l.b16 %v1292
    %v2062 = vunpack.c.h.b16 %v1292
    %v2063 = vunpack.c.l.b16 %v1293
    %v2064 = vunpack.c.h.b16 %v1293
    %v2065 = vunpack.c.l.b16 %v1294
    %v2066 = vunpack.c.h.b16 %v1294
    %v2067 = vunpack.c.l.b16 %v1295
    %v2068 = vunpack.c.h.b16 %v1295
    %v2069 = vunpack.c.l.b16 %v1296
    %v2070 = vunpack.c.h.b16 %v1296
    %v2071 = vunpack.c.l.b16 %v1297
    %v2072 = vunpack.c.h.b16 %v1297
    %v2073 = vunpack.c.l.b16 %v1298
    %v2074 = vunpack.c.h.b16 %v1298
    %v2075 = vunpack.c.l.b16 %v1299
    %v2076 = vunpack.c.h.b16 %v1299
    %v2077 = vunpack.c.l.b16 %v1300
    %v2078 = vunpack.c.h.b16 %v1300
    %v2079 = vunpack.c.l.b16 %v1301
    %v2080 = vunpack.c.h.b16 %v1301
    %v2081 = vunpack.c.l.b16 %v1302
    %v2082 = vunpack.c.h.b16 %v1302
    %v2083 = vunpack.c.l.b16 %v1303
    %v2084 = vunpack.c.h.b16 %v1303
    %v2085 = vunpack.c.l.b16 %v1304
    %v2086 = vunpack.c.h.b16 %v1304
    %v2087 = vunpack.c.l.b16 %v1305
    %v2088 = vunpack.c.h.b16 %v1305
    %v2089 = vunpack.c.l.b16 %v1306
    %v2090 = vunpack.c.h.b16 %v1306
    %v2091 = vunpack.c.l.b16 %v1307
    %v2092 = vunpack.c.h.b16 %v1307
    %v2093 = vunpack.c.l.b16 %v1308
    %v2094 = vunpack.c.h.b16 %v1308
    %v2095 = vunpack.c.l.b16 %v1309
    %v2096 = vunpack.c.h.b16 %v1309
    %v2097 = vunpack.c.l.b16 %v1310
    %v2098 = vunpack.c.h.b16 %v1310
    %v2099 = vunpack.c.l.b16 %v1311
    %v2100 = vunpack.c.h.b16 %v1311
    %v2101 = vunpack.c.l.b16 %v1312
    %v2102 = vunpack.c.h.b16 %v1312
    %v2103 = vunpack.c.l.b16 %v1313
    %v2104 = vunpack.c.h.b16 %v1313
    %v2105 = vunpack.c.l.b16 %v1314
    %v2106 = vunpack.c.h.b16 %v1314
    %v2107 = vunpack.c.l.b16 %v1315
    %v2108 = vunpack.c.h.b16 %v1315
    %v2109 = vunpack.c.l.b16 %v1316
    %v2110 = vunpack.c.h.b16 %v1316
    %v2111 = vunpack.c.l.b16 %v1317
    %v2112 = vunpack.c.h.b16 %v1317
    %v2113 = vunpack.c.l.b16 %v1318
    %v2114 = vunpack.c.h.b16 %v1318
    %v2115 = vunpack.c.l.b16 %v1319
    %v2116 = vunpack.c.h.b16 %v1319
    %v2117 = vunpack.c.l.b16 %v1320
    %v2118 = vunpack.c.h.b16 %v1320
    %v2119 = vunpack.c.l.b16 %v1321
    %v2120 = vunpack.c.h.b16 %v1321
    %v2121 = vunpack.c.l.b16 %v1322
    %v2122 = vunpack.c.h.b16 %v1322
    %v2123 = vunpack.c.l.b16 %v1323
    %v2124 = vunpack.c.h.b16 %v1323
    %v2125 = vunpack.c.l.b16 %v1324
    %v2126 = vunpack.c.h.b16 %v1324
    %v2127 = vunpack.c.l.b16 %v1325
    %v2128 = vunpack.c.h.b16 %v1325
    %v2129 = vunpack.c.l.b16 %v1326
    %v2130 = vunpack.c.h.b16 %v1326
    %v2131 = vunpack.c.l.b16 %v1327
    %v2132 = vunpack.c.h.b16 %v1327
    %v2133 = vunpack.c.l.b16 %v1328
    %v2134 = vunpack.c.h.b16 %v1328
    %v2135 = vunpack.c.l.b16 %v1329
    %v2136 = vunpack.c.h.b16 %v1329
    %v2137 = vunpack.c.l.b16 %v1330
    %v2138 = vunpack.c.h.b16 %v1330
    %v2139 = vunpack.c.l.b16 %v1331
    %v2140 = vunpack.c.h.b16 %v1331
    %v2141 = vpack.c.b16 %v1637, %v1629
    %v2142 = vpack.c.b16 %v1638, %v1630
    %v2143 = vpack.c.b16 %v1639, %v1631
    %v2144 = vpack.c.b16 %v1640, %v1632
    %v2145 = vpack.c.b16 %v1641, %v1633
    %v2146 = vpack.c.b16 %v1642, %v1634
    %v2147 = vpack.c.b16 %v1643, %v1635
    %v2148 = vpack.c.b16 %v1644, %v1636
    %v2149 = vpack.c.b16 %v1653, %v1645
    %v2150 = vpack.c.b16 %v1654, %v1646
    %v2151 = vpack.c.b16 %v1655, %v1647
    %v2152 = vpack.c.b16 %v1656, %v1648
    %v2153 = vpack.c.b16 %v1657, %v1649
    %v2154 = vpack.c.b16 %v1658, %v1650
    %v2155 = vpack.c.b16 %v1659, %v1651
    %v2156 = vpack.c.b16 %v1660, %v1652
    %v2157 = vpack.c.b16 %v1669, %v1661
    %v2158 = vpack.c.b16 %v1670, %v1662
    %v2159 = vpack.c.b16 %v1671, %v1663
    %v2160 = vpack.c.b16 %v1672, %v1664
    %v2161 = vpack.c.b16 %v1673, %v1665
    %v2162 = vpack.c.b16 %v1674, %v1666
    %v2163 = vpack.c.b16 %v1675, %v1667
    %v2164 = vpack.c.b16 %v1676, %v1668
    %v2165 = vpack.c.b16 %v1685, %v1677
    %v2166 = vpack.c.b16 %v1686, %v1678
    %v2167 = vpack.c.b16 %v1687, %v1679
    %v2168 = vpack.c.b16 %v1688, %v1680
    %v2169 = vpack.c.b16 %v1689, %v1681
    %v2170 = vpack.c.b16 %v1690, %v1682
    %v2171 = vpack.c.b16 %v1691, %v1683
    %v2172 = vpack.c.b16 %v1692, %v1684
    %v2173 = vpack.c.b16 %v1701, %v1693
    %v2174 = vpack.c.b16 %v1702, %v1694
    %v2175 = vpack.c.b16 %v1703, %v1695
    %v2176 = vpack.c.b16 %v1704, %v1696
    %v2177 = vpack.c.b16 %v1705, %v1697
    %v2178 = vpack.c.b16 %v1706, %v1698
    %v2179 = vpack.c.b16 %v1707, %v1699
    %v2180 = vpack.c.b16 %v1708, %v1700
    %v2181 = vpack.c.b16 %v1717, %v1709
    %v2182 = vpack.c.b16 %v1718, %v1710
    %v2183 = vpack.c.b16 %v1719, %v1711
    %v2184 = vpack.c.b16 %v1720, %v1712
    %v2185 = vpack.c.b16 %v1721, %v1713
    %v2186 = vpack.c.b16 %v1722, %v1714
    %v2187 = vpack.c.b16 %v1723, %v1715
    %v2188 = vpack.c.b16 %v1724, %v1716
    %v2189 = vpack.c.b16 %v1733, %v1725
    %v2190 = vpack.c.b16 %v1734, %v1726
    %v2191 = vpack.c.b16 %v1735, %v1727
    %v2192 = vpack.c.b16 %v1736, %v1728
    %v2193 = vpack.c.b16 %v1737, %v1729
    %v2194 = vpack.c.b16 %v1738, %v1730
    %v2195 = vpack.c.b16 %v1739, %v1731
    %v2196 = vpack.c.b16 %v1740, %v1732
    %v2197 = vpack.c.b16 %v1749, %v1741
    %v2198 = vpack.c.b16 %v1750, %v1742
    %v2199 = vpack.c.b16 %v1751, %v1743
    %v2200 = vpack.c.b16 %v1752, %v1744
    %v2201 = vpack.c.b16 %v1753, %v1745
    %v2202 = vpack.c.b16 %v1754, %v1746
    %v2203 = vpack.c.b16 %v1755, %v1747
    %v2204 = vpack.c.b16 %v1756, %v1748
    %v2205 = vpack.c.b16 %v1765, %v1757
    %v2206 = vpack.c.b16 %v1766, %v1758
    %v2207 = vpack.c.b16 %v1767, %v1759
    %v2208 = vpack.c.b16 %v1768, %v1760
    %v2209 = vpack.c.b16 %v1769, %v1761
    %v2210 = vpack.c.b16 %v1770, %v1762
    %v2211 = vpack.c.b16 %v1771, %v1763
    %v2212 = vpack.c.b16 %v1772, %v1764
    %v2213 = vpack.c.b16 %v1781, %v1773
    %v2214 = vpack.c.b16 %v1782, %v1774
    %v2215 = vpack.c.b16 %v1783, %v1775
    %v2216 = vpack.c.b16 %v1784, %v1776
    %v2217 = vpack.c.b16 %v1785, %v1777
    %v2218 = vpack.c.b16 %v1786, %v1778
    %v2219 = vpack.c.b16 %v1787, %v1779
    %v2220 = vpack.c.b16 %v1788, %v1780
    %v2221 = vpack.c.b16 %v1797, %v1789
    %v2222 = vpack.c.b16 %v1798, %v1790
    %v2223 = vpack.c.b16 %v1799, %v1791
    %v2224 = vpack.c.b16 %v1800, %v1792
    %v2225 = vpack.c.b16 %v1801, %v1793
    %v2226 = vpack.c.b16 %v1802, %v1794
    %v2227 = vpack.c.b16 %v1803, %v1795
    %v2228 = vpack.c.b16 %v1804, %v1796
    %v2229 = vpack.c.b16 %v1813, %v1805
    %v2230 = vpack.c.b16 %v1814, %v1806
    %v2231 = vpack.c.b16 %v1815, %v1807
    %v2232 = vpack.c.b16 %v1816, %v1808
    %v2233 = vpack.c.b16 %v1817, %v1809
    %v2234 = vpack.c.b16 %v1818, %v1810
    %v2235 = vpack.c.b16 %v1819, %v1811
    %v2236 = vpack.c.b16 %v1820, %v1812
    %v2237 = vpack.c.b16 %v1829, %v1821
    %v2238 = vpack.c.b16 %v1830, %v1822
    %v2239 = vpack.c.b16 %v1831, %v1823
    %v2240 = vpack.c.b16 %v1832, %v1824
    %v2241 = vpack.c.b16 %v1833, %v1825
    %v2242 = vpack.c.b16 %v1834, %v1826
    %v2243 = vpack.c.b16 %v1835, %v1827
    %v2244 = vpack.c.b16 %v1836, %v1828
    %v2245 = vpack.c.b16 %v1845, %v1837
    %v2246 = vpack.c.b16 %v1846, %v1838
    %v2247 = vpack.c.b16 %v1847, %v1839
    %v2248 = vpack.c.b16 %v1848, %v1840
    %v2249 = vpack.c.b16 %v1849, %v1841
    %v2250 = vpack.c.b16 %v1850, %v1842
    %v2251 = vpack.c.b16 %v1851, %v1843
    %v2252 = vpack.c.b16 %v1852, %v1844
    %v2253 = vpack.c.b16 %v1861, %v1853
    %v2254 = vpack.c.b16 %v1862, %v1854
    %v2255 = vpack.c.b16 %v1863, %v1855
    %v2256 = vpack.c.b16 %v1864, %v1856
    %v2257 = vpack.c.b16 %v1865, %v1857
    %v2258 = vpack.c.b16 %v1866, %v1858
    %v2259 = vpack.c.b16 %v1867, %v1859
    %v2260 = vpack.c.b16 %v1868, %v1860
    %v2261 = vpack.c.b16 %v1877, %v1869
    %v2262 = vpack.c.b16 %v1878, %v1870
    %v2263 = vpack.c.b16 %v1879, %v1871
    %v2264 = vpack.c.b16 %v1880, %v1872
    %v2265 = vpack.c.b16 %v1881, %v1873
    %v2266 = vpack.c.b16 %v1882, %v1874
    %v2267 = vpack.c.b16 %v1883, %v1875
    %v2268 = vpack.c.b16 %v1884, %v1876
    %v2269 = vpack.c.b16 %v1893, %v1885
    %v2270 = vpack.c.b16 %v1894, %v1886
    %v2271 = vpack.c.b16 %v1895, %v1887
    %v2272 = vpack.c.b16 %v1896, %v1888
    %v2273 = vpack.c.b16 %v1897, %v1889
    %v2274 = vpack.c.b16 %v1898, %v1890
    %v2275 = vpack.c.b16 %v1899, %v1891
    %v2276 = vpack.c.b16 %v1900, %v1892
    %v2277 = vpack.c.b16 %v1909, %v1901
    %v2278 = vpack.c.b16 %v1910, %v1902
    %v2279 = vpack.c.b16 %v1911, %v1903
    %v2280 = vpack.c.b16 %v1912, %v1904
    %v2281 = vpack.c.b16 %v1913, %v1905
    %v2282 = vpack.c.b16 %v1914, %v1906
    %v2283 = vpack.c.b16 %v1915, %v1907
    %v2284 = vpack.c.b16 %v1916, %v1908
    %v2285 = vpack.c.b16 %v1925, %v1917
    %v2286 = vpack.c.b16 %v1926, %v1918
    %v2287 = vpack.c.b16 %v1927, %v1919
    %v2288 = vpack.c.b16 %v1928, %v1920
    %v2289 = vpack.c.b16 %v1929, %v1921
    %v2290 = vpack.c.b16 %v1930, %v1922
    %v2291 = vpack.c.b16 %v1931, %v1923
    %v2292 = vpack.c.b16 %v1932, %v1924
    %v2293 = vpack.c.b16 %v1941, %v1933
    %v2294 = vpack.c.b16 %v1942, %v1934
    %v2295 = vpack.c.b16 %v1943, %v1935
    %v2296 = vpack.c.b16 %v1944, %v1936
    %v2297 = vpack.c.b16 %v1945, %v1937
    %v2298 = vpack.c.b16 %v1946, %v1938
    %v2299 = vpack.c.b16 %v1947, %v1939
    %v2300 = vpack.c.b16 %v1948, %v1940
    %v2301 = vpack.c.b16 %v1957, %v1949
    %v2302 = vpack.c.b16 %v1958, %v1950
    %v2303 = vpack.c.b16 %v1959, %v1951
    %v2304 = vpack.c.b16 %v1960, %v1952
    %v2305 = vpack.c.b16 %v1961, %v1953
    %v2306 = vpack.c.b16 %v1962, %v1954
    %v2307 = vpack.c.b16 %v1963, %v1955
    %v2308 = vpack.c.b16 %v1964, %v1956
    %v2309 = vpack.c.b16 %v1973, %v1965
    %v2310 = vpack.c.b16 %v1974, %v1966
    %v2311 = vpack.c.b16 %v1975, %v1967
    %v2312 = vpack.c.b16 %v1976, %v1968
    %v2313 = vpack.c.b16 %v1977, %v1969
    %v2314 = vpack.c.b16 %v1978, %v1970
    %v2315 = vpack.c.b16 %v1979, %v1971
    %v2316 = vpack.c.b16 %v1980, %v1972
    %v2317 = vpack.c.b16 %v1989, %v1981
    %v2318 = vpack.c.b16 %v1990, %v1982
    %v2319 = vpack.c.b16 %v1991, %v1983
    %v2320 = vpack.c.b16 %v1992, %v1984
    %v2321 = vpack.c.b16 %v1993, %v1985
    %v2322 = vpack.c.b16 %v1994, %v1986
    %v2323 = vpack.c.b16 %v1995, %v1987
    %v2324 = vpack.c.b16 %v1996, %v1988
    %v2325 = vpack.c.b16 %v2005, %v1997
    %v2326 = vpack.c.b16 %v2006, %v1998
    %v2327 = vpack.c.b16 %v2007, %v1999
    %v2328 = vpack.c.b16 %v2008, %v2000
    %v2329 = vpack.c.b16 %v2009, %v2001
    %v2330 = vpack.c.b16 %v2010, %v2002
    %v2331 = vpack.c.b16 %v2011, %v2003
    %v2332 = vpack.c.b16 %v2012, %v2004
    %v2333 = vpack.c.b16 %v2021, %v2013
    %v2334 = vpack.c.b16 %v2022, %v2014
    %v2335 = vpack.c.b16 %v2023, %v2015
    %v2336 = vpack.c.b16 %v2024, %v2016
    %v2337 = vpack.c.b16 %v2025, %v2017
    %v2338 = vpack.c.b16 %v2026, %v2018
    %v2339 = vpack.c.b16 %v2027, %v2019
    %v2340 = vpack.c.b16 %v2028, %v2020
    %v2341 = vpack.c.b16 %v2037, %v2029
    %v2342 = vpack.c.b16 %v2038, %v2030
    %v2343 = vpack.c.b16 %v2039, %v2031
    %v2344 = vpack.c.b16 %v2040, %v2032
    %v2345 = vpack.c.b16 %v2041, %v2033
    %v2346 = vpack.c.b16 %v2042, %v2034
    %v2347 = vpack.c.b16 %v2043, %v2035
    %v2348 = vpack.c.b16 %v2044, %v2036
    %v2349 = vpack.c.b16 %v2053, %v2045
    %v2350 = vpack.c.b16 %v2054, %v2046
    %v2351 = vpack.c.b16 %v2055, %v2047
    %v2352 = vpack.c.b16 %v2056, %v2048
    %v2353 = vpack.c.b16 %v2057, %v2049
    %v2354 = vpack.c.b16 %v2058, %v2050
    %v2355 = vpack.c.b16 %v2059, %v2051
    %v2356 = vpack.c.b16 %v2060, %v2052
    %v2357 = vpack.c.b16 %v2069, %v2061
    %v2358 = vpack.c.b16 %v2070, %v2062
    %v2359 = vpack.c.b16 %v2071, %v2063
    %v2360 = vpack.c.b16 %v2072, %v2064
    %v2361 = vpack.c.b16 %v2073, %v2065
    %v2362 = vpack.c.b16 %v2074, %v2066
    %v2363 = vpack.c.b16 %v2075, %v2067
    %v2364 = vpack.c.b16 %v2076, %v2068
    %v2365 = vpack.c.b16 %v2085, %v2077
    %v2366 = vpack.c.b16 %v2086, %v2078
    %v2367 = vpack.c.b16 %v2087, %v2079
    %v2368 = vpack.c.b16 %v2088, %v2080
    %v2369 = vpack.c.b16 %v2089, %v2081
    %v2370 = vpack.c.b16 %v2090, %v2082
    %v2371 = vpack.c.b16 %v2091, %v2083
    %v2372 = vpack.c.b16 %v2092, %v2084
    %v2373 = vpack.c.b16 %v2101, %v2093
    %v2374 = vpack.c.b16 %v2102, %v2094
    %v2375 = vpack.c.b16 %v2103, %v2095
    %v2376 = vpack.c.b16 %v2104, %v2096
    %v2377 = vpack.c.b16 %v2105, %v2097
    %v2378 = vpack.c.b16 %v2106, %v2098
    %v2379 = vpack.c.b16 %v2107, %v2099
    %v2380 = vpack.c.b16 %v2108, %v2100
    %v2381 = vpack.c.b16 %v2117, %v2109
    %v2382 = vpack.c.b16 %v2118, %v2110
    %v2383 = vpack.c.b16 %v2119, %v2111
    %v2384 = vpack.c.b16 %v2120, %v2112
    %v2385 = vpack.c.b16 %v2121, %v2113
    %v2386 = vpack.c.b16 %v2122, %v2114
    %v2387 = vpack.c.b16 %v2123, %v2115
    %v2388 = vpack.c.b16 %v2124, %v2116
    %v2389 = vpack.c.b16 %v2133, %v2125
    %v2390 = vpack.c.b16 %v2134, %v2126
    %v2391 = vpack.c.b16 %v2135, %v2127
    %v2392 = vpack.c.b16 %v2136, %v2128
    %v2393 = vpack.c.b16 %v2137, %v2129
    %v2394 = vpack.c.b16 %v2138, %v2130
    %v2395 = vpack.c.b16 %v2139, %v2131
    %v2396 = vpack.c.b16 %v2140, %v2132
    %2653 = vmatprep.subr.bf16.mxu0 %v2142
    %2654 = vmatpush1.bf16.msra.mxu0 %v2141
    %2655 = vmatprep.subr.bf16.mxu0 %v2150
    %2656 = vmatpush1.bf16.msra.mxu0 %v2149
    %2657 = vmatprep.subr.bf16.mxu0 %v2158
    %2658 = vmatpush1.bf16.msra.mxu0 %v2157
    %2659 = vmatprep.subr.bf16.mxu0 %v2166
    %2660 = vmatpush1.bf16.msra.mxu0 %v2165
    %2661 = vmatprep.subr.bf16.mxu0 %v2174
    %2662 = vmatpush1.bf16.msra.mxu0 %v2173
    %2663 = vmatprep.subr.bf16.mxu0 %v2182
    %2664 = vmatpush1.bf16.msra.mxu0 %v2181
    %2665 = vmatprep.subr.bf16.mxu0 %v2190
    %2666 = vmatpush1.bf16.msra.mxu0 %v2189
    %2667 = vmatprep.subr.bf16.mxu0 %v2198
    %2668 = vmatpush1.bf16.msra.mxu0 %v2197
    %2669 = vmatprep.subr.bf16.mxu0 %v2206
    %2670 = vmatpush1.bf16.msra.mxu0 %v2205
    %2671 = vmatprep.subr.bf16.mxu0 %v2214
    %2672 = vmatpush1.bf16.msra.mxu0 %v2213
    %2673 = vmatprep.subr.bf16.mxu0 %v2222
    %2674 = vmatpush1.bf16.msra.mxu0 %v2221
    %2675 = vmatprep.subr.bf16.mxu0 %v2230
    %2676 = vmatpush1.bf16.msra.mxu0 %v2229
    %2677 = vmatprep.subr.bf16.mxu0 %v2238
    %2678 = vmatpush1.bf16.msra.mxu0 %v2237
    %2679 = vmatprep.subr.bf16.mxu0 %v2246
    %2680 = vmatpush1.bf16.msra.mxu0 %v2245
    %2681 = vmatprep.subr.bf16.mxu0 %v2254
    %2682 = vmatpush1.bf16.msra.mxu0 %v2253
    %2683 = vmatprep.subr.bf16.mxu0 %v2262
    %2684 = vmatpush1.bf16.msra.mxu0 %v2261
    %2685 = vmatprep.mubr.bf16.mxu0 %v1073
    %2686 = vmatmul.mubr.bf16.gmra.mrb[0].mxu0 %v1072
    %v2687 = vpop.f32.mrb[0].mxu0
    %v2688 = vadd.f32 %v1336, %v2687
    %v2689 = vpop.f32.mrb[0].mxu0
    %v2690 = vadd.f32 %v1340, %v2689
    %v2691 = vpop.f32.mrb[0].mxu0
    %v2692 = vpop.f32.mrb[0].mxu0
    %2693 = vdwg.mxu0
    %2694 = vmatprep.subr.bf16.mxu0 %v2270
    %2695 = vmatpush1.bf16.msra.mxu0 %v2269
    %2696 = vmatprep.subr.bf16.mxu0 %v2278
    %2697 = vmatpush1.bf16.msra.mxu0 %v2277
    %2698 = vmatprep.subr.bf16.mxu0 %v2286
    %2699 = vmatpush1.bf16.msra.mxu0 %v2285
    %2700 = vmatprep.subr.bf16.mxu0 %v2294
    %2701 = vmatpush1.bf16.msra.mxu0 %v2293
    %2702 = vmatprep.subr.bf16.mxu0 %v2302
    %2703 = vmatpush1.bf16.msra.mxu0 %v2301
    %2704 = vmatprep.subr.bf16.mxu0 %v2310
    %2705 = vmatpush1.bf16.msra.mxu0 %v2309
    %2706 = vmatprep.subr.bf16.mxu0 %v2318
    %2707 = vmatpush1.bf16.msra.mxu0 %v2317
    %2708 = vmatprep.subr.bf16.mxu0 %v2326
    %2709 = vmatpush1.bf16.msra.mxu0 %v2325
    %2710 = vmatprep.subr.bf16.mxu0 %v2334
    %2711 = vmatpush1.bf16.msra.mxu0 %v2333
    %2712 = vmatprep.subr.bf16.mxu0 %v2342
    %2713 = vmatpush1.bf16.msra.mxu0 %v2341
    %2714 = vmatprep.subr.bf16.mxu0 %v2350
    %2715 = vmatpush1.bf16.msra.mxu0 %v2349
    %2716 = vmatprep.subr.bf16.mxu0 %v2358
    %2717 = vmatpush1.bf16.msra.mxu0 %v2357
    %2718 = vmatprep.subr.bf16.mxu0 %v2366
    %2719 = vmatpush1.bf16.msra.mxu0 %v2365
    %2720 = vmatprep.subr.bf16.mxu0 %v2374
    %2721 = vmatpush1.bf16.msra.mxu0 %v2373
    %2722 = vmatprep.subr.bf16.mxu0 %v2382
    %2723 = vmatpush1.bf16.msra.mxu0 %v2381
    %2724 = vmatprep.subr.bf16.mxu0 %v2390
    %2725 = vmatpush1.bf16.msra.mxu0 %v2389
    %2726 = vmatprep.mubr.bf16.mxu0 %v1075
    %2727 = vmatmul.mubr.bf16.gmra.mrb[0].mxu0 %v1074
    %v2728 = vpop.f32.mrb[0].mxu0
    %v2729 = vadd.f32 %v2688, %v2728
    %v2730 = vpop.f32.mrb[0].mxu0
    %v2731 = vadd.f32 %v2690, %v2730
    %v2732 = vpop.f32.mrb[0].mxu0
    %v2733 = vpop.f32.mrb[0].mxu0
    %2734 = vdwg.mxu0
    %2735 = vmatprep.subr.bf16.mxu0 %v2144
    %2736 = vmatpush1.bf16.msra.mxu0 %v2143
    %2737 = vmatprep.subr.bf16.mxu0 %v2152
    %2738 = vmatpush1.bf16.msra.mxu0 %v2151
    %2739 = vmatprep.subr.bf16.mxu0 %v2160
    %2740 = vmatpush1.bf16.msra.mxu0 %v2159
    %2741 = vmatprep.subr.bf16.mxu0 %v2168
    %2742 = vmatpush1.bf16.msra.mxu0 %v2167
    %2743 = vmatprep.subr.bf16.mxu0 %v2176
    %2744 = vmatpush1.bf16.msra.mxu0 %v2175
    %2745 = vmatprep.subr.bf16.mxu0 %v2184
    %2746 = vmatpush1.bf16.msra.mxu0 %v2183
    %2747 = vmatprep.subr.bf16.mxu0 %v2192
    %2748 = vmatpush1.bf16.msra.mxu0 %v2191
    %2749 = vmatprep.subr.bf16.mxu0 %v2200
    %2750 = vmatpush1.bf16.msra.mxu0 %v2199
    %2751 = vmatprep.subr.bf16.mxu0 %v2208
    %2752 = vmatpush1.bf16.msra.mxu0 %v2207
    %2753 = vmatprep.subr.bf16.mxu0 %v2216
    %2754 = vmatpush1.bf16.msra.mxu0 %v2215
    %2755 = vmatprep.subr.bf16.mxu0 %v2224
    %2756 = vmatpush1.bf16.msra.mxu0 %v2223
    %2757 = vmatprep.subr.bf16.mxu0 %v2232
    %2758 = vmatpush1.bf16.msra.mxu0 %v2231
    %2759 = vmatprep.subr.bf16.mxu0 %v2240
    %2760 = vmatpush1.bf16.msra.mxu0 %v2239
    %2761 = vmatprep.subr.bf16.mxu0 %v2248
    %2762 = vmatpush1.bf16.msra.mxu0 %v2247
    %2763 = vmatprep.subr.bf16.mxu0 %v2256
    %2764 = vmatpush1.bf16.msra.mxu0 %v2255
    %2765 = vmatprep.subr.bf16.mxu0 %v2264
    %2766 = vmatpush1.bf16.msra.mxu0 %v2263
    %2767 = vmatprep.mubr.bf16.mxu0 %v1073
    %2768 = vmatmul.mubr.bf16.gmra.mrb[0].mxu0 %v1072
    %v2769 = vpop.f32.mrb[0].mxu0
    %v2770 = vadd.f32 %v1344, %v2769
    %v2771 = vpop.f32.mrb[0].mxu0
    %v2772 = vadd.f32 %v1348, %v2771
    %v2773 = vpop.f32.mrb[0].mxu0
    %v2774 = vpop.f32.mrb[0].mxu0
    %2775 = vdwg.mxu0
    %2776 = vmatprep.subr.bf16.mxu0 %v2272
    %2777 = vmatpush1.bf16.msra.mxu0 %v2271
    %2778 = vmatprep.subr.bf16.mxu0 %v2280
    %2779 = vmatpush1.bf16.msra.mxu0 %v2279
    %2780 = vmatprep.subr.bf16.mxu0 %v2288
    %2781 = vmatpush1.bf16.msra.mxu0 %v2287
    %2782 = vmatprep.subr.bf16.mxu0 %v2296
    %2783 = vmatpush1.bf16.msra.mxu0 %v2295
    %2784 = vmatprep.subr.bf16.mxu0 %v2304
    %2785 = vmatpush1.bf16.msra.mxu0 %v2303
    %2786 = vmatprep.subr.bf16.mxu0 %v2312
    %2787 = vmatpush1.bf16.msra.mxu0 %v2311
    %2788 = vmatprep.subr.bf16.mxu0 %v2320
    %2789 = vmatpush1.bf16.msra.mxu0 %v2319
    %2790 = vmatprep.subr.bf16.mxu0 %v2328
    %2791 = vmatpush1.bf16.msra.mxu0 %v2327
    %2792 = vmatprep.subr.bf16.mxu0 %v2336
    %2793 = vmatpush1.bf16.msra.mxu0 %v2335
    %2794 = vmatprep.subr.bf16.mxu0 %v2344
    %2795 = vmatpush1.bf16.msra.mxu0 %v2343
    %2796 = vmatprep.subr.bf16.mxu0 %v2352
    %2797 = vmatpush1.bf16.msra.mxu0 %v2351
    %2798 = vmatprep.subr.bf16.mxu0 %v2360
    %2799 = vmatpush1.bf16.msra.mxu0 %v2359
    %2800 = vmatprep.subr.bf16.mxu0 %v2368
    %2801 = vmatpush1.bf16.msra.mxu0 %v2367
    %2802 = vmatprep.subr.bf16.mxu0 %v2376
    %2803 = vmatpush1.bf16.msra.mxu0 %v2375
    %2804 = vmatprep.subr.bf16.mxu0 %v2384
    %2805 = vmatpush1.bf16.msra.mxu0 %v2383
    %2806 = vmatprep.subr.bf16.mxu0 %v2392
    %2807 = vmatpush1.bf16.msra.mxu0 %v2391
    %2808 = vmatprep.mubr.bf16.mxu0 %v1075
    %2809 = vmatmul.mubr.bf16.gmra.mrb[0].mxu0 %v1074
    %v2810 = vpop.f32.mrb[0].mxu0
    %v2811 = vadd.f32 %v2770, %v2810
    %v2812 = vpop.f32.mrb[0].mxu0
    %v2813 = vadd.f32 %v2772, %v2812
    %v2814 = vpop.f32.mrb[0].mxu0
    %v2815 = vpop.f32.mrb[0].mxu0
    %2816 = vdwg.mxu0
    %2817 = vmatprep.subr.bf16.mxu0 %v2146
    %2818 = vmatpush1.bf16.msra.mxu0 %v2145
    %2819 = vmatprep.subr.bf16.mxu0 %v2154
    %2820 = vmatpush1.bf16.msra.mxu0 %v2153
    %2821 = vmatprep.subr.bf16.mxu0 %v2162
    %2822 = vmatpush1.bf16.msra.mxu0 %v2161
    %2823 = vmatprep.subr.bf16.mxu0 %v2170
    %2824 = vmatpush1.bf16.msra.mxu0 %v2169
    %2825 = vmatprep.subr.bf16.mxu0 %v2178
    %2826 = vmatpush1.bf16.msra.mxu0 %v2177
    %2827 = vmatprep.subr.bf16.mxu0 %v2186
    %2828 = vmatpush1.bf16.msra.mxu0 %v2185
    %2829 = vmatprep.subr.bf16.mxu0 %v2194
    %2830 = vmatpush1.bf16.msra.mxu0 %v2193
    %2831 = vmatprep.subr.bf16.mxu0 %v2202
    %2832 = vmatpush1.bf16.msra.mxu0 %v2201
    %2833 = vmatprep.subr.bf16.mxu0 %v2210
    %2834 = vmatpush1.bf16.msra.mxu0 %v2209
    %2835 = vmatprep.subr.bf16.mxu0 %v2218
    %2836 = vmatpush1.bf16.msra.mxu0 %v2217
    %2837 = vmatprep.subr.bf16.mxu0 %v2226
    %2838 = vmatpush1.bf16.msra.mxu0 %v2225
    %2839 = vmatprep.subr.bf16.mxu0 %v2234
    %2840 = vmatpush1.bf16.msra.mxu0 %v2233
    %2841 = vmatprep.subr.bf16.mxu0 %v2242
    %2842 = vmatpush1.bf16.msra.mxu0 %v2241
    %2843 = vmatprep.subr.bf16.mxu0 %v2250
    %2844 = vmatpush1.bf16.msra.mxu0 %v2249
    %2845 = vmatprep.subr.bf16.mxu0 %v2258
    %2846 = vmatpush1.bf16.msra.mxu0 %v2257
    %2847 = vmatprep.subr.bf16.mxu0 %v2266
    %2848 = vmatpush1.bf16.msra.mxu0 %v2265
    %2849 = vmatprep.mubr.bf16.mxu0 %v1073
    %2850 = vmatmul.mubr.bf16.gmra.mrb[0].mxu0 %v1072
    %v2851 = vpop.f32.mrb[0].mxu0
    %v2852 = vadd.f32 %v1352, %v2851
    %v2853 = vpop.f32.mrb[0].mxu0
    %v2854 = vadd.f32 %v1356, %v2853
    %v2855 = vpop.f32.mrb[0].mxu0
    %v2856 = vpop.f32.mrb[0].mxu0
    %2857 = vdwg.mxu0
    %2858 = vmatprep.subr.bf16.mxu0 %v2274
    %2859 = vmatpush1.bf16.msra.mxu0 %v2273
    %2860 = vmatprep.subr.bf16.mxu0 %v2282
    %2861 = vmatpush1.bf16.msra.mxu0 %v2281
    %2862 = vmatprep.subr.bf16.mxu0 %v2290
    %2863 = vmatpush1.bf16.msra.mxu0 %v2289
    %2864 = vmatprep.subr.bf16.mxu0 %v2298
    %2865 = vmatpush1.bf16.msra.mxu0 %v2297
    %2866 = vmatprep.subr.bf16.mxu0 %v2306
    %2867 = vmatpush1.bf16.msra.mxu0 %v2305
    %2868 = vmatprep.subr.bf16.mxu0 %v2314
    %2869 = vmatpush1.bf16.msra.mxu0 %v2313
    %2870 = vmatprep.subr.bf16.mxu0 %v2322
    %2871 = vmatpush1.bf16.msra.mxu0 %v2321
    %2872 = vmatprep.subr.bf16.mxu0 %v2330
    %2873 = vmatpush1.bf16.msra.mxu0 %v2329
    %2874 = vmatprep.subr.bf16.mxu0 %v2338
    %2875 = vmatpush1.bf16.msra.mxu0 %v2337
    %2876 = vmatprep.subr.bf16.mxu0 %v2346
    %2877 = vmatpush1.bf16.msra.mxu0 %v2345
    %2878 = vmatprep.subr.bf16.mxu0 %v2354
    %2879 = vmatpush1.bf16.msra.mxu0 %v2353
    %2880 = vmatprep.subr.bf16.mxu0 %v2362
    %2881 = vmatpush1.bf16.msra.mxu0 %v2361
    %2882 = vmatprep.subr.bf16.mxu0 %v2370
    %2883 = vmatpush1.bf16.msra.mxu0 %v2369
    %2884 = vmatprep.subr.bf16.mxu0 %v2378
    %2885 = vmatpush1.bf16.msra.mxu0 %v2377
    %2886 = vmatprep.subr.bf16.mxu0 %v2386
    %2887 = vmatpush1.bf16.msra.mxu0 %v2385
    %2888 = vmatprep.subr.bf16.mxu0 %v2394
    %2889 = vmatpush1.bf16.msra.mxu0 %v2393
    %2890 = vmatprep.mubr.bf16.mxu0 %v1075
    %2891 = vmatmul.mubr.bf16.gmra.mrb[0].mxu0 %v1074
    %v2892 = vpop.f32.mrb[0].mxu0
    %v2893 = vadd.f32 %v2852, %v2892
    %v2894 = vpop.f32.mrb[0].mxu0
    %v2895 = vadd.f32 %v2854, %v2894
    %v2896 = vpop.f32.mrb[0].mxu0
    %v2897 = vpop.f32.mrb[0].mxu0
    %2898 = vdwg.mxu0
    %2899 = vmatprep.subr.bf16.mxu0 %v2148
    %2900 = vmatpush1.bf16.msra.mxu0 %v2147
    %2901 = vmatprep.subr.bf16.mxu0 %v2156
    %2902 = vmatpush1.bf16.msra.mxu0 %v2155
    %2903 = vmatprep.subr.bf16.mxu0 %v2164
    %2904 = vmatpush1.bf16.msra.mxu0 %v2163
    %2905 = vmatprep.subr.bf16.mxu0 %v2172
    %2906 = vmatpush1.bf16.msra.mxu0 %v2171
    %2907 = vmatprep.subr.bf16.mxu0 %v2180
    %2908 = vmatpush1.bf16.msra.mxu0 %v2179
    %2909 = vmatprep.subr.bf16.mxu0 %v2188
    %2910 = vmatpush1.bf16.msra.mxu0 %v2187
    %2911 = vmatprep.subr.bf16.mxu0 %v2196
    %2912 = vmatpush1.bf16.msra.mxu0 %v2195
    %2913 = vmatprep.subr.bf16.mxu0 %v2204
    %2914 = vmatpush1.bf16.msra.mxu0 %v2203
    %2915 = vmatprep.subr.bf16.mxu0 %v2212
    %2916 = vmatpush1.bf16.msra.mxu0 %v2211
    %2917 = vmatprep.subr.bf16.mxu0 %v2220
    %2918 = vmatpush1.bf16.msra.mxu0 %v2219
    %2919 = vmatprep.subr.bf16.mxu0 %v2228
    %2920 = vmatpush1.bf16.msra.mxu0 %v2227
    %2921 = vmatprep.subr.bf16.mxu0 %v2236
    %2922 = vmatpush1.bf16.msra.mxu0 %v2235
    %2923 = vmatprep.subr.bf16.mxu0 %v2244
    %2924 = vmatpush1.bf16.msra.mxu0 %v2243
    %2925 = vmatprep.subr.bf16.mxu0 %v2252
    %2926 = vmatpush1.bf16.msra.mxu0 %v2251
    %2927 = vmatprep.subr.bf16.mxu0 %v2260
    %2928 = vmatpush1.bf16.msra.mxu0 %v2259
    %2929 = vmatprep.subr.bf16.mxu0 %v2268
    %2930 = vmatpush1.bf16.msra.mxu0 %v2267
    %2931 = vmatprep.mubr.bf16.mxu0 %v1073
    %2932 = vmatmul.mubr.bf16.gmra.mrb[0].mxu0 %v1072
    %v2933 = vpop.f32.mrb[0].mxu0
    %v2934 = vadd.f32 %v1360, %v2933
    %v2935 = vpop.f32.mrb[0].mxu0
    %v2936 = vadd.f32 %v1364, %v2935
    %v2937 = vpop.f32.mrb[0].mxu0
    %v2938 = vpop.f32.mrb[0].mxu0
    %2939 = vdwg.mxu0
    %2940 = vmatprep.subr.bf16.mxu0 %v2276
    %2941 = vmatpush1.bf16.msra.mxu0 %v2275
    %2942 = vmatprep.subr.bf16.mxu0 %v2284
    %2943 = vmatpush1.bf16.msra.mxu0 %v2283
    %2944 = vmatprep.subr.bf16.mxu0 %v2292
    %2945 = vmatpush1.bf16.msra.mxu0 %v2291
    %2946 = vmatprep.subr.bf16.mxu0 %v2300
    %2947 = vmatpush1.bf16.msra.mxu0 %v2299
    %2948 = vmatprep.subr.bf16.mxu0 %v2308
    %2949 = vmatpush1.bf16.msra.mxu0 %v2307
    %2950 = vmatprep.subr.bf16.mxu0 %v2316
    %2951 = vmatpush1.bf16.msra.mxu0 %v2315
    %2952 = vmatprep.subr.bf16.mxu0 %v2324
    %2953 = vmatpush1.bf16.msra.mxu0 %v2323
    %2954 = vmatprep.subr.bf16.mxu0 %v2332
    %2955 = vmatpush1.bf16.msra.mxu0 %v2331
    %2956 = vmatprep.subr.bf16.mxu0 %v2340
    %2957 = vmatpush1.bf16.msra.mxu0 %v2339
    %2958 = vmatprep.subr.bf16.mxu0 %v2348
    %2959 = vmatpush1.bf16.msra.mxu0 %v2347
    %2960 = vmatprep.subr.bf16.mxu0 %v2356
    %2961 = vmatpush1.bf16.msra.mxu0 %v2355
    %2962 = vmatprep.subr.bf16.mxu0 %v2364
    %2963 = vmatpush1.bf16.msra.mxu0 %v2363
    %2964 = vmatprep.subr.bf16.mxu0 %v2372
    %2965 = vmatpush1.bf16.msra.mxu0 %v2371
    %2966 = vmatprep.subr.bf16.mxu0 %v2380
    %2967 = vmatpush1.bf16.msra.mxu0 %v2379
    %2968 = vmatprep.subr.bf16.mxu0 %v2388
    %2969 = vmatpush1.bf16.msra.mxu0 %v2387
    %2970 = vmatprep.subr.bf16.mxu0 %v2396
    %2971 = vmatpush1.bf16.msra.mxu0 %v2395
    %2972 = vmatprep.mubr.bf16.mxu0 %v1075
    %2973 = vmatmul.mubr.bf16.gmra.mrb[0].mxu0 %v1074
    %v2974 = vpop.f32.mrb[0].mxu0
    %v2975 = vadd.f32 %v2934, %v2974
    %v2976 = vpop.f32.mrb[0].mxu0
    %v2977 = vadd.f32 %v2936, %v2976
    %v2978 = vpop.f32.mrb[0].mxu0
    %v2979 = vpop.f32.mrb[0].mxu0
    %2980 = vdwg.mxu0
    %v2981 = vrot.slane %v2729, 4
    %v2982 = vadd.f32 %v2729, %v2981
    %v2983 = vrot.slane %v2982, 2
    %v2984 = vadd.f32 %v2982, %v2983
    %v2985 = vrot.slane %v2984, 1
    %v2986 = vadd.f32 %v2984, %v2985
    %v2987 = vrot.slane %v2731, 4
    %v2988 = vadd.f32 %v2731, %v2987
    %v2989 = vrot.slane %v2988, 2
    %v2990 = vadd.f32 %v2988, %v2989
    %v2991 = vrot.slane %v2990, 1
    %v2992 = vadd.f32 %v2990, %v2991
    %v2993 = vrot.slane %v2811, 4
    %v2994 = vadd.f32 %v2811, %v2993
    %v2995 = vrot.slane %v2994, 2
    %v2996 = vadd.f32 %v2994, %v2995
    %v2997 = vrot.slane %v2996, 1
    %v2998 = vadd.f32 %v2996, %v2997
    %v2999 = vrot.slane %v2813, 4
    %v3000 = vadd.f32 %v2813, %v2999
    %v3001 = vrot.slane %v3000, 2
    %v3002 = vadd.f32 %v3000, %v3001
    %v3003 = vrot.slane %v3002, 1
    %v3004 = vadd.f32 %v3002, %v3003
    %v3005 = vrot.slane %v2893, 4
    %v3006 = vadd.f32 %v2893, %v3005
    %v3007 = vrot.slane %v3006, 2
    %v3008 = vadd.f32 %v3006, %v3007
    %v3009 = vrot.slane %v3008, 1
    %v3010 = vadd.f32 %v3008, %v3009
    %v3011 = vrot.slane %v2895, 4
    %v3012 = vadd.f32 %v2895, %v3011
    %v3013 = vrot.slane %v3012, 2
    %v3014 = vadd.f32 %v3012, %v3013
    %v3015 = vrot.slane %v3014, 1
    %v3016 = vadd.f32 %v3014, %v3015
    %v3017 = vrot.slane %v2975, 4
    %v3018 = vadd.f32 %v2975, %v3017
    %v3019 = vrot.slane %v3018, 2
    %v3020 = vadd.f32 %v3018, %v3019
    %v3021 = vrot.slane %v3020, 1
    %v3022 = vadd.f32 %v3020, %v3021
    %v3023 = vrot.slane %v2977, 4
    %v3024 = vadd.f32 %v2977, %v3023
    %v3025 = vrot.slane %v3024, 2
    %v3026 = vadd.f32 %v3024, %v3025
    %v3027 = vrot.slane %v3026, 1
    %v3028 = vadd.f32 %v3026, %v3027
    %v3029 = vmul.f32 %v2986, %v100
    %v3030 = vmul.f32 %v2992, %v100
    %v3031 = vmul.f32 %v2998, %v100
    %v3032 = vmul.f32 %v3004, %v100
    %v3033 = vmul.f32 %v3010, %v100
    %v3034 = vmul.f32 %v3016, %v100
    %v3035 = vmul.f32 %v3022, %v100
    %v3036 = vmul.f32 %v3028, %v100
    %v3037 = vsub.f32 %v2729, %v3029
    %v3038 = vsub.f32 %v2731, %v3030
    %v3039 = vsub.f32 %v2811, %v3031
    %v3040 = vsub.f32 %v2813, %v3032
    %v3041 = vsub.f32 %v2893, %v3033
    %v3042 = vsub.f32 %v2895, %v3034
    %v3043 = vsub.f32 %v2975, %v3035
    %v3044 = vsub.f32 %v2977, %v3036
    %v3045 = vmul.f32 %v3037, %v3037
    %v3046 = vmul.f32 %v3038, %v3038
    %v3047 = vmul.f32 %v3039, %v3039
    %v3048 = vmul.f32 %v3040, %v3040
    %v3049 = vmul.f32 %v3041, %v3041
    %v3050 = vmul.f32 %v3042, %v3042
    %v3051 = vmul.f32 %v3043, %v3043
    %v3052 = vmul.f32 %v3044, %v3044
    %v3053 = vrot.slane %v3045, 4
    %v3054 = vadd.f32 %v3045, %v3053
    %v3055 = vrot.slane %v3054, 2
    %v3056 = vadd.f32 %v3054, %v3055
    %v3057 = vrot.slane %v3056, 1
    %v3058 = vadd.f32 %v3056, %v3057
    %v3059 = vrot.slane %v3046, 4
    %v3060 = vadd.f32 %v3046, %v3059
    %v3061 = vrot.slane %v3060, 2
    %v3062 = vadd.f32 %v3060, %v3061
    %v3063 = vrot.slane %v3062, 1
    %v3064 = vadd.f32 %v3062, %v3063
    %v3065 = vrot.slane %v3047, 4
    %v3066 = vadd.f32 %v3047, %v3065
    %v3067 = vrot.slane %v3066, 2
    %v3068 = vadd.f32 %v3066, %v3067
    %v3069 = vrot.slane %v3068, 1
    %v3070 = vadd.f32 %v3068, %v3069
    %v3071 = vrot.slane %v3048, 4
    %v3072 = vadd.f32 %v3048, %v3071
    %v3073 = vrot.slane %v3072, 2
    %v3074 = vadd.f32 %v3072, %v3073
    %v3075 = vrot.slane %v3074, 1
    %v3076 = vadd.f32 %v3074, %v3075
    %v3077 = vrot.slane %v3049, 4
    %v3078 = vadd.f32 %v3049, %v3077
    %v3079 = vrot.slane %v3078, 2
    %v3080 = vadd.f32 %v3078, %v3079
    %v3081 = vrot.slane %v3080, 1
    %v3082 = vadd.f32 %v3080, %v3081
    %v3083 = vrot.slane %v3050, 4
    %v3084 = vadd.f32 %v3050, %v3083
    %v3085 = vrot.slane %v3084, 2
    %v3086 = vadd.f32 %v3084, %v3085
    %v3087 = vrot.slane %v3086, 1
    %v3088 = vadd.f32 %v3086, %v3087
    %v3089 = vrot.slane %v3051, 4
    %v3090 = vadd.f32 %v3051, %v3089
    %v3091 = vrot.slane %v3090, 2
    %v3092 = vadd.f32 %v3090, %v3091
    %v3093 = vrot.slane %v3092, 1
    %v3094 = vadd.f32 %v3092, %v3093
    %v3095 = vrot.slane %v3052, 4
    %v3096 = vadd.f32 %v3052, %v3095
    %v3097 = vrot.slane %v3096, 2
    %v3098 = vadd.f32 %v3096, %v3097
    %v3099 = vrot.slane %v3098, 1
    %v3100 = vadd.f32 %v3098, %v3099
    %v3101 = vmul.f32 %v3058, %v100
    %v3102 = vmul.f32 %v3064, %v100
    %v3103 = vmul.f32 %v3070, %v100
    %v3104 = vmul.f32 %v3076, %v100
    %v3105 = vmul.f32 %v3082, %v100
    %v3106 = vmul.f32 %v3088, %v100
    %v3107 = vmul.f32 %v3094, %v100
    %v3108 = vmul.f32 %v3100, %v100
    %v3109 = vadd.f32 %v3101, 1e-05
    %v3110 = vadd.f32 %v3102, 1e-05
    %v3111 = vadd.f32 %v3103, 1e-05
    %v3112 = vadd.f32 %v3104, 1e-05
    %v3113 = vadd.f32 %v3105, 1e-05
    %v3114 = vadd.f32 %v3106, 1e-05
    %v3115 = vadd.f32 %v3107, 1e-05
    %v3116 = vadd.f32 %v3108, 1e-05
    %v3117 = vrsqrt.pop %v3109
    %v3118 = vrsqrt.pop %v3110
    %v3119 = vrsqrt.pop %v3111
    %v3120 = vrsqrt.pop %v3112
    %v3121 = vrsqrt.pop %v3113
    %v3122 = vrsqrt.pop %v3114
    %v3123 = vrsqrt.pop %v3115
    %v3124 = vrsqrt.pop %v3116
    %v3133 = vcombine.low %v3117, %v3118
    %v3134 = vcombine.low %v3119, %v3120
    %v3135 = vcombine.low %v3121, %v3122
    %v3136 = vcombine.low %v3123, %v3124
    %v3138 = vunpack.c.l.s4 1966171168
    %v3139 = vunpack.c.0.s8 %v3138
    %v3140 = vlaneseq
    %v3141 = vshrl.u32 %v3140, 7
    %v3142 = vsub.s32 %v3139, %v3141
    %v3143 = vrot.slane %v3133, %v3142
    %v3145 = vunpack.c.l.s4 1966171168
    %v3146 = vunpack.c.0.s8 %v3145
    %v3147 = vlaneseq
    %v3148 = vshrl.u32 %v3147, 7
    %v3149 = vsub.s32 %v3146, %v3148
    %v3150 = vrot.slane %v3134, %v3149
    %v3152 = vunpack.c.l.s4 1966171168
    %v3153 = vunpack.c.0.s8 %v3152
    %v3154 = vlaneseq
    %v3155 = vshrl.u32 %v3154, 7
    %v3156 = vsub.s32 %v3153, %v3155
    %v3157 = vrot.slane %v3135, %v3156
    %v3159 = vunpack.c.l.s4 1966171168
    %v3160 = vunpack.c.0.s8 %v3159
    %v3161 = vlaneseq
    %v3162 = vshrl.u32 %v3161, 7
    %v3163 = vsub.s32 %v3160, %v3162
    %v3164 = vrot.slane %v3136, %v3163
    %v3165 = vcombine.low %v3143, %v3150
    %v3166 = vcombine.low %v3157, %v3164
    %v3168 = vunpack.c.l.s4 1966171168
    %v3169 = vunpack.c.0.s8 %v3168
    %v3170 = vlaneseq
    %v3171 = vshrl.u32 %v3170, 7
    %v3172 = vsub.s32 %v3169, %v3171
    %v3173 = vrot.slane %v3165, %v3172
    %v3175 = vunpack.c.l.s4 1966171168
    %v3176 = vunpack.c.0.s8 %v3175
    %v3177 = vlaneseq
    %v3178 = vshrl.u32 %v3177, 7
    %v3179 = vsub.s32 %v3176, %v3178
    %v3180 = vrot.slane %v3166, %v3179
    %v3181 = vcombine.low %v3173, %v3180
    %v3183 = vmul.f32 %v1070, %v3181
    %v3185 = vlaneseq
    %v3186 = vshrl.u32 %v3185, 7
    %v3187 = vsub.s32 0, %v3186
    %v3188 = vrot.slane %v3183, %v3187
    %v3189 = vlaneseq
    %v3190 = vshrl.u32 %v3189, 7
    %v3191 = vsub.s32 1, %v3190
    %v3192 = vrot.slane %v3183, %v3191
    %v3193 = vlaneseq
    %v3194 = vshrl.u32 %v3193, 7
    %v3195 = vsub.s32 2, %v3194
    %v3196 = vrot.slane %v3183, %v3195
    %v3197 = vlaneseq
    %v3198 = vshrl.u32 %v3197, 7
    %v3199 = vsub.s32 3, %v3198
    %v3200 = vrot.slane %v3183, %v3199
    %v3201 = vlaneseq
    %v3202 = vshrl.u32 %v3201, 7
    %v3203 = vsub.s32 4, %v3202
    %v3204 = vrot.slane %v3183, %v3203
    %v3205 = vlaneseq
    %v3206 = vshrl.u32 %v3205, 7
    %v3207 = vsub.s32 5, %v3206
    %v3208 = vrot.slane %v3183, %v3207
    %v3209 = vlaneseq
    %v3210 = vshrl.u32 %v3209, 7
    %v3211 = vsub.s32 6, %v3210
    %v3212 = vrot.slane %v3183, %v3211
    %v3213 = vlaneseq
    %v3214 = vshrl.u32 %v3213, 7
    %v3215 = vsub.s32 7, %v3214
    %v3216 = vrot.slane %v3183, %v3215
    %v3225 = vmul.f32 %v3029, %v3188
    %v3226 = vmul.f32 %v3030, %v3192
    %v3227 = vmul.f32 %v3031, %v3196
    %v3228 = vmul.f32 %v3032, %v3200
    %v3229 = vmul.f32 %v3033, %v3204
    %v3230 = vmul.f32 %v3034, %v3208
    %v3231 = vmul.f32 %v3035, %v3212
    %v3232 = vmul.f32 %v3036, %v3216
    %v3241 = vcombine.low %v3225, %v3226
    %v3242 = vcombine.low %v3227, %v3228
    %v3243 = vcombine.low %v3229, %v3230
    %v3244 = vcombine.low %v3231, %v3232
    %v3246 = vunpack.c.l.s4 1966171168
    %v3247 = vunpack.c.0.s8 %v3246
    %v3248 = vlaneseq
    %v3249 = vshrl.u32 %v3248, 7
    %v3250 = vsub.s32 %v3247, %v3249
    %v3251 = vrot.slane %v3241, %v3250
    %v3253 = vunpack.c.l.s4 1966171168
    %v3254 = vunpack.c.0.s8 %v3253
    %v3255 = vlaneseq
    %v3256 = vshrl.u32 %v3255, 7
    %v3257 = vsub.s32 %v3254, %v3256
    %v3258 = vrot.slane %v3242, %v3257
    %v3260 = vunpack.c.l.s4 1966171168
    %v3261 = vunpack.c.0.s8 %v3260
    %v3262 = vlaneseq
    %v3263 = vshrl.u32 %v3262, 7
    %v3264 = vsub.s32 %v3261, %v3263
    %v3265 = vrot.slane %v3243, %v3264
    %v3267 = vunpack.c.l.s4 1966171168
    %v3268 = vunpack.c.0.s8 %v3267
    %v3269 = vlaneseq
    %v3270 = vshrl.u32 %v3269, 7
    %v3271 = vsub.s32 %v3268, %v3270
    %v3272 = vrot.slane %v3244, %v3271
    %v3273 = vcombine.low %v3251, %v3258
    %v3274 = vcombine.low %v3265, %v3272
    %v3276 = vunpack.c.l.s4 1966171168
    %v3277 = vunpack.c.0.s8 %v3276
    %v3278 = vlaneseq
    %v3279 = vshrl.u32 %v3278, 7
    %v3280 = vsub.s32 %v3277, %v3279
    %v3281 = vrot.slane %v3273, %v3280
    %v3283 = vunpack.c.l.s4 1966171168
    %v3284 = vunpack.c.0.s8 %v3283
    %v3285 = vlaneseq
    %v3286 = vshrl.u32 %v3285, 7
    %v3287 = vsub.s32 %v3284, %v3286
    %v3288 = vrot.slane %v3274, %v3287
    %v3289 = vcombine.low %v3281, %v3288
    %v3291 = vsub.f32 %v1071, %v3289
    %v3292 = vmul.f32 %v2729, %v3188
    %v3293 = vmul.f32 %v2731, %v3192
    %v3294 = vmul.f32 %v2811, %v3196
    %v3295 = vmul.f32 %v2813, %v3200
    %v3296 = vmul.f32 %v2893, %v3204
    %v3297 = vmul.f32 %v2895, %v3208
    %v3298 = vmul.f32 %v2975, %v3212
    %v3299 = vmul.f32 %v2977, %v3216
    %v3301 = vlaneseq
    %v3302 = vshrl.u32 %v3301, 7
    %v3303 = vsub.s32 0, %v3302
    %v3304 = vrot.slane %v3291, %v3303
    %v3305 = vlaneseq
    %v3306 = vshrl.u32 %v3305, 7
    %v3307 = vsub.s32 1, %v3306
    %v3308 = vrot.slane %v3291, %v3307
    %v3309 = vlaneseq
    %v3310 = vshrl.u32 %v3309, 7
    %v3311 = vsub.s32 2, %v3310
    %v3312 = vrot.slane %v3291, %v3311
    %v3313 = vlaneseq
    %v3314 = vshrl.u32 %v3313, 7
    %v3315 = vsub.s32 3, %v3314
    %v3316 = vrot.slane %v3291, %v3315
    %v3317 = vlaneseq
    %v3318 = vshrl.u32 %v3317, 7
    %v3319 = vsub.s32 4, %v3318
    %v3320 = vrot.slane %v3291, %v3319
    %v3321 = vlaneseq
    %v3322 = vshrl.u32 %v3321, 7
    %v3323 = vsub.s32 5, %v3322
    %v3324 = vrot.slane %v3291, %v3323
    %v3325 = vlaneseq
    %v3326 = vshrl.u32 %v3325, 7
    %v3327 = vsub.s32 6, %v3326
    %v3328 = vrot.slane %v3291, %v3327
    %v3329 = vlaneseq
    %v3330 = vshrl.u32 %v3329, 7
    %v3331 = vsub.s32 7, %v3330
    %v3332 = vrot.slane %v3291, %v3331
    %v3341 = vadd.f32 %v3292, %v3304
    %v3342 = vadd.f32 %v3293, %v3308
    %v3343 = vadd.f32 %v3294, %v3312
    %v3344 = vadd.f32 %v3295, %v3316
    %v3345 = vadd.f32 %v3296, %v3320
    %v3346 = vadd.f32 %v3297, %v3324
    %v3347 = vadd.f32 %v3298, %v3328
    %v3348 = vadd.f32 %v3299, %v3332
    %v3349 = vmax.f32 %v3341, 0.0
    %v3350 = vmax.f32 %v3342, 0.0
    %v3351 = vmax.f32 %v3343, 0.0
    %v3352 = vmax.f32 %v3344, 0.0
    %v3353 = vmax.f32 %v3345, 0.0
    %v3354 = vmax.f32 %v3346, 0.0
    %v3355 = vmax.f32 %v3347, 0.0
    %v3356 = vmax.f32 %v3348, 0.0
    %v3357 = vld [vmem:[%s6 + $0x2d] sm:$0x7f]
    %v3358 = vpack.c.bf16 %v3349, %v3349
    %v3359 = vpack.c.bf16 %v3350, %v3350
    %v3360 = vpack.c.bf16 %v3351, %v3351
    %v3361 = vpack.c.bf16 %v3352, %v3352
    %v3362 = vpack.c.bf16 %v3353, %v3353
    %v3363 = vpack.c.bf16 %v3354, %v3354
    %v3364 = vpack.c.bf16 %v3355, %v3355
    %v3365 = vpack.c.bf16 %v3356, %v3356
    %v3366 = vld [vmem:[%s5] sm:$0xff]
    %v3367 = vld [vmem:[%s5 + $0x8] sm:$0xff]
    %v3368 = vld [vmem:[%s5 + $0x10] sm:$0xff]
    %v3369 = vld [vmem:[%s5 + $0x18] sm:$0xf]
    %v3370 = vld [vmem:[%s5 + $0x1c] sm:$0xff]
    %v3371 = vld [vmem:[%s5 + $0x24] sm:$0xff]
    %v3372 = vld [vmem:[%s5 + $0x2c] sm:$0xff]
    %v3373 = vld [vmem:[%s5 + $0x34] sm:$0xf]
    %v3374 = vld [vmem:[%s5 + $0x38] sm:$0xff]
    %v3375 = vld [vmem:[%s5 + $0x40] sm:$0xff]
    %v3376 = vld [vmem:[%s5 + $0x48] sm:$0xff]
    %v3377 = vld [vmem:[%s5 + $0x50] sm:$0xf]
    %v3378 = vld [vmem:[%s5 + $0x54] sm:$0xff]
    %v3379 = vld [vmem:[%s5 + $0x5c] sm:$0xff]
    %v3380 = vld [vmem:[%s5 + $0x64] sm:$0xff]
    %v3381 = vld [vmem:[%s5 + $0x6c] sm:$0xf]
    %v3382 = vld [vmem:[%s5 + $0x70] sm:$0xff]
    %v3383 = vld [vmem:[%s5 + $0x78] sm:$0xff]
    %v3384 = vld [vmem:[%s5 + $0x80] sm:$0xff]
    %v3385 = vld [vmem:[%s5 + $0x88] sm:$0xf]
    %v3386 = vld [vmem:[%s5 + $0x8c] sm:$0xff]
    %v3387 = vld [vmem:[%s5 + $0x94] sm:$0xff]
    %v3388 = vld [vmem:[%s5 + $0x9c] sm:$0xff]
    %v3389 = vld [vmem:[%s5 + $0xa4] sm:$0xf]
    %v3390 = vld [vmem:[%s5 + $0xa8] sm:$0xff]
    %v3391 = vld [vmem:[%s5 + $0xb0] sm:$0xff]
    %v3392 = vld [vmem:[%s5 + $0xb8] sm:$0xff]
    %v3393 = vld [vmem:[%s5 + $0xc0] sm:$0xf]
    %v3394 = vld [vmem:[%s5 + $0xc4] sm:$0xff]
    %v3395 = vld [vmem:[%s5 + $0xcc] sm:$0xff]
    %v3396 = vld [vmem:[%s5 + $0xd4] sm:$0xff]
    %v3397 = vld [vmem:[%s5 + $0xdc] sm:$0xf]
    %v3398 = vld [vmem:[%s5 + $0xe0] sm:$0xff]
    %v3399 = vld [vmem:[%s5 + $0xe8] sm:$0xff]
    %v3400 = vld [vmem:[%s5 + $0xf0] sm:$0xff]
    %v3401 = vld [vmem:[%s5 + $0xf8] sm:$0xf]
    %v3402 = vld [vmem:[%s5 + $0xfc] sm:$0xff]
    %v3403 = vld [vmem:[%s5 + $0x104] sm:$0xff]
    %v3404 = vld [vmem:[%s5 + $0x10c] sm:$0xff]
    %v3405 = vld [vmem:[%s5 + $0x114] sm:$0xf]
    %v3406 = vld [vmem:[%s5 + $0x118] sm:$0xff]
    %v3407 = vld [vmem:[%s5 + $0x120] sm:$0xff]
    %v3408 = vld [vmem:[%s5 + $0x128] sm:$0xff]
    %v3409 = vld [vmem:[%s5 + $0x130] sm:$0xf]
    %v3410 = vld [vmem:[%s5 + $0x134] sm:$0xff]
    %v3411 = vld [vmem:[%s5 + $0x13c] sm:$0xff]
    %v3412 = vld [vmem:[%s5 + $0x144] sm:$0xff]
    %v3413 = vld [vmem:[%s5 + $0x14c] sm:$0xf]
    %v3414 = vld [vmem:[%s5 + $0x150] sm:$0xff]
    %v3415 = vld [vmem:[%s5 + $0x158] sm:$0xff]
    %v3416 = vld [vmem:[%s5 + $0x160] sm:$0xff]
    %v3417 = vld [vmem:[%s5 + $0x168] sm:$0xf]
    %v3418 = vld [vmem:[%s5 + $0x16c] sm:$0xff]
    %v3419 = vld [vmem:[%s5 + $0x174] sm:$0xff]
    %v3420 = vld [vmem:[%s5 + $0x17c] sm:$0xff]
    %v3421 = vld [vmem:[%s5 + $0x184] sm:$0xf]
    %v3422 = vld [vmem:[%s5 + $0x188] sm:$0xff]
    %v3423 = vld [vmem:[%s5 + $0x190] sm:$0xff]
    %v3424 = vld [vmem:[%s5 + $0x198] sm:$0xff]
    %v3425 = vld [vmem:[%s5 + $0x1a0] sm:$0xf]
    %v3426 = vld [vmem:[%s5 + $0x1a4] sm:$0xff]
    %v3427 = vld [vmem:[%s5 + $0x1ac] sm:$0xff]
    %v3428 = vld [vmem:[%s5 + $0x1b4] sm:$0xff]
    %v3429 = vld [vmem:[%s5 + $0x1bc] sm:$0xf]
    %v3430 = vld [vmem:[%s5 + $0x1c0] sm:$0xff]
    %v3431 = vld [vmem:[%s5 + $0x1c8] sm:$0xff]
    %v3432 = vld [vmem:[%s5 + $0x1d0] sm:$0xff]
    %v3433 = vld [vmem:[%s5 + $0x1d8] sm:$0xf]
    %v3434 = vld [vmem:[%s5 + $0x1dc] sm:$0xff]
    %v3435 = vld [vmem:[%s5 + $0x1e4] sm:$0xff]
    %v3436 = vld [vmem:[%s5 + $0x1ec] sm:$0xff]
    %v3437 = vld [vmem:[%s5 + $0x1f4] sm:$0xf]
    %v3438 = vld [vmem:[%s5 + $0x1f8] sm:$0xff]
    %v3439 = vld [vmem:[%s5 + $0x200] sm:$0xff]
    %v3440 = vld [vmem:[%s5 + $0x208] sm:$0xff]
    %v3441 = vld [vmem:[%s5 + $0x210] sm:$0xf]
    %v3442 = vld [vmem:[%s5 + $0x214] sm:$0xff]
    %v3443 = vld [vmem:[%s5 + $0x21c] sm:$0xff]
    %v3444 = vld [vmem:[%s5 + $0x224] sm:$0xff]
    %v3445 = vld [vmem:[%s5 + $0x22c] sm:$0xf]
    %v3446 = vld [vmem:[%s5 + $0x230] sm:$0xff]
    %v3447 = vld [vmem:[%s5 + $0x238] sm:$0xff]
    %v3448 = vld [vmem:[%s5 + $0x240] sm:$0xff]
    %v3449 = vld [vmem:[%s5 + $0x248] sm:$0xf]
    %v3450 = vld [vmem:[%s5 + $0x24c] sm:$0xff]
    %v3451 = vld [vmem:[%s5 + $0x254] sm:$0xff]
    %v3452 = vld [vmem:[%s5 + $0x25c] sm:$0xff]
    %v3453 = vld [vmem:[%s5 + $0x264] sm:$0xf]
    %v3454 = vld [vmem:[%s5 + $0x268] sm:$0xff]
    %v3455 = vld [vmem:[%s5 + $0x270] sm:$0xff]
    %v3456 = vld [vmem:[%s5 + $0x278] sm:$0xff]
    %v3457 = vld [vmem:[%s5 + $0x280] sm:$0xf]
    %v3458 = vld [vmem:[%s5 + $0x284] sm:$0xff]
    %v3459 = vld [vmem:[%s5 + $0x28c] sm:$0xff]
    %v3460 = vld [vmem:[%s5 + $0x294] sm:$0xff]
    %v3461 = vld [vmem:[%s5 + $0x29c] sm:$0xf]
    %v3462 = vld [vmem:[%s5 + $0x2a0] sm:$0xff]
    %v3463 = vld [vmem:[%s5 + $0x2a8] sm:$0xff]
    %v3464 = vld [vmem:[%s5 + $0x2b0] sm:$0xff]
    %v3465 = vld [vmem:[%s5 + $0x2b8] sm:$0xf]
    %v3466 = vld [vmem:[%s5 + $0x2bc] sm:$0xff]
    %v3467 = vld [vmem:[%s5 + $0x2c4] sm:$0xff]
    %v3468 = vld [vmem:[%s5 + $0x2cc] sm:$0xff]
    %v3469 = vld [vmem:[%s5 + $0x2d4] sm:$0xf]
    %v3470 = vld [vmem:[%s5 + $0x2d8] sm:$0xff]
    %v3471 = vld [vmem:[%s5 + $0x2e0] sm:$0xff]
    %v3472 = vld [vmem:[%s5 + $0x2e8] sm:$0xff]
    %v3473 = vld [vmem:[%s5 + $0x2f0] sm:$0xf]
    %v3474 = vld [vmem:[%s5 + $0x2f4] sm:$0xff]
    %v3475 = vld [vmem:[%s5 + $0x2fc] sm:$0xff]
    %v3476 = vld [vmem:[%s5 + $0x304] sm:$0xff]
    %v3477 = vld [vmem:[%s5 + $0x30c] sm:$0xf]
    %v3478 = vld [vmem:[%s5 + $0x310] sm:$0xff]
    %v3479 = vld [vmem:[%s5 + $0x318] sm:$0xff]
    %v3480 = vld [vmem:[%s5 + $0x320] sm:$0xff]
    %v3481 = vld [vmem:[%s5 + $0x328] sm:$0xf]
    %v3482 = vld [vmem:[%s5 + $0x32c] sm:$0xff]
    %v3483 = vld [vmem:[%s5 + $0x334] sm:$0xff]
    %v3484 = vld [vmem:[%s5 + $0x33c] sm:$0xff]
    %v3485 = vld [vmem:[%s5 + $0x344] sm:$0xf]
    %v3486 = vld [vmem:[%s5 + $0x348] sm:$0xff]
    %v3487 = vld [vmem:[%s5 + $0x350] sm:$0xff]
    %v3488 = vld [vmem:[%s5 + $0x358] sm:$0xff]
    %v3489 = vld [vmem:[%s5 + $0x360] sm:$0xf]
    %v3490 = vld [vmem:[%s5 + $0x364] sm:$0xff]
    %v3491 = vld [vmem:[%s5 + $0x36c] sm:$0xff]
    %v3492 = vld [vmem:[%s5 + $0x374] sm:$0xff]
    %v3493 = vld [vmem:[%s5 + $0x37c] sm:$0xf]
    %v3494 = vld [vmem:[%s5 + $0x380] sm:$0xff]
    %v3495 = vld [vmem:[%s5 + $0x388] sm:$0xff]
    %v3496 = vld [vmem:[%s5 + $0x390] sm:$0xff]
    %v3497 = vld [vmem:[%s5 + $0x398] sm:$0xf]
    %v3498 = vld [vmem:[%s5 + $0x39c] sm:$0xff]
    %v3499 = vld [vmem:[%s5 + $0x3a4] sm:$0xff]
    %v3500 = vld [vmem:[%s5 + $0x3ac] sm:$0xff]
    %v3501 = vld [vmem:[%s5 + $0x3b4] sm:$0xf]
    %v3502 = vld [vmem:[%s5 + $0x3b8] sm:$0xff]
    %v3503 = vld [vmem:[%s5 + $0x3c0] sm:$0xff]
    %v3504 = vld [vmem:[%s5 + $0x3c8] sm:$0xff]
    %v3505 = vld [vmem:[%s5 + $0x3d0] sm:$0xf]
    %v3506 = vld [vmem:[%s5 + $0x3d4] sm:$0xff]
    %v3507 = vld [vmem:[%s5 + $0x3dc] sm:$0xff]
    %v3508 = vld [vmem:[%s5 + $0x3e4] sm:$0xff]
    %v3509 = vld [vmem:[%s5 + $0x3ec] sm:$0xf]
    %v3510 = vld [vmem:[%s5 + $0x3f0] sm:$0xff]
    %v3511 = vld [vmem:[%s5 + $0x3f8] sm:$0xff]
    %v3512 = vld [vmem:[%s5 + $0x400] sm:$0xff]
    %v3513 = vld [vmem:[%s5 + $0x408] sm:$0xf]
    %v3514 = vld [vmem:[%s5 + $0x40c] sm:$0xff]
    %v3515 = vld [vmem:[%s5 + $0x414] sm:$0xff]
    %v3516 = vld [vmem:[%s5 + $0x41c] sm:$0xff]
    %v3517 = vld [vmem:[%s5 + $0x424] sm:$0xf]
    %v3518 = vld [vmem:[%s5 + $0x428] sm:$0xff]
    %v3519 = vld [vmem:[%s5 + $0x430] sm:$0xff]
    %v3520 = vld [vmem:[%s5 + $0x438] sm:$0xff]
    %v3521 = vld [vmem:[%s5 + $0x440] sm:$0xf]
    %v3522 = vld [vmem:[%s5 + $0x444] sm:$0xff]
    %v3523 = vld [vmem:[%s5 + $0x44c] sm:$0xff]
    %v3524 = vld [vmem:[%s5 + $0x454] sm:$0xff]
    %v3525 = vld [vmem:[%s5 + $0x45c] sm:$0xf]
    %v3526 = vld [vmem:[%s5 + $0x460] sm:$0xff]
    %v3527 = vld [vmem:[%s5 + $0x468] sm:$0xff]
    %v3528 = vld [vmem:[%s5 + $0x470] sm:$0xff]
    %v3529 = vld [vmem:[%s5 + $0x478] sm:$0xf]
    %v3530 = vld [vmem:[%s5 + $0x47c] sm:$0xff]
    %v3531 = vld [vmem:[%s5 + $0x484] sm:$0xff]
    %v3532 = vld [vmem:[%s5 + $0x48c] sm:$0xff]
    %v3533 = vld [vmem:[%s5 + $0x494] sm:$0xf]
    %v3534 = vld [vmem:[%s5 + $0x498] sm:$0xff]
    %v3535 = vld [vmem:[%s5 + $0x4a0] sm:$0xff]
    %v3536 = vld [vmem:[%s5 + $0x4a8] sm:$0xff]
    %v3537 = vld [vmem:[%s5 + $0x4b0] sm:$0xf]
    %v3538 = vld [vmem:[%s5 + $0x4b4] sm:$0xff]
    %v3539 = vld [vmem:[%s5 + $0x4bc] sm:$0xff]
    %v3540 = vld [vmem:[%s5 + $0x4c4] sm:$0xff]
    %v3541 = vld [vmem:[%s5 + $0x4cc] sm:$0xf]
    %v3542 = vld [vmem:[%s5 + $0x4d0] sm:$0xff]
    %v3543 = vld [vmem:[%s5 + $0x4d8] sm:$0xff]
    %v3544 = vld [vmem:[%s5 + $0x4e0] sm:$0xff]
    %v3545 = vld [vmem:[%s5 + $0x4e8] sm:$0xf]
    %v3546 = vld [vmem:[%s5 + $0x4ec] sm:$0xff]
    %v3547 = vld [vmem:[%s5 + $0x4f4] sm:$0xff]
    %v3548 = vld [vmem:[%s5 + $0x4fc] sm:$0xff]
    %v3549 = vld [vmem:[%s5 + $0x504] sm:$0xf]
    %v3550 = vld [vmem:[%s5 + $0x508] sm:$0xff]
    %v3551 = vld [vmem:[%s5 + $0x510] sm:$0xff]
    %v3552 = vld [vmem:[%s5 + $0x518] sm:$0xff]
    %v3553 = vld [vmem:[%s5 + $0x520] sm:$0xf]
    %v3554 = vld [vmem:[%s5 + $0x524] sm:$0xff]
    %v3555 = vld [vmem:[%s5 + $0x52c] sm:$0xff]
    %v3556 = vld [vmem:[%s5 + $0x534] sm:$0xff]
    %v3557 = vld [vmem:[%s5 + $0x53c] sm:$0xf]
    %v3558 = vld [vmem:[%s5 + $0x540] sm:$0xff]
    %v3559 = vld [vmem:[%s5 + $0x548] sm:$0xff]
    %v3560 = vld [vmem:[%s5 + $0x550] sm:$0xff]
    %v3561 = vld [vmem:[%s5 + $0x558] sm:$0xf]
    %v3562 = vld [vmem:[%s5 + $0x55c] sm:$0xff]
    %v3563 = vld [vmem:[%s5 + $0x564] sm:$0xff]
    %v3564 = vld [vmem:[%s5 + $0x56c] sm:$0xff]
    %v3565 = vld [vmem:[%s5 + $0x574] sm:$0xf]
    %v3566 = vld [vmem:[%s5 + $0x578] sm:$0xff]
    %v3567 = vld [vmem:[%s5 + $0x580] sm:$0xff]
    %v3568 = vld [vmem:[%s5 + $0x588] sm:$0xff]
    %v3569 = vld [vmem:[%s5 + $0x590] sm:$0xf]
    %v3570 = vld [vmem:[%s5 + $0x594] sm:$0xff]
    %v3571 = vld [vmem:[%s5 + $0x59c] sm:$0xff]
    %v3572 = vld [vmem:[%s5 + $0x5a4] sm:$0xff]
    %v3573 = vld [vmem:[%s5 + $0x5ac] sm:$0xf]
    %v3574 = vld [vmem:[%s5 + $0x5b0] sm:$0xff]
    %v3575 = vld [vmem:[%s5 + $0x5b8] sm:$0xff]
    %v3576 = vld [vmem:[%s5 + $0x5c0] sm:$0xff]
    %v3577 = vld [vmem:[%s5 + $0x5c8] sm:$0xf]
    %v3578 = vld [vmem:[%s5 + $0x5cc] sm:$0xff]
    %v3579 = vld [vmem:[%s5 + $0x5d4] sm:$0xff]
    %v3580 = vld [vmem:[%s5 + $0x5dc] sm:$0xff]
    %v3581 = vld [vmem:[%s5 + $0x5e4] sm:$0xf]
    %v3582 = vld [vmem:[%s5 + $0x5e8] sm:$0xff]
    %v3583 = vld [vmem:[%s5 + $0x5f0] sm:$0xff]
    %v3584 = vld [vmem:[%s5 + $0x5f8] sm:$0xff]
    %v3585 = vld [vmem:[%s5 + $0x600] sm:$0xf]
    %v3586 = vld [vmem:[%s5 + $0x604] sm:$0xff]
    %v3587 = vld [vmem:[%s5 + $0x60c] sm:$0xff]
    %v3588 = vld [vmem:[%s5 + $0x614] sm:$0xff]
    %v3589 = vld [vmem:[%s5 + $0x61c] sm:$0xf]
    %v3590 = vld [vmem:[%s5 + $0x620] sm:$0xff]
    %v3591 = vld [vmem:[%s5 + $0x628] sm:$0xff]
    %v3592 = vld [vmem:[%s5 + $0x630] sm:$0xff]
    %v3593 = vld [vmem:[%s5 + $0x638] sm:$0xf]
    %v3594 = vld [vmem:[%s5 + $0x63c] sm:$0xff]
    %v3595 = vld [vmem:[%s5 + $0x644] sm:$0xff]
    %v3596 = vld [vmem:[%s5 + $0x64c] sm:$0xff]
    %v3597 = vld [vmem:[%s5 + $0x654] sm:$0xf]
    %v3598 = vld [vmem:[%s5 + $0x658] sm:$0xff]
    %v3599 = vld [vmem:[%s5 + $0x660] sm:$0xff]
    %v3600 = vld [vmem:[%s5 + $0x668] sm:$0xff]
    %v3601 = vld [vmem:[%s5 + $0x670] sm:$0xf]
    %v3602 = vld [vmem:[%s5 + $0x674] sm:$0xff]
    %v3603 = vld [vmem:[%s5 + $0x67c] sm:$0xff]
    %v3604 = vld [vmem:[%s5 + $0x684] sm:$0xff]
    %v3605 = vld [vmem:[%s5 + $0x68c] sm:$0xf]
    %v3606 = vld [vmem:[%s5 + $0x690] sm:$0xff]
    %v3607 = vld [vmem:[%s5 + $0x698] sm:$0xff]
    %v3608 = vld [vmem:[%s5 + $0x6a0] sm:$0xff]
    %v3609 = vld [vmem:[%s5 + $0x6a8] sm:$0xf]
    %v3610 = vld [vmem:[%s5 + $0x6ac] sm:$0xff]
    %v3611 = vld [vmem:[%s5 + $0x6b4] sm:$0xff]
    %v3612 = vld [vmem:[%s5 + $0x6bc] sm:$0xff]
    %v3613 = vld [vmem:[%s5 + $0x6c4] sm:$0xf]
    %v3614 = vld [vmem:[%s5 + $0x6c8] sm:$0xff]
    %v3615 = vld [vmem:[%s5 + $0x6d0] sm:$0xff]
    %v3616 = vld [vmem:[%s5 + $0x6d8] sm:$0xff]
    %v3617 = vld [vmem:[%s5 + $0x6e0] sm:$0xf]
    %v3618 = vld [vmem:[%s5 + $0x6e4] sm:$0xff]
    %v3619 = vld [vmem:[%s5 + $0x6ec] sm:$0xff]
    %v3620 = vld [vmem:[%s5 + $0x6f4] sm:$0xff]
    %v3621 = vld [vmem:[%s5 + $0x6fc] sm:$0xf]
    %v3622 = vld [vmem:[%s5 + $0x700] sm:$0xff]
    %v3623 = vld [vmem:[%s5 + $0x708] sm:$0xff]
    %v3624 = vld [vmem:[%s5 + $0x710] sm:$0xff]
    %v3625 = vld [vmem:[%s5 + $0x718] sm:$0xf]
    %v3626 = vld [vmem:[%s5 + $0x71c] sm:$0xff]
    %v3627 = vld [vmem:[%s5 + $0x724] sm:$0xff]
    %v3628 = vld [vmem:[%s5 + $0x72c] sm:$0xff]
    %v3629 = vld [vmem:[%s5 + $0x734] sm:$0xf]
    %v3630 = vld [vmem:[%s5 + $0x738] sm:$0xff]
    %v3631 = vld [vmem:[%s5 + $0x740] sm:$0xff]
    %v3632 = vld [vmem:[%s5 + $0x748] sm:$0xff]
    %v3633 = vld [vmem:[%s5 + $0x750] sm:$0xf]
    %v3634 = vld [vmem:[%s5 + $0x754] sm:$0xff]
    %v3635 = vld [vmem:[%s5 + $0x75c] sm:$0xff]
    %v3636 = vld [vmem:[%s5 + $0x764] sm:$0xff]
    %v3637 = vld [vmem:[%s5 + $0x76c] sm:$0xf]
    %v3638 = vld [vmem:[%s5 + $0x770] sm:$0xff]
    %v3639 = vld [vmem:[%s5 + $0x778] sm:$0xff]
    %v3640 = vld [vmem:[%s5 + $0x780] sm:$0xff]
    %v3641 = vld [vmem:[%s5 + $0x788] sm:$0xf]
    %v3642 = vld [vmem:[%s5 + $0x78c] sm:$0xff]
    %v3643 = vld [vmem:[%s5 + $0x794] sm:$0xff]
    %v3644 = vld [vmem:[%s5 + $0x79c] sm:$0xff]
    %v3645 = vld [vmem:[%s5 + $0x7a4] sm:$0xf]
    %v3646 = vld [vmem:[%s5 + $0x7a8] sm:$0xff]
    %v3647 = vld [vmem:[%s5 + $0x7b0] sm:$0xff]
    %v3648 = vld [vmem:[%s5 + $0x7b8] sm:$0xff]
    %v3649 = vld [vmem:[%s5 + $0x7c0] sm:$0xf]
    %v3650 = vld [vmem:[%s5 + $0x7c4] sm:$0xff]
    %v3651 = vld [vmem:[%s5 + $0x7cc] sm:$0xff]
    %v3652 = vld [vmem:[%s5 + $0x7d4] sm:$0xff]
    %v3653 = vld [vmem:[%s5 + $0x7dc] sm:$0xf]
    %v3654 = vld [vmem:[%s5 + $0x7e0] sm:$0xff]
    %v3655 = vld [vmem:[%s5 + $0x7e8] sm:$0xff]
    %v3656 = vld [vmem:[%s5 + $0x7f0] sm:$0xff]
    %v3657 = vld [vmem:[%s5 + $0x7f8] sm:$0xf]
    %v3658 = vld [vmem:[%s5 + $0x7fc] sm:$0xff]
    %v3659 = vld [vmem:[%s5 + $0x804] sm:$0xff]
    %v3660 = vld [vmem:[%s5 + $0x80c] sm:$0xff]
    %v3661 = vld [vmem:[%s5 + $0x814] sm:$0xf]
    %v3662 = vld [vmem:[%s5 + $0x818] sm:$0xff]
    %v3663 = vld [vmem:[%s5 + $0x820] sm:$0xff]
    %v3664 = vld [vmem:[%s5 + $0x828] sm:$0xff]
    %v3665 = vld [vmem:[%s5 + $0x830] sm:$0xf]
    %v3666 = vld [vmem:[%s5 + $0x834] sm:$0xff]
    %v3667 = vld [vmem:[%s5 + $0x83c] sm:$0xff]
    %v3668 = vld [vmem:[%s5 + $0x844] sm:$0xff]
    %v3669 = vld [vmem:[%s5 + $0x84c] sm:$0xf]
    %v3670 = vld [vmem:[%s5 + $0x850] sm:$0xff]
    %v3671 = vld [vmem:[%s5 + $0x858] sm:$0xff]
    %v3672 = vld [vmem:[%s5 + $0x860] sm:$0xff]
    %v3673 = vld [vmem:[%s5 + $0x868] sm:$0xf]
    %v3674 = vld [vmem:[%s5 + $0x86c] sm:$0xff]
    %v3675 = vld [vmem:[%s5 + $0x874] sm:$0xff]
    %v3676 = vld [vmem:[%s5 + $0x87c] sm:$0xff]
    %v3677 = vld [vmem:[%s5 + $0x884] sm:$0xf]
    %v3678 = vld [vmem:[%s5 + $0x888] sm:$0xff]
    %v3679 = vld [vmem:[%s5 + $0x890] sm:$0xff]
    %v3680 = vld [vmem:[%s5 + $0x898] sm:$0xff]
    %v3681 = vld [vmem:[%s5 + $0x8a0] sm:$0xf]
    %v3682 = vld [vmem:[%s5 + $0x8a4] sm:$0xff]
    %v3683 = vld [vmem:[%s5 + $0x8ac] sm:$0xff]
    %v3684 = vld [vmem:[%s5 + $0x8b4] sm:$0xff]
    %v3685 = vld [vmem:[%s5 + $0x8bc] sm:$0xf]
    %v3686 = vld [vmem:[%s5 + $0x8c0] sm:$0xff]
    %v3687 = vld [vmem:[%s5 + $0x8c8] sm:$0xff]
    %v3688 = vld [vmem:[%s5 + $0x8d0] sm:$0xff]
    %v3689 = vld [vmem:[%s5 + $0x8d8] sm:$0xf]
    %v3690 = vld [vmem:[%s5 + $0x8dc] sm:$0xff]
    %v3691 = vld [vmem:[%s5 + $0x8e4] sm:$0xff]
    %v3692 = vld [vmem:[%s5 + $0x8ec] sm:$0xff]
    %v3693 = vld [vmem:[%s5 + $0x8f4] sm:$0xf]
    %v3694 = vld [vmem:[%s5 + $0x8f8] sm:$0xff]
    %v3695 = vld [vmem:[%s5 + $0x900] sm:$0xff]
    %v3696 = vld [vmem:[%s5 + $0x908] sm:$0xff]
    %v3697 = vld [vmem:[%s5 + $0x910] sm:$0xf]
    %v3698 = vld [vmem:[%s5 + $0x914] sm:$0xff]
    %v3699 = vld [vmem:[%s5 + $0x91c] sm:$0xff]
    %v3700 = vld [vmem:[%s5 + $0x924] sm:$0xff]
    %v3701 = vld [vmem:[%s5 + $0x92c] sm:$0xf]
    %v3702 = vld [vmem:[%s5 + $0x930] sm:$0xff]
    %v3703 = vld [vmem:[%s5 + $0x938] sm:$0xff]
    %v3704 = vld [vmem:[%s5 + $0x940] sm:$0xff]
    %v3705 = vld [vmem:[%s5 + $0x948] sm:$0xf]
    %v3706 = vld [vmem:[%s5 + $0x94c] sm:$0xff]
    %v3707 = vld [vmem:[%s5 + $0x954] sm:$0xff]
    %v3708 = vld [vmem:[%s5 + $0x95c] sm:$0xff]
    %v3709 = vld [vmem:[%s5 + $0x964] sm:$0xf]
    %v3710 = vld [vmem:[%s5 + $0x968] sm:$0xff]
    %v3711 = vld [vmem:[%s5 + $0x970] sm:$0xff]
    %v3712 = vld [vmem:[%s5 + $0x978] sm:$0xff]
    %v3713 = vld [vmem:[%s5 + $0x980] sm:$0xf]
    %v3714 = vld [vmem:[%s5 + $0x984] sm:$0xff]
    %v3715 = vld [vmem:[%s5 + $0x98c] sm:$0xff]
    %v3716 = vld [vmem:[%s5 + $0x994] sm:$0xff]
    %v3717 = vld [vmem:[%s5 + $0x99c] sm:$0xf]
    %v3718 = vld [vmem:[%s5 + $0x9a0] sm:$0xff]
    %v3719 = vld [vmem:[%s5 + $0x9a8] sm:$0xff]
    %v3720 = vld [vmem:[%s5 + $0x9b0] sm:$0xff]
    %v3721 = vld [vmem:[%s5 + $0x9b8] sm:$0xf]
    %v3722 = vld [vmem:[%s5 + $0x9bc] sm:$0xff]
    %v3723 = vld [vmem:[%s5 + $0x9c4] sm:$0xff]
    %v3724 = vld [vmem:[%s5 + $0x9cc] sm:$0xff]
    %v3725 = vld [vmem:[%s5 + $0x9d4] sm:$0xf]
    %v3726 = vld [vmem:[%s5 + $0x9d8] sm:$0xff]
    %v3727 = vld [vmem:[%s5 + $0x9e0] sm:$0xff]
    %v3728 = vld [vmem:[%s5 + $0x9e8] sm:$0xff]
    %v3729 = vld [vmem:[%s5 + $0x9f0] sm:$0xf]
    %v3730 = vld [vmem:[%s5 + $0x9f4] sm:$0xff]
    %v3731 = vld [vmem:[%s5 + $0x9fc] sm:$0xff]
    %v3732 = vld [vmem:[%s5 + $0xa04] sm:$0xff]
    %v3733 = vld [vmem:[%s5 + $0xa0c] sm:$0xf]
    %v3734 = vld [vmem:[%s5 + $0xa10] sm:$0xff]
    %v3735 = vld [vmem:[%s5 + $0xa18] sm:$0xff]
    %v3736 = vld [vmem:[%s5 + $0xa20] sm:$0xff]
    %v3737 = vld [vmem:[%s5 + $0xa28] sm:$0xf]
    %v3738 = vld [vmem:[%s5 + $0xa2c] sm:$0xff]
    %v3739 = vld [vmem:[%s5 + $0xa34] sm:$0xff]
    %v3740 = vld [vmem:[%s5 + $0xa3c] sm:$0xff]
    %v3741 = vld [vmem:[%s5 + $0xa44] sm:$0xf]
    %v3742 = vld [vmem:[%s5 + $0xa48] sm:$0xff]
    %v3743 = vld [vmem:[%s5 + $0xa50] sm:$0xff]
    %v3744 = vld [vmem:[%s5 + $0xa58] sm:$0xff]
    %v3745 = vld [vmem:[%s5 + $0xa60] sm:$0xf]
    %v3746 = vld [vmem:[%s5 + $0xa64] sm:$0xff]
    %v3747 = vld [vmem:[%s5 + $0xa6c] sm:$0xff]
    %v3748 = vld [vmem:[%s5 + $0xa74] sm:$0xff]
    %v3749 = vld [vmem:[%s5 + $0xa7c] sm:$0xf]
    %v3750 = vld [vmem:[%s5 + $0xa80] sm:$0xff]
    %v3751 = vld [vmem:[%s5 + $0xa88] sm:$0xff]
    %v3752 = vld [vmem:[%s5 + $0xa90] sm:$0xff]
    %v3753 = vld [vmem:[%s5 + $0xa98] sm:$0xf]
    %v3754 = vld [vmem:[%s5 + $0xa9c] sm:$0xff]
    %v3755 = vld [vmem:[%s5 + $0xaa4] sm:$0xff]
    %v3756 = vld [vmem:[%s5 + $0xaac] sm:$0xff]
    %v3757 = vld [vmem:[%s5 + $0xab4] sm:$0xf]
    %v3758 = vld [vmem:[%s5 + $0xab8] sm:$0xff]
    %v3759 = vld [vmem:[%s5 + $0xac0] sm:$0xff]
    %v3760 = vld [vmem:[%s5 + $0xac8] sm:$0xff]
    %v3761 = vld [vmem:[%s5 + $0xad0] sm:$0xf]
    %v3762 = vld [vmem:[%s5 + $0xad4] sm:$0xff]
    %v3763 = vld [vmem:[%s5 + $0xadc] sm:$0xff]
    %v3764 = vld [vmem:[%s5 + $0xae4] sm:$0xff]
    %v3765 = vld [vmem:[%s5 + $0xaec] sm:$0xf]
    %v3766 = vld [vmem:[%s5 + $0xaf0] sm:$0xff]
    %v3767 = vld [vmem:[%s5 + $0xaf8] sm:$0xff]
    %v3768 = vld [vmem:[%s5 + $0xb00] sm:$0xff]
    %v3769 = vld [vmem:[%s5 + $0xb08] sm:$0xf]
    %v3770 = vld [vmem:[%s5 + $0xb0c] sm:$0xff]
    %v3771 = vld [vmem:[%s5 + $0xb14] sm:$0xff]
    %v3772 = vld [vmem:[%s5 + $0xb1c] sm:$0xff]
    %v3773 = vld [vmem:[%s5 + $0xb24] sm:$0xf]
    %v3774 = vld [vmem:[%s5 + $0xb28] sm:$0xff]
    %v3775 = vld [vmem:[%s5 + $0xb30] sm:$0xff]
    %v3776 = vld [vmem:[%s5 + $0xb38] sm:$0xff]
    %v3777 = vld [vmem:[%s5 + $0xb40] sm:$0xf]
    %v3778 = vld [vmem:[%s5 + $0xb44] sm:$0xff]
    %v3779 = vld [vmem:[%s5 + $0xb4c] sm:$0xff]
    %v3780 = vld [vmem:[%s5 + $0xb54] sm:$0xff]
    %v3781 = vld [vmem:[%s5 + $0xb5c] sm:$0xf]
    %v3782 = vld [vmem:[%s5 + $0xb60] sm:$0xff]
    %v3783 = vld [vmem:[%s5 + $0xb68] sm:$0xff]
    %v3784 = vld [vmem:[%s5 + $0xb70] sm:$0xff]
    %v3785 = vld [vmem:[%s5 + $0xb78] sm:$0xf]
    %v3786 = vld [vmem:[%s5 + $0xb7c] sm:$0xff]
    %v3787 = vld [vmem:[%s5 + $0xb84] sm:$0xff]
    %v3788 = vld [vmem:[%s5 + $0xb8c] sm:$0xff]
    %v3789 = vld [vmem:[%s5 + $0xb94] sm:$0xf]
    %v3790 = vld [vmem:[%s5 + $0xb98] sm:$0xff]
    %v3791 = vld [vmem:[%s5 + $0xba0] sm:$0xff]
    %v3792 = vld [vmem:[%s5 + $0xba8] sm:$0xff]
    %v3793 = vld [vmem:[%s5 + $0xbb0] sm:$0xf]
    %v3794 = vld [vmem:[%s5 + $0xbb4] sm:$0xff]
    %v3795 = vld [vmem:[%s5 + $0xbbc] sm:$0xff]
    %v3796 = vld [vmem:[%s5 + $0xbc4] sm:$0xff]
    %v3797 = vld [vmem:[%s5 + $0xbcc] sm:$0xf]
    %v3798 = vld [vmem:[%s5 + $0xbd0] sm:$0xff]
    %v3799 = vld [vmem:[%s5 + $0xbd8] sm:$0xff]
    %v3800 = vld [vmem:[%s5 + $0xbe0] sm:$0xff]
    %v3801 = vld [vmem:[%s5 + $0xbe8] sm:$0xf]
    %v3802 = vld [vmem:[%s5 + $0xbec] sm:$0xff]
    %v3803 = vld [vmem:[%s5 + $0xbf4] sm:$0xff]
    %v3804 = vld [vmem:[%s5 + $0xbfc] sm:$0xff]
    %v3805 = vld [vmem:[%s5 + $0xc04] sm:$0xf]
    %v3806 = vld [vmem:[%s5 + $0xc08] sm:$0xff]
    %v3807 = vld [vmem:[%s5 + $0xc10] sm:$0xff]
    %v3808 = vld [vmem:[%s5 + $0xc18] sm:$0xff]
    %v3809 = vld [vmem:[%s5 + $0xc20] sm:$0xf]
    %v3810 = vld [vmem:[%s5 + $0xc24] sm:$0xff]
    %v3811 = vld [vmem:[%s5 + $0xc2c] sm:$0xff]
    %v3812 = vld [vmem:[%s5 + $0xc34] sm:$0xff]
    %v3813 = vld [vmem:[%s5 + $0xc3c] sm:$0xf]
    %v3814 = vld [vmem:[%s5 + $0xc40] sm:$0xff]
    %v3815 = vld [vmem:[%s5 + $0xc48] sm:$0xff]
    %v3816 = vld [vmem:[%s5 + $0xc50] sm:$0xff]
    %v3817 = vld [vmem:[%s5 + $0xc58] sm:$0xf]
    %v3818 = vld [vmem:[%s5 + $0xc5c] sm:$0xff]
    %v3819 = vld [vmem:[%s5 + $0xc64] sm:$0xff]
    %v3820 = vld [vmem:[%s5 + $0xc6c] sm:$0xff]
    %v3821 = vld [vmem:[%s5 + $0xc74] sm:$0xf]
    %v3822 = vld [vmem:[%s5 + $0xc78] sm:$0xff]
    %v3823 = vld [vmem:[%s5 + $0xc80] sm:$0xff]
    %v3824 = vld [vmem:[%s5 + $0xc88] sm:$0xff]
    %v3825 = vld [vmem:[%s5 + $0xc90] sm:$0xf]
    %v3826 = vld [vmem:[%s5 + $0xc94] sm:$0xff]
    %v3827 = vld [vmem:[%s5 + $0xc9c] sm:$0xff]
    %v3828 = vld [vmem:[%s5 + $0xca4] sm:$0xff]
    %v3829 = vld [vmem:[%s5 + $0xcac] sm:$0xf]
    %v3830 = vld [vmem:[%s5 + $0xcb0] sm:$0xff]
    %v3831 = vld [vmem:[%s5 + $0xcb8] sm:$0xff]
    %v3832 = vld [vmem:[%s5 + $0xcc0] sm:$0xff]
    %v3833 = vld [vmem:[%s5 + $0xcc8] sm:$0xf]
    %v3834 = vld [vmem:[%s5 + $0xccc] sm:$0xff]
    %v3835 = vld [vmem:[%s5 + $0xcd4] sm:$0xff]
    %v3836 = vld [vmem:[%s5 + $0xcdc] sm:$0xff]
    %v3837 = vld [vmem:[%s5 + $0xce4] sm:$0xf]
    %v3838 = vld [vmem:[%s5 + $0xce8] sm:$0xff]
    %v3839 = vld [vmem:[%s5 + $0xcf0] sm:$0xff]
    %v3840 = vld [vmem:[%s5 + $0xcf8] sm:$0xff]
    %v3841 = vld [vmem:[%s5 + $0xd00] sm:$0xf]
    %v3842 = vld [vmem:[%s5 + $0xd04] sm:$0xff]
    %v3843 = vld [vmem:[%s5 + $0xd0c] sm:$0xff]
    %v3844 = vld [vmem:[%s5 + $0xd14] sm:$0xff]
    %v3845 = vld [vmem:[%s5 + $0xd1c] sm:$0xf]
    %v3846 = vld [vmem:[%s5 + $0xd20] sm:$0xff]
    %v3847 = vld [vmem:[%s5 + $0xd28] sm:$0xff]
    %v3848 = vld [vmem:[%s5 + $0xd30] sm:$0xff]
    %v3849 = vld [vmem:[%s5 + $0xd38] sm:$0xf]
    %v3850 = vld [vmem:[%s5 + $0xd3c] sm:$0xff]
    %v3851 = vld [vmem:[%s5 + $0xd44] sm:$0xff]
    %v3852 = vld [vmem:[%s5 + $0xd4c] sm:$0xff]
    %v3853 = vld [vmem:[%s5 + $0xd54] sm:$0xf]
    %v3854 = vld [vmem:[%s5 + $0xd58] sm:$0xff]
    %v3855 = vld [vmem:[%s5 + $0xd60] sm:$0xff]
    %v3856 = vld [vmem:[%s5 + $0xd68] sm:$0xff]
    %v3857 = vld [vmem:[%s5 + $0xd70] sm:$0xf]
    %v3858 = vld [vmem:[%s5 + $0xd74] sm:$0xff]
    %v3859 = vld [vmem:[%s5 + $0xd7c] sm:$0xff]
    %v3860 = vld [vmem:[%s5 + $0xd84] sm:$0xff]
    %v3861 = vld [vmem:[%s5 + $0xd8c] sm:$0xf]
    %v3862 = vld [vmem:[%s5 + $0xd90] sm:$0xff]
    %v3863 = vld [vmem:[%s5 + $0xd98] sm:$0xff]
    %v3864 = vld [vmem:[%s5 + $0xda0] sm:$0xff]
    %v3865 = vld [vmem:[%s5 + $0xda8] sm:$0xf]
    %v3866 = vld [vmem:[%s5 + $0xdac] sm:$0xff]
    %v3867 = vld [vmem:[%s5 + $0xdb4] sm:$0xff]
    %v3868 = vld [vmem:[%s5 + $0xdbc] sm:$0xff]
    %v3869 = vld [vmem:[%s5 + $0xdc4] sm:$0xf]
    %v3870 = vld [vmem:[%s5 + $0xdc8] sm:$0xff]
    %v3871 = vld [vmem:[%s5 + $0xdd0] sm:$0xff]
    %v3872 = vld [vmem:[%s5 + $0xdd8] sm:$0xff]
    %v3873 = vld [vmem:[%s5 + $0xde0] sm:$0xf]
    %v3874 = vld [vmem:[%s5 + $0xde4] sm:$0xff]
    %v3875 = vld [vmem:[%s5 + $0xdec] sm:$0xff]
    %v3876 = vld [vmem:[%s5 + $0xdf4] sm:$0xff]
    %v3877 = vld [vmem:[%s5 + $0xdfc] sm:$0xf]
    %v3879 = vlaneseq
    %v3880 = vshrl.u32 %v3879, 7
    %v3881 = vsub.s32 0, %v3880
    %v3882 = vrot.slane %v3357, %v3881
    %v3883 = vlaneseq
    %v3884 = vshrl.u32 %v3883, 7
    %v3885 = vsub.s32 1, %v3884
    %v3886 = vrot.slane %v3357, %v3885
    %v3887 = vlaneseq
    %v3888 = vshrl.u32 %v3887, 7
    %v3889 = vsub.s32 2, %v3888
    %v3890 = vrot.slane %v3357, %v3889
    %v3891 = vlaneseq
    %v3892 = vshrl.u32 %v3891, 7
    %v3893 = vsub.s32 3, %v3892
    %v3894 = vrot.slane %v3357, %v3893
    %v3895 = vlaneseq
    %v3896 = vshrl.u32 %v3895, 7
    %v3897 = vsub.s32 4, %v3896
    %v3898 = vrot.slane %v3357, %v3897
    %v3899 = vlaneseq
    %v3900 = vshrl.u32 %v3899, 7
    %v3901 = vsub.s32 5, %v3900
    %v3902 = vrot.slane %v3357, %v3901
    %v3903 = vlaneseq
    %v3904 = vshrl.u32 %v3903, 7
    %v3905 = vsub.s32 6, %v3904
    %v3906 = vrot.slane %v3357, %v3905
    %v4426 = vunpack.c.l.b16 %v3366
    %v4427 = vunpack.c.h.b16 %v3366
    %v4428 = vunpack.c.l.b16 %v3367
    %v4429 = vunpack.c.h.b16 %v3367
    %v4430 = vunpack.c.l.b16 %v3368
    %v4431 = vunpack.c.h.b16 %v3368
    %v4432 = vunpack.c.l.b16 %v3369
    %v4433 = vunpack.c.l.b16 %v3370
    %v4434 = vunpack.c.h.b16 %v3370
    %v4435 = vunpack.c.l.b16 %v3371
    %v4436 = vunpack.c.h.b16 %v3371
    %v4437 = vunpack.c.l.b16 %v3372
    %v4438 = vunpack.c.h.b16 %v3372
    %v4439 = vunpack.c.l.b16 %v3373
    %v4440 = vunpack.c.l.b16 %v3374
    %v4441 = vunpack.c.h.b16 %v3374
    %v4442 = vunpack.c.l.b16 %v3375
    %v4443 = vunpack.c.h.b16 %v3375
    %v4444 = vunpack.c.l.b16 %v3376
    %v4445 = vunpack.c.h.b16 %v3376
    %v4446 = vunpack.c.l.b16 %v3377
    %v4447 = vunpack.c.l.b16 %v3378
    %v4448 = vunpack.c.h.b16 %v3378
    %v4449 = vunpack.c.l.b16 %v3379
    %v4450 = vunpack.c.h.b16 %v3379
    %v4451 = vunpack.c.l.b16 %v3380
    %v4452 = vunpack.c.h.b16 %v3380
    %v4453 = vunpack.c.l.b16 %v3381
    %v4454 = vunpack.c.l.b16 %v3382
    %v4455 = vunpack.c.h.b16 %v3382
    %v4456 = vunpack.c.l.b16 %v3383
    %v4457 = vunpack.c.h.b16 %v3383
    %v4458 = vunpack.c.l.b16 %v3384
    %v4459 = vunpack.c.h.b16 %v3384
    %v4460 = vunpack.c.l.b16 %v3385
    %v4461 = vunpack.c.l.b16 %v3386
    %v4462 = vunpack.c.h.b16 %v3386
    %v4463 = vunpack.c.l.b16 %v3387
    %v4464 = vunpack.c.h.b16 %v3387
    %v4465 = vunpack.c.l.b16 %v3388
    %v4466 = vunpack.c.h.b16 %v3388
    %v4467 = vunpack.c.l.b16 %v3389
    %v4468 = vunpack.c.l.b16 %v3390
    %v4469 = vunpack.c.h.b16 %v3390
    %v4470 = vunpack.c.l.b16 %v3391
    %v4471 = vunpack.c.h.b16 %v3391
    %v4472 = vunpack.c.l.b16 %v3392
    %v4473 = vunpack.c.h.b16 %v3392
    %v4474 = vunpack.c.l.b16 %v3393
    %v4475 = vunpack.c.l.b16 %v3394
    %v4476 = vunpack.c.h.b16 %v3394
    %v4477 = vunpack.c.l.b16 %v3395
    %v4478 = vunpack.c.h.b16 %v3395
    %v4479 = vunpack.c.l.b16 %v3396
    %v4480 = vunpack.c.h.b16 %v3396
    %v4481 = vunpack.c.l.b16 %v3397
    %v4482 = vunpack.c.l.b16 %v3398
    %v4483 = vunpack.c.h.b16 %v3398
    %v4484 = vunpack.c.l.b16 %v3399
    %v4485 = vunpack.c.h.b16 %v3399
    %v4486 = vunpack.c.l.b16 %v3400
    %v4487 = vunpack.c.h.b16 %v3400
    %v4488 = vunpack.c.l.b16 %v3401
    %v4489 = vunpack.c.l.b16 %v3402
    %v4490 = vunpack.c.h.b16 %v3402
    %v4491 = vunpack.c.l.b16 %v3403
    %v4492 = vunpack.c.h.b16 %v3403
    %v4493 = vunpack.c.l.b16 %v3404
    %v4494 = vunpack.c.h.b16 %v3404
    %v4495 = vunpack.c.l.b16 %v3405
    %v4496 = vunpack.c.l.b16 %v3406
    %v4497 = vunpack.c.h.b16 %v3406
    %v4498 = vunpack.c.l.b16 %v3407
    %v4499 = vunpack.c.h.b16 %v3407
    %v4500 = vunpack.c.l.b16 %v3408
    %v4501 = vunpack.c.h.b16 %v3408
    %v4502 = vunpack.c.l.b16 %v3409
    %v4503 = vunpack.c.l.b16 %v3410
    %v4504 = vunpack.c.h.b16 %v3410
    %v4505 = vunpack.c.l.b16 %v3411
    %v4506 = vunpack.c.h.b16 %v3411
    %v4507 = vunpack.c.l.b16 %v3412
    %v4508 = vunpack.c.h.b16 %v3412
    %v4509 = vunpack.c.l.b16 %v3413
    %v4510 = vunpack.c.l.b16 %v3414
    %v4511 = vunpack.c.h.b16 %v3414
    %v4512 = vunpack.c.l.b16 %v3415
    %v4513 = vunpack.c.h.b16 %v3415
    %v4514 = vunpack.c.l.b16 %v3416
    %v4515 = vunpack.c.h.b16 %v3416
    %v4516 = vunpack.c.l.b16 %v3417
    %v4517 = vunpack.c.l.b16 %v3418
    %v4518 = vunpack.c.h.b16 %v3418
    %v4519 = vunpack.c.l.b16 %v3419
    %v4520 = vunpack.c.h.b16 %v3419
    %v4521 = vunpack.c.l.b16 %v3420
    %v4522 = vunpack.c.h.b16 %v3420
    %v4523 = vunpack.c.l.b16 %v3421
    %v4524 = vunpack.c.l.b16 %v3422
    %v4525 = vunpack.c.h.b16 %v3422
    %v4526 = vunpack.c.l.b16 %v3423
    %v4527 = vunpack.c.h.b16 %v3423
    %v4528 = vunpack.c.l.b16 %v3424
    %v4529 = vunpack.c.h.b16 %v3424
    %v4530 = vunpack.c.l.b16 %v3425
    %v4531 = vunpack.c.l.b16 %v3426
    %v4532 = vunpack.c.h.b16 %v3426
    %v4533 = vunpack.c.l.b16 %v3427
    %v4534 = vunpack.c.h.b16 %v3427
    %v4535 = vunpack.c.l.b16 %v3428
    %v4536 = vunpack.c.h.b16 %v3428
    %v4537 = vunpack.c.l.b16 %v3429
    %v4538 = vunpack.c.l.b16 %v3430
    %v4539 = vunpack.c.h.b16 %v3430
    %v4540 = vunpack.c.l.b16 %v3431
    %v4541 = vunpack.c.h.b16 %v3431
    %v4542 = vunpack.c.l.b16 %v3432
    %v4543 = vunpack.c.h.b16 %v3432
    %v4544 = vunpack.c.l.b16 %v3433
    %v4545 = vunpack.c.l.b16 %v3434
    %v4546 = vunpack.c.h.b16 %v3434
    %v4547 = vunpack.c.l.b16 %v3435
    %v4548 = vunpack.c.h.b16 %v3435
    %v4549 = vunpack.c.l.b16 %v3436
    %v4550 = vunpack.c.h.b16 %v3436
    %v4551 = vunpack.c.l.b16 %v3437
    %v4552 = vunpack.c.l.b16 %v3438
    %v4553 = vunpack.c.h.b16 %v3438
    %v4554 = vunpack.c.l.b16 %v3439
    %v4555 = vunpack.c.h.b16 %v3439
    %v4556 = vunpack.c.l.b16 %v3440
    %v4557 = vunpack.c.h.b16 %v3440
    %v4558 = vunpack.c.l.b16 %v3441
    %v4559 = vunpack.c.l.b16 %v3442
    %v4560 = vunpack.c.h.b16 %v3442
    %v4561 = vunpack.c.l.b16 %v3443
    %v4562 = vunpack.c.h.b16 %v3443
    %v4563 = vunpack.c.l.b16 %v3444
    %v4564 = vunpack.c.h.b16 %v3444
    %v4565 = vunpack.c.l.b16 %v3445
    %v4566 = vunpack.c.l.b16 %v3446
    %v4567 = vunpack.c.h.b16 %v3446
    %v4568 = vunpack.c.l.b16 %v3447
    %v4569 = vunpack.c.h.b16 %v3447
    %v4570 = vunpack.c.l.b16 %v3448
    %v4571 = vunpack.c.h.b16 %v3448
    %v4572 = vunpack.c.l.b16 %v3449
    %v4573 = vunpack.c.l.b16 %v3450
    %v4574 = vunpack.c.h.b16 %v3450
    %v4575 = vunpack.c.l.b16 %v3451
    %v4576 = vunpack.c.h.b16 %v3451
    %v4577 = vunpack.c.l.b16 %v3452
    %v4578 = vunpack.c.h.b16 %v3452
    %v4579 = vunpack.c.l.b16 %v3453
    %v4580 = vunpack.c.l.b16 %v3454
    %v4581 = vunpack.c.h.b16 %v3454
    %v4582 = vunpack.c.l.b16 %v3455
    %v4583 = vunpack.c.h.b16 %v3455
    %v4584 = vunpack.c.l.b16 %v3456
    %v4585 = vunpack.c.h.b16 %v3456
    %v4586 = vunpack.c.l.b16 %v3457
    %v4587 = vunpack.c.l.b16 %v3458
    %v4588 = vunpack.c.h.b16 %v3458
    %v4589 = vunpack.c.l.b16 %v3459
    %v4590 = vunpack.c.h.b16 %v3459
    %v4591 = vunpack.c.l.b16 %v3460
    %v4592 = vunpack.c.h.b16 %v3460
    %v4593 = vunpack.c.l.b16 %v3461
    %v4594 = vunpack.c.l.b16 %v3462
    %v4595 = vunpack.c.h.b16 %v3462
    %v4596 = vunpack.c.l.b16 %v3463
    %v4597 = vunpack.c.h.b16 %v3463
    %v4598 = vunpack.c.l.b16 %v3464
    %v4599 = vunpack.c.h.b16 %v3464
    %v4600 = vunpack.c.l.b16 %v3465
    %v4601 = vunpack.c.l.b16 %v3466
    %v4602 = vunpack.c.h.b16 %v3466
    %v4603 = vunpack.c.l.b16 %v3467
    %v4604 = vunpack.c.h.b16 %v3467
    %v4605 = vunpack.c.l.b16 %v3468
    %v4606 = vunpack.c.h.b16 %v3468
    %v4607 = vunpack.c.l.b16 %v3469
    %v4608 = vunpack.c.l.b16 %v3470
    %v4609 = vunpack.c.h.b16 %v3470
    %v4610 = vunpack.c.l.b16 %v3471
    %v4611 = vunpack.c.h.b16 %v3471
    %v4612 = vunpack.c.l.b16 %v3472
    %v4613 = vunpack.c.h.b16 %v3472
    %v4614 = vunpack.c.l.b16 %v3473
    %v4615 = vunpack.c.l.b16 %v3474
    %v4616 = vunpack.c.h.b16 %v3474
    %v4617 = vunpack.c.l.b16 %v3475
    %v4618 = vunpack.c.h.b16 %v3475
    %v4619 = vunpack.c.l.b16 %v3476
    %v4620 = vunpack.c.h.b16 %v3476
    %v4621 = vunpack.c.l.b16 %v3477
    %v4622 = vunpack.c.l.b16 %v3478
    %v4623 = vunpack.c.h.b16 %v3478
    %v4624 = vunpack.c.l.b16 %v3479
    %v4625 = vunpack.c.h.b16 %v3479
    %v4626 = vunpack.c.l.b16 %v3480
    %v4627 = vunpack.c.h.b16 %v3480
    %v4628 = vunpack.c.l.b16 %v3481
    %v4629 = vunpack.c.l.b16 %v3482
    %v4630 = vunpack.c.h.b16 %v3482
    %v4631 = vunpack.c.l.b16 %v3483
    %v4632 = vunpack.c.h.b16 %v3483
    %v4633 = vunpack.c.l.b16 %v3484
    %v4634 = vunpack.c.h.b16 %v3484
    %v4635 = vunpack.c.l.b16 %v3485
    %v4636 = vunpack.c.l.b16 %v3486
    %v4637 = vunpack.c.h.b16 %v3486
    %v4638 = vunpack.c.l.b16 %v3487
    %v4639 = vunpack.c.h.b16 %v3487
    %v4640 = vunpack.c.l.b16 %v3488
    %v4641 = vunpack.c.h.b16 %v3488
    %v4642 = vunpack.c.l.b16 %v3489
    %v4643 = vunpack.c.l.b16 %v3490
    %v4644 = vunpack.c.h.b16 %v3490
    %v4645 = vunpack.c.l.b16 %v3491
    %v4646 = vunpack.c.h.b16 %v3491
    %v4647 = vunpack.c.l.b16 %v3492
    %v4648 = vunpack.c.h.b16 %v3492
    %v4649 = vunpack.c.l.b16 %v3493
    %v4650 = vunpack.c.l.b16 %v3494
    %v4651 = vunpack.c.h.b16 %v3494
    %v4652 = vunpack.c.l.b16 %v3495
    %v4653 = vunpack.c.h.b16 %v3495
    %v4654 = vunpack.c.l.b16 %v3496
    %v4655 = vunpack.c.h.b16 %v3496
    %v4656 = vunpack.c.l.b16 %v3497
    %v4657 = vunpack.c.l.b16 %v3498
    %v4658 = vunpack.c.h.b16 %v3498
    %v4659 = vunpack.c.l.b16 %v3499
    %v4660 = vunpack.c.h.b16 %v3499
    %v4661 = vunpack.c.l.b16 %v3500
    %v4662 = vunpack.c.h.b16 %v3500
    %v4663 = vunpack.c.l.b16 %v3501
    %v4664 = vunpack.c.l.b16 %v3502
    %v4665 = vunpack.c.h.b16 %v3502
    %v4666 = vunpack.c.l.b16 %v3503
    %v4667 = vunpack.c.h.b16 %v3503
    %v4668 = vunpack.c.l.b16 %v3504
    %v4669 = vunpack.c.h.b16 %v3504
    %v4670 = vunpack.c.l.b16 %v3505
    %v4671 = vunpack.c.l.b16 %v3506
    %v4672 = vunpack.c.h.b16 %v3506
    %v4673 = vunpack.c.l.b16 %v3507
    %v4674 = vunpack.c.h.b16 %v3507
    %v4675 = vunpack.c.l.b16 %v3508
    %v4676 = vunpack.c.h.b16 %v3508
    %v4677 = vunpack.c.l.b16 %v3509
    %v4678 = vunpack.c.l.b16 %v3510
    %v4679 = vunpack.c.h.b16 %v3510
    %v4680 = vunpack.c.l.b16 %v3511
    %v4681 = vunpack.c.h.b16 %v3511
    %v4682 = vunpack.c.l.b16 %v3512
    %v4683 = vunpack.c.h.b16 %v3512
    %v4684 = vunpack.c.l.b16 %v3513
    %v4685 = vunpack.c.l.b16 %v3514
    %v4686 = vunpack.c.h.b16 %v3514
    %v4687 = vunpack.c.l.b16 %v3515
    %v4688 = vunpack.c.h.b16 %v3515
    %v4689 = vunpack.c.l.b16 %v3516
    %v4690 = vunpack.c.h.b16 %v3516
    %v4691 = vunpack.c.l.b16 %v3517
    %v4692 = vunpack.c.l.b16 %v3518
    %v4693 = vunpack.c.h.b16 %v3518
    %v4694 = vunpack.c.l.b16 %v3519
    %v4695 = vunpack.c.h.b16 %v3519
    %v4696 = vunpack.c.l.b16 %v3520
    %v4697 = vunpack.c.h.b16 %v3520
    %v4698 = vunpack.c.l.b16 %v3521
    %v4699 = vunpack.c.l.b16 %v3522
    %v4700 = vunpack.c.h.b16 %v3522
    %v4701 = vunpack.c.l.b16 %v3523
    %v4702 = vunpack.c.h.b16 %v3523
    %v4703 = vunpack.c.l.b16 %v3524
    %v4704 = vunpack.c.h.b16 %v3524
    %v4705 = vunpack.c.l.b16 %v3525
    %v4706 = vunpack.c.l.b16 %v3526
    %v4707 = vunpack.c.h.b16 %v3526
    %v4708 = vunpack.c.l.b16 %v3527
    %v4709 = vunpack.c.h.b16 %v3527
    %v4710 = vunpack.c.l.b16 %v3528
    %v4711 = vunpack.c.h.b16 %v3528
    %v4712 = vunpack.c.l.b16 %v3529
    %v4713 = vunpack.c.l.b16 %v3530
    %v4714 = vunpack.c.h.b16 %v3530
    %v4715 = vunpack.c.l.b16 %v3531
    %v4716 = vunpack.c.h.b16 %v3531
    %v4717 = vunpack.c.l.b16 %v3532
    %v4718 = vunpack.c.h.b16 %v3532
    %v4719 = vunpack.c.l.b16 %v3533
    %v4720 = vunpack.c.l.b16 %v3534
    %v4721 = vunpack.c.h.b16 %v3534
    %v4722 = vunpack.c.l.b16 %v3535
    %v4723 = vunpack.c.h.b16 %v3535
    %v4724 = vunpack.c.l.b16 %v3536
    %v4725 = vunpack.c.h.b16 %v3536
    %v4726 = vunpack.c.l.b16 %v3537
    %v4727 = vunpack.c.l.b16 %v3538
    %v4728 = vunpack.c.h.b16 %v3538
    %v4729 = vunpack.c.l.b16 %v3539
    %v4730 = vunpack.c.h.b16 %v3539
    %v4731 = vunpack.c.l.b16 %v3540
    %v4732 = vunpack.c.h.b16 %v3540
    %v4733 = vunpack.c.l.b16 %v3541
    %v4734 = vunpack.c.l.b16 %v3542
    %v4735 = vunpack.c.h.b16 %v3542
    %v4736 = vunpack.c.l.b16 %v3543
    %v4737 = vunpack.c.h.b16 %v3543
    %v4738 = vunpack.c.l.b16 %v3544
    %v4739 = vunpack.c.h.b16 %v3544
    %v4740 = vunpack.c.l.b16 %v3545
    %v4741 = vunpack.c.l.b16 %v3546
    %v4742 = vunpack.c.h.b16 %v3546
    %v4743 = vunpack.c.l.b16 %v3547
    %v4744 = vunpack.c.h.b16 %v3547
    %v4745 = vunpack.c.l.b16 %v3548
    %v4746 = vunpack.c.h.b16 %v3548
    %v4747 = vunpack.c.l.b16 %v3549
    %v4748 = vunpack.c.l.b16 %v3550
    %v4749 = vunpack.c.h.b16 %v3550
    %v4750 = vunpack.c.l.b16 %v3551
    %v4751 = vunpack.c.h.b16 %v3551
    %v4752 = vunpack.c.l.b16 %v3552
    %v4753 = vunpack.c.h.b16 %v3552
    %v4754 = vunpack.c.l.b16 %v3553
    %v4755 = vunpack.c.l.b16 %v3554
    %v4756 = vunpack.c.h.b16 %v3554
    %v4757 = vunpack.c.l.b16 %v3555
    %v4758 = vunpack.c.h.b16 %v3555
    %v4759 = vunpack.c.l.b16 %v3556
    %v4760 = vunpack.c.h.b16 %v3556
    %v4761 = vunpack.c.l.b16 %v3557
    %v4762 = vunpack.c.l.b16 %v3558
    %v4763 = vunpack.c.h.b16 %v3558
    %v4764 = vunpack.c.l.b16 %v3559
    %v4765 = vunpack.c.h.b16 %v3559
    %v4766 = vunpack.c.l.b16 %v3560
    %v4767 = vunpack.c.h.b16 %v3560
    %v4768 = vunpack.c.l.b16 %v3561
    %v4769 = vunpack.c.l.b16 %v3562
    %v4770 = vunpack.c.h.b16 %v3562
    %v4771 = vunpack.c.l.b16 %v3563
    %v4772 = vunpack.c.h.b16 %v3563
    %v4773 = vunpack.c.l.b16 %v3564
    %v4774 = vunpack.c.h.b16 %v3564
    %v4775 = vunpack.c.l.b16 %v3565
    %v4776 = vunpack.c.l.b16 %v3566
    %v4777 = vunpack.c.h.b16 %v3566
    %v4778 = vunpack.c.l.b16 %v3567
    %v4779 = vunpack.c.h.b16 %v3567
    %v4780 = vunpack.c.l.b16 %v3568
    %v4781 = vunpack.c.h.b16 %v3568
    %v4782 = vunpack.c.l.b16 %v3569
    %v4783 = vunpack.c.l.b16 %v3570
    %v4784 = vunpack.c.h.b16 %v3570
    %v4785 = vunpack.c.l.b16 %v3571
    %v4786 = vunpack.c.h.b16 %v3571
    %v4787 = vunpack.c.l.b16 %v3572
    %v4788 = vunpack.c.h.b16 %v3572
    %v4789 = vunpack.c.l.b16 %v3573
    %v4790 = vunpack.c.l.b16 %v3574
    %v4791 = vunpack.c.h.b16 %v3574
    %v4792 = vunpack.c.l.b16 %v3575
    %v4793 = vunpack.c.h.b16 %v3575
    %v4794 = vunpack.c.l.b16 %v3576
    %v4795 = vunpack.c.h.b16 %v3576
    %v4796 = vunpack.c.l.b16 %v3577
    %v4797 = vunpack.c.l.b16 %v3578
    %v4798 = vunpack.c.h.b16 %v3578
    %v4799 = vunpack.c.l.b16 %v3579
    %v4800 = vunpack.c.h.b16 %v3579
    %v4801 = vunpack.c.l.b16 %v3580
    %v4802 = vunpack.c.h.b16 %v3580
    %v4803 = vunpack.c.l.b16 %v3581
    %v4804 = vunpack.c.l.b16 %v3582
    %v4805 = vunpack.c.h.b16 %v3582
    %v4806 = vunpack.c.l.b16 %v3583
    %v4807 = vunpack.c.h.b16 %v3583
    %v4808 = vunpack.c.l.b16 %v3584
    %v4809 = vunpack.c.h.b16 %v3584
    %v4810 = vunpack.c.l.b16 %v3585
    %v4811 = vunpack.c.l.b16 %v3586
    %v4812 = vunpack.c.h.b16 %v3586
    %v4813 = vunpack.c.l.b16 %v3587
    %v4814 = vunpack.c.h.b16 %v3587
    %v4815 = vunpack.c.l.b16 %v3588
    %v4816 = vunpack.c.h.b16 %v3588
    %v4817 = vunpack.c.l.b16 %v3589
    %v4818 = vunpack.c.l.b16 %v3590
    %v4819 = vunpack.c.h.b16 %v3590
    %v4820 = vunpack.c.l.b16 %v3591
    %v4821 = vunpack.c.h.b16 %v3591
    %v4822 = vunpack.c.l.b16 %v3592
    %v4823 = vunpack.c.h.b16 %v3592
    %v4824 = vunpack.c.l.b16 %v3593
    %v4825 = vunpack.c.l.b16 %v3594
    %v4826 = vunpack.c.h.b16 %v3594
    %v4827 = vunpack.c.l.b16 %v3595
    %v4828 = vunpack.c.h.b16 %v3595
    %v4829 = vunpack.c.l.b16 %v3596
    %v4830 = vunpack.c.h.b16 %v3596
    %v4831 = vunpack.c.l.b16 %v3597
    %v4832 = vunpack.c.l.b16 %v3598
    %v4833 = vunpack.c.h.b16 %v3598
    %v4834 = vunpack.c.l.b16 %v3599
    %v4835 = vunpack.c.h.b16 %v3599
    %v4836 = vunpack.c.l.b16 %v3600
    %v4837 = vunpack.c.h.b16 %v3600
    %v4838 = vunpack.c.l.b16 %v3601
    %v4839 = vunpack.c.l.b16 %v3602
    %v4840 = vunpack.c.h.b16 %v3602
    %v4841 = vunpack.c.l.b16 %v3603
    %v4842 = vunpack.c.h.b16 %v3603
    %v4843 = vunpack.c.l.b16 %v3604
    %v4844 = vunpack.c.h.b16 %v3604
    %v4845 = vunpack.c.l.b16 %v3605
    %v4846 = vunpack.c.l.b16 %v3606
    %v4847 = vunpack.c.h.b16 %v3606
    %v4848 = vunpack.c.l.b16 %v3607
    %v4849 = vunpack.c.h.b16 %v3607
    %v4850 = vunpack.c.l.b16 %v3608
    %v4851 = vunpack.c.h.b16 %v3608
    %v4852 = vunpack.c.l.b16 %v3609
    %v4853 = vunpack.c.l.b16 %v3610
    %v4854 = vunpack.c.h.b16 %v3610
    %v4855 = vunpack.c.l.b16 %v3611
    %v4856 = vunpack.c.h.b16 %v3611
    %v4857 = vunpack.c.l.b16 %v3612
    %v4858 = vunpack.c.h.b16 %v3612
    %v4859 = vunpack.c.l.b16 %v3613
    %v4860 = vunpack.c.l.b16 %v3614
    %v4861 = vunpack.c.h.b16 %v3614
    %v4862 = vunpack.c.l.b16 %v3615
    %v4863 = vunpack.c.h.b16 %v3615
    %v4864 = vunpack.c.l.b16 %v3616
    %v4865 = vunpack.c.h.b16 %v3616
    %v4866 = vunpack.c.l.b16 %v3617
    %v4867 = vunpack.c.l.b16 %v3618
    %v4868 = vunpack.c.h.b16 %v3618
    %v4869 = vunpack.c.l.b16 %v3619
    %v4870 = vunpack.c.h.b16 %v3619
    %v4871 = vunpack.c.l.b16 %v3620
    %v4872 = vunpack.c.h.b16 %v3620
    %v4873 = vunpack.c.l.b16 %v3621
    %v4874 = vunpack.c.l.b16 %v3622
    %v4875 = vunpack.c.h.b16 %v3622
    %v4876 = vunpack.c.l.b16 %v3623
    %v4877 = vunpack.c.h.b16 %v3623
    %v4878 = vunpack.c.l.b16 %v3624
    %v4879 = vunpack.c.h.b16 %v3624
    %v4880 = vunpack.c.l.b16 %v3625
    %v4881 = vunpack.c.l.b16 %v3626
    %v4882 = vunpack.c.h.b16 %v3626
    %v4883 = vunpack.c.l.b16 %v3627
    %v4884 = vunpack.c.h.b16 %v3627
    %v4885 = vunpack.c.l.b16 %v3628
    %v4886 = vunpack.c.h.b16 %v3628
    %v4887 = vunpack.c.l.b16 %v3629
    %v4888 = vunpack.c.l.b16 %v3630
    %v4889 = vunpack.c.h.b16 %v3630
    %v4890 = vunpack.c.l.b16 %v3631
    %v4891 = vunpack.c.h.b16 %v3631
    %v4892 = vunpack.c.l.b16 %v3632
    %v4893 = vunpack.c.h.b16 %v3632
    %v4894 = vunpack.c.l.b16 %v3633
    %v4895 = vunpack.c.l.b16 %v3634
    %v4896 = vunpack.c.h.b16 %v3634
    %v4897 = vunpack.c.l.b16 %v3635
    %v4898 = vunpack.c.h.b16 %v3635
    %v4899 = vunpack.c.l.b16 %v3636
    %v4900 = vunpack.c.h.b16 %v3636
    %v4901 = vunpack.c.l.b16 %v3637
    %v4902 = vunpack.c.l.b16 %v3638
    %v4903 = vunpack.c.h.b16 %v3638
    %v4904 = vunpack.c.l.b16 %v3639
    %v4905 = vunpack.c.h.b16 %v3639
    %v4906 = vunpack.c.l.b16 %v3640
    %v4907 = vunpack.c.h.b16 %v3640
    %v4908 = vunpack.c.l.b16 %v3641
    %v4909 = vunpack.c.l.b16 %v3642
    %v4910 = vunpack.c.h.b16 %v3642
    %v4911 = vunpack.c.l.b16 %v3643
    %v4912 = vunpack.c.h.b16 %v3643
    %v4913 = vunpack.c.l.b16 %v3644
    %v4914 = vunpack.c.h.b16 %v3644
    %v4915 = vunpack.c.l.b16 %v3645
    %v4916 = vunpack.c.l.b16 %v3646
    %v4917 = vunpack.c.h.b16 %v3646
    %v4918 = vunpack.c.l.b16 %v3647
    %v4919 = vunpack.c.h.b16 %v3647
    %v4920 = vunpack.c.l.b16 %v3648
    %v4921 = vunpack.c.h.b16 %v3648
    %v4922 = vunpack.c.l.b16 %v3649
    %v4923 = vunpack.c.l.b16 %v3650
    %v4924 = vunpack.c.h.b16 %v3650
    %v4925 = vunpack.c.l.b16 %v3651
    %v4926 = vunpack.c.h.b16 %v3651
    %v4927 = vunpack.c.l.b16 %v3652
    %v4928 = vunpack.c.h.b16 %v3652
    %v4929 = vunpack.c.l.b16 %v3653
    %v4930 = vunpack.c.l.b16 %v3654
    %v4931 = vunpack.c.h.b16 %v3654
    %v4932 = vunpack.c.l.b16 %v3655
    %v4933 = vunpack.c.h.b16 %v3655
    %v4934 = vunpack.c.l.b16 %v3656
    %v4935 = vunpack.c.h.b16 %v3656
    %v4936 = vunpack.c.l.b16 %v3657
    %v4937 = vunpack.c.l.b16 %v3658
    %v4938 = vunpack.c.h.b16 %v3658
    %v4939 = vunpack.c.l.b16 %v3659
    %v4940 = vunpack.c.h.b16 %v3659
    %v4941 = vunpack.c.l.b16 %v3660
    %v4942 = vunpack.c.h.b16 %v3660
    %v4943 = vunpack.c.l.b16 %v3661
    %v4944 = vunpack.c.l.b16 %v3662
    %v4945 = vunpack.c.h.b16 %v3662
    %v4946 = vunpack.c.l.b16 %v3663
    %v4947 = vunpack.c.h.b16 %v3663
    %v4948 = vunpack.c.l.b16 %v3664
    %v4949 = vunpack.c.h.b16 %v3664
    %v4950 = vunpack.c.l.b16 %v3665
    %v4951 = vunpack.c.l.b16 %v3666
    %v4952 = vunpack.c.h.b16 %v3666
    %v4953 = vunpack.c.l.b16 %v3667
    %v4954 = vunpack.c.h.b16 %v3667
    %v4955 = vunpack.c.l.b16 %v3668
    %v4956 = vunpack.c.h.b16 %v3668
    %v4957 = vunpack.c.l.b16 %v3669
    %v4958 = vunpack.c.l.b16 %v3670
    %v4959 = vunpack.c.h.b16 %v3670
    %v4960 = vunpack.c.l.b16 %v3671
    %v4961 = vunpack.c.h.b16 %v3671
    %v4962 = vunpack.c.l.b16 %v3672
    %v4963 = vunpack.c.h.b16 %v3672
    %v4964 = vunpack.c.l.b16 %v3673
    %v4965 = vunpack.c.l.b16 %v3674
    %v4966 = vunpack.c.h.b16 %v3674
    %v4967 = vunpack.c.l.b16 %v3675
    %v4968 = vunpack.c.h.b16 %v3675
    %v4969 = vunpack.c.l.b16 %v3676
    %v4970 = vunpack.c.h.b16 %v3676
    %v4971 = vunpack.c.l.b16 %v3677
    %v4972 = vunpack.c.l.b16 %v3678
    %v4973 = vunpack.c.h.b16 %v3678
    %v4974 = vunpack.c.l.b16 %v3679
    %v4975 = vunpack.c.h.b16 %v3679
    %v4976 = vunpack.c.l.b16 %v3680
    %v4977 = vunpack.c.h.b16 %v3680
    %v4978 = vunpack.c.l.b16 %v3681
    %v4979 = vunpack.c.l.b16 %v3682
    %v4980 = vunpack.c.h.b16 %v3682
    %v4981 = vunpack.c.l.b16 %v3683
    %v4982 = vunpack.c.h.b16 %v3683
    %v4983 = vunpack.c.l.b16 %v3684
    %v4984 = vunpack.c.h.b16 %v3684
    %v4985 = vunpack.c.l.b16 %v3685
    %v4986 = vunpack.c.l.b16 %v3686
    %v4987 = vunpack.c.h.b16 %v3686
    %v4988 = vunpack.c.l.b16 %v3687
    %v4989 = vunpack.c.h.b16 %v3687
    %v4990 = vunpack.c.l.b16 %v3688
    %v4991 = vunpack.c.h.b16 %v3688
    %v4992 = vunpack.c.l.b16 %v3689
    %v4993 = vunpack.c.l.b16 %v3690
    %v4994 = vunpack.c.h.b16 %v3690
    %v4995 = vunpack.c.l.b16 %v3691
    %v4996 = vunpack.c.h.b16 %v3691
    %v4997 = vunpack.c.l.b16 %v3692
    %v4998 = vunpack.c.h.b16 %v3692
    %v4999 = vunpack.c.l.b16 %v3693
    %v5000 = vunpack.c.l.b16 %v3694
    %v5001 = vunpack.c.h.b16 %v3694
    %v5002 = vunpack.c.l.b16 %v3695
    %v5003 = vunpack.c.h.b16 %v3695
    %v5004 = vunpack.c.l.b16 %v3696
    %v5005 = vunpack.c.h.b16 %v3696
    %v5006 = vunpack.c.l.b16 %v3697
    %v5007 = vunpack.c.l.b16 %v3698
    %v5008 = vunpack.c.h.b16 %v3698
    %v5009 = vunpack.c.l.b16 %v3699
    %v5010 = vunpack.c.h.b16 %v3699
    %v5011 = vunpack.c.l.b16 %v3700
    %v5012 = vunpack.c.h.b16 %v3700
    %v5013 = vunpack.c.l.b16 %v3701
    %v5014 = vunpack.c.l.b16 %v3702
    %v5015 = vunpack.c.h.b16 %v3702
    %v5016 = vunpack.c.l.b16 %v3703
    %v5017 = vunpack.c.h.b16 %v3703
    %v5018 = vunpack.c.l.b16 %v3704
    %v5019 = vunpack.c.h.b16 %v3704
    %v5020 = vunpack.c.l.b16 %v3705
    %v5021 = vunpack.c.l.b16 %v3706
    %v5022 = vunpack.c.h.b16 %v3706
    %v5023 = vunpack.c.l.b16 %v3707
    %v5024 = vunpack.c.h.b16 %v3707
    %v5025 = vunpack.c.l.b16 %v3708
    %v5026 = vunpack.c.h.b16 %v3708
    %v5027 = vunpack.c.l.b16 %v3709
    %v5028 = vunpack.c.l.b16 %v3710
    %v5029 = vunpack.c.h.b16 %v3710
    %v5030 = vunpack.c.l.b16 %v3711
    %v5031 = vunpack.c.h.b16 %v3711
    %v5032 = vunpack.c.l.b16 %v3712
    %v5033 = vunpack.c.h.b16 %v3712
    %v5034 = vunpack.c.l.b16 %v3713
    %v5035 = vunpack.c.l.b16 %v3714
    %v5036 = vunpack.c.h.b16 %v3714
    %v5037 = vunpack.c.l.b16 %v3715
    %v5038 = vunpack.c.h.b16 %v3715
    %v5039 = vunpack.c.l.b16 %v3716
    %v5040 = vunpack.c.h.b16 %v3716
    %v5041 = vunpack.c.l.b16 %v3717
    %v5042 = vunpack.c.l.b16 %v3718
    %v5043 = vunpack.c.h.b16 %v3718
    %v5044 = vunpack.c.l.b16 %v3719
    %v5045 = vunpack.c.h.b16 %v3719
    %v5046 = vunpack.c.l.b16 %v3720
    %v5047 = vunpack.c.h.b16 %v3720
    %v5048 = vunpack.c.l.b16 %v3721
    %v5049 = vunpack.c.l.b16 %v3722
    %v5050 = vunpack.c.h.b16 %v3722
    %v5051 = vunpack.c.l.b16 %v3723
    %v5052 = vunpack.c.h.b16 %v3723
    %v5053 = vunpack.c.l.b16 %v3724
    %v5054 = vunpack.c.h.b16 %v3724
    %v5055 = vunpack.c.l.b16 %v3725
    %v5056 = vunpack.c.l.b16 %v3726
    %v5057 = vunpack.c.h.b16 %v3726
    %v5058 = vunpack.c.l.b16 %v3727
    %v5059 = vunpack.c.h.b16 %v3727
    %v5060 = vunpack.c.l.b16 %v3728
    %v5061 = vunpack.c.h.b16 %v3728
    %v5062 = vunpack.c.l.b16 %v3729
    %v5063 = vunpack.c.l.b16 %v3730
    %v5064 = vunpack.c.h.b16 %v3730
    %v5065 = vunpack.c.l.b16 %v3731
    %v5066 = vunpack.c.h.b16 %v3731
    %v5067 = vunpack.c.l.b16 %v3732
    %v5068 = vunpack.c.h.b16 %v3732
    %v5069 = vunpack.c.l.b16 %v3733
    %v5070 = vunpack.c.l.b16 %v3734
    %v5071 = vunpack.c.h.b16 %v3734
    %v5072 = vunpack.c.l.b16 %v3735
    %v5073 = vunpack.c.h.b16 %v3735
    %v5074 = vunpack.c.l.b16 %v3736
    %v5075 = vunpack.c.h.b16 %v3736
    %v5076 = vunpack.c.l.b16 %v3737
    %v5077 = vunpack.c.l.b16 %v3738
    %v5078 = vunpack.c.h.b16 %v3738
    %v5079 = vunpack.c.l.b16 %v3739
    %v5080 = vunpack.c.h.b16 %v3739
    %v5081 = vunpack.c.l.b16 %v3740
    %v5082 = vunpack.c.h.b16 %v3740
    %v5083 = vunpack.c.l.b16 %v3741
    %v5084 = vunpack.c.l.b16 %v3742
    %v5085 = vunpack.c.h.b16 %v3742
    %v5086 = vunpack.c.l.b16 %v3743
    %v5087 = vunpack.c.h.b16 %v3743
    %v5088 = vunpack.c.l.b16 %v3744
    %v5089 = vunpack.c.h.b16 %v3744
    %v5090 = vunpack.c.l.b16 %v3745
    %v5091 = vunpack.c.l.b16 %v3746
    %v5092 = vunpack.c.h.b16 %v3746
    %v5093 = vunpack.c.l.b16 %v3747
    %v5094 = vunpack.c.h.b16 %v3747
    %v5095 = vunpack.c.l.b16 %v3748
    %v5096 = vunpack.c.h.b16 %v3748
    %v5097 = vunpack.c.l.b16 %v3749
    %v5098 = vunpack.c.l.b16 %v3750
    %v5099 = vunpack.c.h.b16 %v3750
    %v5100 = vunpack.c.l.b16 %v3751
    %v5101 = vunpack.c.h.b16 %v3751
    %v5102 = vunpack.c.l.b16 %v3752
    %v5103 = vunpack.c.h.b16 %v3752
    %v5104 = vunpack.c.l.b16 %v3753
    %v5105 = vunpack.c.l.b16 %v3754
    %v5106 = vunpack.c.h.b16 %v3754
    %v5107 = vunpack.c.l.b16 %v3755
    %v5108 = vunpack.c.h.b16 %v3755
    %v5109 = vunpack.c.l.b16 %v3756
    %v5110 = vunpack.c.h.b16 %v3756
    %v5111 = vunpack.c.l.b16 %v3757
    %v5112 = vunpack.c.l.b16 %v3758
    %v5113 = vunpack.c.h.b16 %v3758
    %v5114 = vunpack.c.l.b16 %v3759
    %v5115 = vunpack.c.h.b16 %v3759
    %v5116 = vunpack.c.l.b16 %v3760
    %v5117 = vunpack.c.h.b16 %v3760
    %v5118 = vunpack.c.l.b16 %v3761
    %v5119 = vunpack.c.l.b16 %v3762
    %v5120 = vunpack.c.h.b16 %v3762
    %v5121 = vunpack.c.l.b16 %v3763
    %v5122 = vunpack.c.h.b16 %v3763
    %v5123 = vunpack.c.l.b16 %v3764
    %v5124 = vunpack.c.h.b16 %v3764
    %v5125 = vunpack.c.l.b16 %v3765
    %v5126 = vunpack.c.l.b16 %v3766
    %v5127 = vunpack.c.h.b16 %v3766
    %v5128 = vunpack.c.l.b16 %v3767
    %v5129 = vunpack.c.h.b16 %v3767
    %v5130 = vunpack.c.l.b16 %v3768
    %v5131 = vunpack.c.h.b16 %v3768
    %v5132 = vunpack.c.l.b16 %v3769
    %v5133 = vunpack.c.l.b16 %v3770
    %v5134 = vunpack.c.h.b16 %v3770
    %v5135 = vunpack.c.l.b16 %v3771
    %v5136 = vunpack.c.h.b16 %v3771
    %v5137 = vunpack.c.l.b16 %v3772
    %v5138 = vunpack.c.h.b16 %v3772
    %v5139 = vunpack.c.l.b16 %v3773
    %v5140 = vunpack.c.l.b16 %v3774
    %v5141 = vunpack.c.h.b16 %v3774
    %v5142 = vunpack.c.l.b16 %v3775
    %v5143 = vunpack.c.h.b16 %v3775
    %v5144 = vunpack.c.l.b16 %v3776
    %v5145 = vunpack.c.h.b16 %v3776
    %v5146 = vunpack.c.l.b16 %v3777
    %v5147 = vunpack.c.l.b16 %v3778
    %v5148 = vunpack.c.h.b16 %v3778
    %v5149 = vunpack.c.l.b16 %v3779
    %v5150 = vunpack.c.h.b16 %v3779
    %v5151 = vunpack.c.l.b16 %v3780
    %v5152 = vunpack.c.h.b16 %v3780
    %v5153 = vunpack.c.l.b16 %v3781
    %v5154 = vunpack.c.l.b16 %v3782
    %v5155 = vunpack.c.h.b16 %v3782
    %v5156 = vunpack.c.l.b16 %v3783
    %v5157 = vunpack.c.h.b16 %v3783
    %v5158 = vunpack.c.l.b16 %v3784
    %v5159 = vunpack.c.h.b16 %v3784
    %v5160 = vunpack.c.l.b16 %v3785
    %v5161 = vunpack.c.l.b16 %v3786
    %v5162 = vunpack.c.h.b16 %v3786
    %v5163 = vunpack.c.l.b16 %v3787
    %v5164 = vunpack.c.h.b16 %v3787
    %v5165 = vunpack.c.l.b16 %v3788
    %v5166 = vunpack.c.h.b16 %v3788
    %v5167 = vunpack.c.l.b16 %v3789
    %v5168 = vunpack.c.l.b16 %v3790
    %v5169 = vunpack.c.h.b16 %v3790
    %v5170 = vunpack.c.l.b16 %v3791
    %v5171 = vunpack.c.h.b16 %v3791
    %v5172 = vunpack.c.l.b16 %v3792
    %v5173 = vunpack.c.h.b16 %v3792
    %v5174 = vunpack.c.l.b16 %v3793
    %v5175 = vunpack.c.l.b16 %v3794
    %v5176 = vunpack.c.h.b16 %v3794
    %v5177 = vunpack.c.l.b16 %v3795
    %v5178 = vunpack.c.h.b16 %v3795
    %v5179 = vunpack.c.l.b16 %v3796
    %v5180 = vunpack.c.h.b16 %v3796
    %v5181 = vunpack.c.l.b16 %v3797
    %v5182 = vunpack.c.l.b16 %v3798
    %v5183 = vunpack.c.h.b16 %v3798
    %v5184 = vunpack.c.l.b16 %v3799
    %v5185 = vunpack.c.h.b16 %v3799
    %v5186 = vunpack.c.l.b16 %v3800
    %v5187 = vunpack.c.h.b16 %v3800
    %v5188 = vunpack.c.l.b16 %v3801
    %v5189 = vunpack.c.l.b16 %v3802
    %v5190 = vunpack.c.h.b16 %v3802
    %v5191 = vunpack.c.l.b16 %v3803
    %v5192 = vunpack.c.h.b16 %v3803
    %v5193 = vunpack.c.l.b16 %v3804
    %v5194 = vunpack.c.h.b16 %v3804
    %v5195 = vunpack.c.l.b16 %v3805
    %v5196 = vunpack.c.l.b16 %v3806
    %v5197 = vunpack.c.h.b16 %v3806
    %v5198 = vunpack.c.l.b16 %v3807
    %v5199 = vunpack.c.h.b16 %v3807
    %v5200 = vunpack.c.l.b16 %v3808
    %v5201 = vunpack.c.h.b16 %v3808
    %v5202 = vunpack.c.l.b16 %v3809
    %v5203 = vunpack.c.l.b16 %v3810
    %v5204 = vunpack.c.h.b16 %v3810
    %v5205 = vunpack.c.l.b16 %v3811
    %v5206 = vunpack.c.h.b16 %v3811
    %v5207 = vunpack.c.l.b16 %v3812
    %v5208 = vunpack.c.h.b16 %v3812
    %v5209 = vunpack.c.l.b16 %v3813
    %v5210 = vunpack.c.l.b16 %v3814
    %v5211 = vunpack.c.h.b16 %v3814
    %v5212 = vunpack.c.l.b16 %v3815
    %v5213 = vunpack.c.h.b16 %v3815
    %v5214 = vunpack.c.l.b16 %v3816
    %v5215 = vunpack.c.h.b16 %v3816
    %v5216 = vunpack.c.l.b16 %v3817
    %v5217 = vunpack.c.l.b16 %v3818
    %v5218 = vunpack.c.h.b16 %v3818
    %v5219 = vunpack.c.l.b16 %v3819
    %v5220 = vunpack.c.h.b16 %v3819
    %v5221 = vunpack.c.l.b16 %v3820
    %v5222 = vunpack.c.h.b16 %v3820
    %v5223 = vunpack.c.l.b16 %v3821
    %v5224 = vunpack.c.l.b16 %v3822
    %v5225 = vunpack.c.h.b16 %v3822
    %v5226 = vunpack.c.l.b16 %v3823
    %v5227 = vunpack.c.h.b16 %v3823
    %v5228 = vunpack.c.l.b16 %v3824
    %v5229 = vunpack.c.h.b16 %v3824
    %v5230 = vunpack.c.l.b16 %v3825
    %v5231 = vunpack.c.l.b16 %v3826
    %v5232 = vunpack.c.h.b16 %v3826
    %v5233 = vunpack.c.l.b16 %v3827
    %v5234 = vunpack.c.h.b16 %v3827
    %v5235 = vunpack.c.l.b16 %v3828
    %v5236 = vunpack.c.h.b16 %v3828
    %v5237 = vunpack.c.l.b16 %v3829
    %v5238 = vunpack.c.l.b16 %v3830
    %v5239 = vunpack.c.h.b16 %v3830
    %v5240 = vunpack.c.l.b16 %v3831
    %v5241 = vunpack.c.h.b16 %v3831
    %v5242 = vunpack.c.l.b16 %v3832
    %v5243 = vunpack.c.h.b16 %v3832
    %v5244 = vunpack.c.l.b16 %v3833
    %v5245 = vunpack.c.l.b16 %v3834
    %v5246 = vunpack.c.h.b16 %v3834
    %v5247 = vunpack.c.l.b16 %v3835
    %v5248 = vunpack.c.h.b16 %v3835
    %v5249 = vunpack.c.l.b16 %v3836
    %v5250 = vunpack.c.h.b16 %v3836
    %v5251 = vunpack.c.l.b16 %v3837
    %v5252 = vunpack.c.l.b16 %v3838
    %v5253 = vunpack.c.h.b16 %v3838
    %v5254 = vunpack.c.l.b16 %v3839
    %v5255 = vunpack.c.h.b16 %v3839
    %v5256 = vunpack.c.l.b16 %v3840
    %v5257 = vunpack.c.h.b16 %v3840
    %v5258 = vunpack.c.l.b16 %v3841
    %v5259 = vunpack.c.l.b16 %v3842
    %v5260 = vunpack.c.h.b16 %v3842
    %v5261 = vunpack.c.l.b16 %v3843
    %v5262 = vunpack.c.h.b16 %v3843
    %v5263 = vunpack.c.l.b16 %v3844
    %v5264 = vunpack.c.h.b16 %v3844
    %v5265 = vunpack.c.l.b16 %v3845
    %v5266 = vunpack.c.l.b16 %v3846
    %v5267 = vunpack.c.h.b16 %v3846
    %v5268 = vunpack.c.l.b16 %v3847
    %v5269 = vunpack.c.h.b16 %v3847
    %v5270 = vunpack.c.l.b16 %v3848
    %v5271 = vunpack.c.h.b16 %v3848
    %v5272 = vunpack.c.l.b16 %v3849
    %v5273 = vunpack.c.l.b16 %v3850
    %v5274 = vunpack.c.h.b16 %v3850
    %v5275 = vunpack.c.l.b16 %v3851
    %v5276 = vunpack.c.h.b16 %v3851
    %v5277 = vunpack.c.l.b16 %v3852
    %v5278 = vunpack.c.h.b16 %v3852
    %v5279 = vunpack.c.l.b16 %v3853
    %v5280 = vunpack.c.l.b16 %v3854
    %v5281 = vunpack.c.h.b16 %v3854
    %v5282 = vunpack.c.l.b16 %v3855
    %v5283 = vunpack.c.h.b16 %v3855
    %v5284 = vunpack.c.l.b16 %v3856
    %v5285 = vunpack.c.h.b16 %v3856
    %v5286 = vunpack.c.l.b16 %v3857
    %v5287 = vunpack.c.l.b16 %v3858
    %v5288 = vunpack.c.h.b16 %v3858
    %v5289 = vunpack.c.l.b16 %v3859
    %v5290 = vunpack.c.h.b16 %v3859
    %v5291 = vunpack.c.l.b16 %v3860
    %v5292 = vunpack.c.h.b16 %v3860
    %v5293 = vunpack.c.l.b16 %v3861
    %v5294 = vunpack.c.l.b16 %v3862
    %v5295 = vunpack.c.h.b16 %v3862
    %v5296 = vunpack.c.l.b16 %v3863
    %v5297 = vunpack.c.h.b16 %v3863
    %v5298 = vunpack.c.l.b16 %v3864
    %v5299 = vunpack.c.h.b16 %v3864
    %v5300 = vunpack.c.l.b16 %v3865
    %v5301 = vunpack.c.l.b16 %v3866
    %v5302 = vunpack.c.h.b16 %v3866
    %v5303 = vunpack.c.l.b16 %v3867
    %v5304 = vunpack.c.h.b16 %v3867
    %v5305 = vunpack.c.l.b16 %v3868
    %v5306 = vunpack.c.h.b16 %v3868
    %v5307 = vunpack.c.l.b16 %v3869
    %v5308 = vunpack.c.l.b16 %v3870
    %v5309 = vunpack.c.h.b16 %v3870
    %v5310 = vunpack.c.l.b16 %v3871
    %v5311 = vunpack.c.h.b16 %v3871
    %v5312 = vunpack.c.l.b16 %v3872
    %v5313 = vunpack.c.h.b16 %v3872
    %v5314 = vunpack.c.l.b16 %v3873
    %v5315 = vunpack.c.l.b16 %v3874
    %v5316 = vunpack.c.h.b16 %v3874
    %v5317 = vunpack.c.l.b16 %v3875
    %v5318 = vunpack.c.h.b16 %v3875
    %v5319 = vunpack.c.l.b16 %v3876
    %v5320 = vunpack.c.h.b16 %v3876
    %v5321 = vunpack.c.l.b16 %v3877
    %v5322 = vpack.c.b16 %v4433, %v4426
    %v5323 = vpack.c.b16 %v4434, %v4427
    %v5324 = vpack.c.b16 %v4435, %v4428
    %v5325 = vpack.c.b16 %v4436, %v4429
    %v5326 = vpack.c.b16 %v4437, %v4430
    %v5327 = vpack.c.b16 %v4438, %v4431
    %v5328 = vpack.c.b16 %v4439, %v4432
    %v5329 = vpack.c.b16 %v4447, %v4440
    %v5330 = vpack.c.b16 %v4448, %v4441
    %v5331 = vpack.c.b16 %v4449, %v4442
    %v5332 = vpack.c.b16 %v4450, %v4443
    %v5333 = vpack.c.b16 %v4451, %v4444
    %v5334 = vpack.c.b16 %v4452, %v4445
    %v5335 = vpack.c.b16 %v4453, %v4446
    %v5336 = vpack.c.b16 %v4461, %v4454
    %v5337 = vpack.c.b16 %v4462, %v4455
    %v5338 = vpack.c.b16 %v4463, %v4456
    %v5339 = vpack.c.b16 %v4464, %v4457
    %v5340 = vpack.c.b16 %v4465, %v4458
    %v5341 = vpack.c.b16 %v4466, %v4459
    %v5342 = vpack.c.b16 %v4467, %v4460
    %v5343 = vpack.c.b16 %v4475, %v4468
    %v5344 = vpack.c.b16 %v4476, %v4469
    %v5345 = vpack.c.b16 %v4477, %v4470
    %v5346 = vpack.c.b16 %v4478, %v4471
    %v5347 = vpack.c.b16 %v4479, %v4472
    %v5348 = vpack.c.b16 %v4480, %v4473
    %v5349 = vpack.c.b16 %v4481, %v4474
    %v5350 = vpack.c.b16 %v4489, %v4482
    %v5351 = vpack.c.b16 %v4490, %v4483
    %v5352 = vpack.c.b16 %v4491, %v4484
    %v5353 = vpack.c.b16 %v4492, %v4485
    %v5354 = vpack.c.b16 %v4493, %v4486
    %v5355 = vpack.c.b16 %v4494, %v4487
    %v5356 = vpack.c.b16 %v4495, %v4488
    %v5357 = vpack.c.b16 %v4503, %v4496
    %v5358 = vpack.c.b16 %v4504, %v4497
    %v5359 = vpack.c.b16 %v4505, %v4498
    %v5360 = vpack.c.b16 %v4506, %v4499
    %v5361 = vpack.c.b16 %v4507, %v4500
    %v5362 = vpack.c.b16 %v4508, %v4501
    %v5363 = vpack.c.b16 %v4509, %v4502
    %v5364 = vpack.c.b16 %v4517, %v4510
    %v5365 = vpack.c.b16 %v4518, %v4511
    %v5366 = vpack.c.b16 %v4519, %v4512
    %v5367 = vpack.c.b16 %v4520, %v4513
    %v5368 = vpack.c.b16 %v4521, %v4514
    %v5369 = vpack.c.b16 %v4522, %v4515
    %v5370 = vpack.c.b16 %v4523, %v4516
    %v5371 = vpack.c.b16 %v4531, %v4524
    %v5372 = vpack.c.b16 %v4532, %v4525
    %v5373 = vpack.c.b16 %v4533, %v4526
    %v5374 = vpack.c.b16 %v4534, %v4527
    %v5375 = vpack.c.b16 %v4535, %v4528
    %v5376 = vpack.c.b16 %v4536, %v4529
    %v5377 = vpack.c.b16 %v4537, %v4530
    %v5378 = vpack.c.b16 %v4545, %v4538
    %v5379 = vpack.c.b16 %v4546, %v4539
    %v5380 = vpack.c.b16 %v4547, %v4540
    %v5381 = vpack.c.b16 %v4548, %v4541
    %v5382 = vpack.c.b16 %v4549, %v4542
    %v5383 = vpack.c.b16 %v4550, %v4543
    %v5384 = vpack.c.b16 %v4551, %v4544
    %v5385 = vpack.c.b16 %v4559, %v4552
    %v5386 = vpack.c.b16 %v4560, %v4553
    %v5387 = vpack.c.b16 %v4561, %v4554
    %v5388 = vpack.c.b16 %v4562, %v4555
    %v5389 = vpack.c.b16 %v4563, %v4556
    %v5390 = vpack.c.b16 %v4564, %v4557
    %v5391 = vpack.c.b16 %v4565, %v4558
    %v5392 = vpack.c.b16 %v4573, %v4566
    %v5393 = vpack.c.b16 %v4574, %v4567
    %v5394 = vpack.c.b16 %v4575, %v4568
    %v5395 = vpack.c.b16 %v4576, %v4569
    %v5396 = vpack.c.b16 %v4577, %v4570
    %v5397 = vpack.c.b16 %v4578, %v4571
    %v5398 = vpack.c.b16 %v4579, %v4572
    %v5399 = vpack.c.b16 %v4587, %v4580
    %v5400 = vpack.c.b16 %v4588, %v4581
    %v5401 = vpack.c.b16 %v4589, %v4582
    %v5402 = vpack.c.b16 %v4590, %v4583
    %v5403 = vpack.c.b16 %v4591, %v4584
    %v5404 = vpack.c.b16 %v4592, %v4585
    %v5405 = vpack.c.b16 %v4593, %v4586
    %v5406 = vpack.c.b16 %v4601, %v4594
    %v5407 = vpack.c.b16 %v4602, %v4595
    %v5408 = vpack.c.b16 %v4603, %v4596
    %v5409 = vpack.c.b16 %v4604, %v4597
    %v5410 = vpack.c.b16 %v4605, %v4598
    %v5411 = vpack.c.b16 %v4606, %v4599
    %v5412 = vpack.c.b16 %v4607, %v4600
    %v5413 = vpack.c.b16 %v4615, %v4608
    %v5414 = vpack.c.b16 %v4616, %v4609
    %v5415 = vpack.c.b16 %v4617, %v4610
    %v5416 = vpack.c.b16 %v4618, %v4611
    %v5417 = vpack.c.b16 %v4619, %v4612
    %v5418 = vpack.c.b16 %v4620, %v4613
    %v5419 = vpack.c.b16 %v4621, %v4614
    %v5420 = vpack.c.b16 %v4629, %v4622
    %v5421 = vpack.c.b16 %v4630, %v4623
    %v5422 = vpack.c.b16 %v4631, %v4624
    %v5423 = vpack.c.b16 %v4632, %v4625
    %v5424 = vpack.c.b16 %v4633, %v4626
    %v5425 = vpack.c.b16 %v4634, %v4627
    %v5426 = vpack.c.b16 %v4635, %v4628
    %v5427 = vpack.c.b16 %v4643, %v4636
    %v5428 = vpack.c.b16 %v4644, %v4637
    %v5429 = vpack.c.b16 %v4645, %v4638
    %v5430 = vpack.c.b16 %v4646, %v4639
    %v5431 = vpack.c.b16 %v4647, %v4640
    %v5432 = vpack.c.b16 %v4648, %v4641
    %v5433 = vpack.c.b16 %v4649, %v4642
    %v5434 = vpack.c.b16 %v4657, %v4650
    %v5435 = vpack.c.b16 %v4658, %v4651
    %v5436 = vpack.c.b16 %v4659, %v4652
    %v5437 = vpack.c.b16 %v4660, %v4653
    %v5438 = vpack.c.b16 %v4661, %v4654
    %v5439 = vpack.c.b16 %v4662, %v4655
    %v5440 = vpack.c.b16 %v4663, %v4656
    %v5441 = vpack.c.b16 %v4671, %v4664
    %v5442 = vpack.c.b16 %v4672, %v4665
    %v5443 = vpack.c.b16 %v4673, %v4666
    %v5444 = vpack.c.b16 %v4674, %v4667
    %v5445 = vpack.c.b16 %v4675, %v4668
    %v5446 = vpack.c.b16 %v4676, %v4669
    %v5447 = vpack.c.b16 %v4677, %v4670
    %v5448 = vpack.c.b16 %v4685, %v4678
    %v5449 = vpack.c.b16 %v4686, %v4679
    %v5450 = vpack.c.b16 %v4687, %v4680
    %v5451 = vpack.c.b16 %v4688, %v4681
    %v5452 = vpack.c.b16 %v4689, %v4682
    %v5453 = vpack.c.b16 %v4690, %v4683
    %v5454 = vpack.c.b16 %v4691, %v4684
    %v5455 = vpack.c.b16 %v4699, %v4692
    %v5456 = vpack.c.b16 %v4700, %v4693
    %v5457 = vpack.c.b16 %v4701, %v4694
    %v5458 = vpack.c.b16 %v4702, %v4695
    %v5459 = vpack.c.b16 %v4703, %v4696
    %v5460 = vpack.c.b16 %v4704, %v4697
    %v5461 = vpack.c.b16 %v4705, %v4698
    %v5462 = vpack.c.b16 %v4713, %v4706
    %v5463 = vpack.c.b16 %v4714, %v4707
    %v5464 = vpack.c.b16 %v4715, %v4708
    %v5465 = vpack.c.b16 %v4716, %v4709
    %v5466 = vpack.c.b16 %v4717, %v4710
    %v5467 = vpack.c.b16 %v4718, %v4711
    %v5468 = vpack.c.b16 %v4719, %v4712
    %v5469 = vpack.c.b16 %v4727, %v4720
    %v5470 = vpack.c.b16 %v4728, %v4721
    %v5471 = vpack.c.b16 %v4729, %v4722
    %v5472 = vpack.c.b16 %v4730, %v4723
    %v5473 = vpack.c.b16 %v4731, %v4724
    %v5474 = vpack.c.b16 %v4732, %v4725
    %v5475 = vpack.c.b16 %v4733, %v4726
    %v5476 = vpack.c.b16 %v4741, %v4734
    %v5477 = vpack.c.b16 %v4742, %v4735
    %v5478 = vpack.c.b16 %v4743, %v4736
    %v5479 = vpack.c.b16 %v4744, %v4737
    %v5480 = vpack.c.b16 %v4745, %v4738
    %v5481 = vpack.c.b16 %v4746, %v4739
    %v5482 = vpack.c.b16 %v4747, %v4740
    %v5483 = vpack.c.b16 %v4755, %v4748
    %v5484 = vpack.c.b16 %v4756, %v4749
    %v5485 = vpack.c.b16 %v4757, %v4750
    %v5486 = vpack.c.b16 %v4758, %v4751
    %v5487 = vpack.c.b16 %v4759, %v4752
    %v5488 = vpack.c.b16 %v4760, %v4753
    %v5489 = vpack.c.b16 %v4761, %v4754
    %v5490 = vpack.c.b16 %v4769, %v4762
    %v5491 = vpack.c.b16 %v4770, %v4763
    %v5492 = vpack.c.b16 %v4771, %v4764
    %v5493 = vpack.c.b16 %v4772, %v4765
    %v5494 = vpack.c.b16 %v4773, %v4766
    %v5495 = vpack.c.b16 %v4774, %v4767
    %v5496 = vpack.c.b16 %v4775, %v4768
    %v5497 = vpack.c.b16 %v4783, %v4776
    %v5498 = vpack.c.b16 %v4784, %v4777
    %v5499 = vpack.c.b16 %v4785, %v4778
    %v5500 = vpack.c.b16 %v4786, %v4779
    %v5501 = vpack.c.b16 %v4787, %v4780
    %v5502 = vpack.c.b16 %v4788, %v4781
    %v5503 = vpack.c.b16 %v4789, %v4782
    %v5504 = vpack.c.b16 %v4797, %v4790
    %v5505 = vpack.c.b16 %v4798, %v4791
    %v5506 = vpack.c.b16 %v4799, %v4792
    %v5507 = vpack.c.b16 %v4800, %v4793
    %v5508 = vpack.c.b16 %v4801, %v4794
    %v5509 = vpack.c.b16 %v4802, %v4795
    %v5510 = vpack.c.b16 %v4803, %v4796
    %v5511 = vpack.c.b16 %v4811, %v4804
    %v5512 = vpack.c.b16 %v4812, %v4805
    %v5513 = vpack.c.b16 %v4813, %v4806
    %v5514 = vpack.c.b16 %v4814, %v4807
    %v5515 = vpack.c.b16 %v4815, %v4808
    %v5516 = vpack.c.b16 %v4816, %v4809
    %v5517 = vpack.c.b16 %v4817, %v4810
    %v5518 = vpack.c.b16 %v4825, %v4818
    %v5519 = vpack.c.b16 %v4826, %v4819
    %v5520 = vpack.c.b16 %v4827, %v4820
    %v5521 = vpack.c.b16 %v4828, %v4821
    %v5522 = vpack.c.b16 %v4829, %v4822
    %v5523 = vpack.c.b16 %v4830, %v4823
    %v5524 = vpack.c.b16 %v4831, %v4824
    %v5525 = vpack.c.b16 %v4839, %v4832
    %v5526 = vpack.c.b16 %v4840, %v4833
    %v5527 = vpack.c.b16 %v4841, %v4834
    %v5528 = vpack.c.b16 %v4842, %v4835
    %v5529 = vpack.c.b16 %v4843, %v4836
    %v5530 = vpack.c.b16 %v4844, %v4837
    %v5531 = vpack.c.b16 %v4845, %v4838
    %v5532 = vpack.c.b16 %v4853, %v4846
    %v5533 = vpack.c.b16 %v4854, %v4847
    %v5534 = vpack.c.b16 %v4855, %v4848
    %v5535 = vpack.c.b16 %v4856, %v4849
    %v5536 = vpack.c.b16 %v4857, %v4850
    %v5537 = vpack.c.b16 %v4858, %v4851
    %v5538 = vpack.c.b16 %v4859, %v4852
    %v5539 = vpack.c.b16 %v4867, %v4860
    %v5540 = vpack.c.b16 %v4868, %v4861
    %v5541 = vpack.c.b16 %v4869, %v4862
    %v5542 = vpack.c.b16 %v4870, %v4863
    %v5543 = vpack.c.b16 %v4871, %v4864
    %v5544 = vpack.c.b16 %v4872, %v4865
    %v5545 = vpack.c.b16 %v4873, %v4866
    %v5546 = vpack.c.b16 %v4881, %v4874
    %v5547 = vpack.c.b16 %v4882, %v4875
    %v5548 = vpack.c.b16 %v4883, %v4876
    %v5549 = vpack.c.b16 %v4884, %v4877
    %v5550 = vpack.c.b16 %v4885, %v4878
    %v5551 = vpack.c.b16 %v4886, %v4879
    %v5552 = vpack.c.b16 %v4887, %v4880
    %v5553 = vpack.c.b16 %v4895, %v4888
    %v5554 = vpack.c.b16 %v4896, %v4889
    %v5555 = vpack.c.b16 %v4897, %v4890
    %v5556 = vpack.c.b16 %v4898, %v4891
    %v5557 = vpack.c.b16 %v4899, %v4892
    %v5558 = vpack.c.b16 %v4900, %v4893
    %v5559 = vpack.c.b16 %v4901, %v4894
    %v5560 = vpack.c.b16 %v4909, %v4902
    %v5561 = vpack.c.b16 %v4910, %v4903
    %v5562 = vpack.c.b16 %v4911, %v4904
    %v5563 = vpack.c.b16 %v4912, %v4905
    %v5564 = vpack.c.b16 %v4913, %v4906
    %v5565 = vpack.c.b16 %v4914, %v4907
    %v5566 = vpack.c.b16 %v4915, %v4908
    %v5567 = vpack.c.b16 %v4923, %v4916
    %v5568 = vpack.c.b16 %v4924, %v4917
    %v5569 = vpack.c.b16 %v4925, %v4918
    %v5570 = vpack.c.b16 %v4926, %v4919
    %v5571 = vpack.c.b16 %v4927, %v4920
    %v5572 = vpack.c.b16 %v4928, %v4921
    %v5573 = vpack.c.b16 %v4929, %v4922
    %v5574 = vpack.c.b16 %v4937, %v4930
    %v5575 = vpack.c.b16 %v4938, %v4931
    %v5576 = vpack.c.b16 %v4939, %v4932
    %v5577 = vpack.c.b16 %v4940, %v4933
    %v5578 = vpack.c.b16 %v4941, %v4934
    %v5579 = vpack.c.b16 %v4942, %v4935
    %v5580 = vpack.c.b16 %v4943, %v4936
    %v5581 = vpack.c.b16 %v4951, %v4944
    %v5582 = vpack.c.b16 %v4952, %v4945
    %v5583 = vpack.c.b16 %v4953, %v4946
    %v5584 = vpack.c.b16 %v4954, %v4947
    %v5585 = vpack.c.b16 %v4955, %v4948
    %v5586 = vpack.c.b16 %v4956, %v4949
    %v5587 = vpack.c.b16 %v4957, %v4950
    %v5588 = vpack.c.b16 %v4965, %v4958
    %v5589 = vpack.c.b16 %v4966, %v4959
    %v5590 = vpack.c.b16 %v4967, %v4960
    %v5591 = vpack.c.b16 %v4968, %v4961
    %v5592 = vpack.c.b16 %v4969, %v4962
    %v5593 = vpack.c.b16 %v4970, %v4963
    %v5594 = vpack.c.b16 %v4971, %v4964
    %v5595 = vpack.c.b16 %v4979, %v4972
    %v5596 = vpack.c.b16 %v4980, %v4973
    %v5597 = vpack.c.b16 %v4981, %v4974
    %v5598 = vpack.c.b16 %v4982, %v4975
    %v5599 = vpack.c.b16 %v4983, %v4976
    %v5600 = vpack.c.b16 %v4984, %v4977
    %v5601 = vpack.c.b16 %v4985, %v4978
    %v5602 = vpack.c.b16 %v4993, %v4986
    %v5603 = vpack.c.b16 %v4994, %v4987
    %v5604 = vpack.c.b16 %v4995, %v4988
    %v5605 = vpack.c.b16 %v4996, %v4989
    %v5606 = vpack.c.b16 %v4997, %v4990
    %v5607 = vpack.c.b16 %v4998, %v4991
    %v5608 = vpack.c.b16 %v4999, %v4992
    %v5609 = vpack.c.b16 %v5007, %v5000
    %v5610 = vpack.c.b16 %v5008, %v5001
    %v5611 = vpack.c.b16 %v5009, %v5002
    %v5612 = vpack.c.b16 %v5010, %v5003
    %v5613 = vpack.c.b16 %v5011, %v5004
    %v5614 = vpack.c.b16 %v5012, %v5005
    %v5615 = vpack.c.b16 %v5013, %v5006
    %v5616 = vpack.c.b16 %v5021, %v5014
    %v5617 = vpack.c.b16 %v5022, %v5015
    %v5618 = vpack.c.b16 %v5023, %v5016
    %v5619 = vpack.c.b16 %v5024, %v5017
    %v5620 = vpack.c.b16 %v5025, %v5018
    %v5621 = vpack.c.b16 %v5026, %v5019
    %v5622 = vpack.c.b16 %v5027, %v5020
    %v5623 = vpack.c.b16 %v5035, %v5028
    %v5624 = vpack.c.b16 %v5036, %v5029
    %v5625 = vpack.c.b16 %v5037, %v5030
    %v5626 = vpack.c.b16 %v5038, %v5031
    %v5627 = vpack.c.b16 %v5039, %v5032
    %v5628 = vpack.c.b16 %v5040, %v5033
    %v5629 = vpack.c.b16 %v5041, %v5034
    %v5630 = vpack.c.b16 %v5049, %v5042
    %v5631 = vpack.c.b16 %v5050, %v5043
    %v5632 = vpack.c.b16 %v5051, %v5044
    %v5633 = vpack.c.b16 %v5052, %v5045
    %v5634 = vpack.c.b16 %v5053, %v5046
    %v5635 = vpack.c.b16 %v5054, %v5047
    %v5636 = vpack.c.b16 %v5055, %v5048
    %v5637 = vpack.c.b16 %v5063, %v5056
    %v5638 = vpack.c.b16 %v5064, %v5057
    %v5639 = vpack.c.b16 %v5065, %v5058
    %v5640 = vpack.c.b16 %v5066, %v5059
    %v5641 = vpack.c.b16 %v5067, %v5060
    %v5642 = vpack.c.b16 %v5068, %v5061
    %v5643 = vpack.c.b16 %v5069, %v5062
    %v5644 = vpack.c.b16 %v5077, %v5070
    %v5645 = vpack.c.b16 %v5078, %v5071
    %v5646 = vpack.c.b16 %v5079, %v5072
    %v5647 = vpack.c.b16 %v5080, %v5073
    %v5648 = vpack.c.b16 %v5081, %v5074
    %v5649 = vpack.c.b16 %v5082, %v5075
    %v5650 = vpack.c.b16 %v5083, %v5076
    %v5651 = vpack.c.b16 %v5091, %v5084
    %v5652 = vpack.c.b16 %v5092, %v5085
    %v5653 = vpack.c.b16 %v5093, %v5086
    %v5654 = vpack.c.b16 %v5094, %v5087
    %v5655 = vpack.c.b16 %v5095, %v5088
    %v5656 = vpack.c.b16 %v5096, %v5089
    %v5657 = vpack.c.b16 %v5097, %v5090
    %v5658 = vpack.c.b16 %v5105, %v5098
    %v5659 = vpack.c.b16 %v5106, %v5099
    %v5660 = vpack.c.b16 %v5107, %v5100
    %v5661 = vpack.c.b16 %v5108, %v5101
    %v5662 = vpack.c.b16 %v5109, %v5102
    %v5663 = vpack.c.b16 %v5110, %v5103
    %v5664 = vpack.c.b16 %v5111, %v5104
    %v5665 = vpack.c.b16 %v5119, %v5112
    %v5666 = vpack.c.b16 %v5120, %v5113
    %v5667 = vpack.c.b16 %v5121, %v5114
    %v5668 = vpack.c.b16 %v5122, %v5115
    %v5669 = vpack.c.b16 %v5123, %v5116
    %v5670 = vpack.c.b16 %v5124, %v5117
    %v5671 = vpack.c.b16 %v5125, %v5118
    %v5672 = vpack.c.b16 %v5133, %v5126
    %v5673 = vpack.c.b16 %v5134, %v5127
    %v5674 = vpack.c.b16 %v5135, %v5128
    %v5675 = vpack.c.b16 %v5136, %v5129
    %v5676 = vpack.c.b16 %v5137, %v5130
    %v5677 = vpack.c.b16 %v5138, %v5131
    %v5678 = vpack.c.b16 %v5139, %v5132
    %v5679 = vpack.c.b16 %v5147, %v5140
    %v5680 = vpack.c.b16 %v5148, %v5141
    %v5681 = vpack.c.b16 %v5149, %v5142
    %v5682 = vpack.c.b16 %v5150, %v5143
    %v5683 = vpack.c.b16 %v5151, %v5144
    %v5684 = vpack.c.b16 %v5152, %v5145
    %v5685 = vpack.c.b16 %v5153, %v5146
    %v5686 = vpack.c.b16 %v5161, %v5154
    %v5687 = vpack.c.b16 %v5162, %v5155
    %v5688 = vpack.c.b16 %v5163, %v5156
    %v5689 = vpack.c.b16 %v5164, %v5157
    %v5690 = vpack.c.b16 %v5165, %v5158
    %v5691 = vpack.c.b16 %v5166, %v5159
    %v5692 = vpack.c.b16 %v5167, %v5160
    %v5693 = vpack.c.b16 %v5175, %v5168
    %v5694 = vpack.c.b16 %v5176, %v5169
    %v5695 = vpack.c.b16 %v5177, %v5170
    %v5696 = vpack.c.b16 %v5178, %v5171
    %v5697 = vpack.c.b16 %v5179, %v5172
    %v5698 = vpack.c.b16 %v5180, %v5173
    %v5699 = vpack.c.b16 %v5181, %v5174
    %v5700 = vpack.c.b16 %v5189, %v5182
    %v5701 = vpack.c.b16 %v5190, %v5183
    %v5702 = vpack.c.b16 %v5191, %v5184
    %v5703 = vpack.c.b16 %v5192, %v5185
    %v5704 = vpack.c.b16 %v5193, %v5186
    %v5705 = vpack.c.b16 %v5194, %v5187
    %v5706 = vpack.c.b16 %v5195, %v5188
    %v5707 = vpack.c.b16 %v5203, %v5196
    %v5708 = vpack.c.b16 %v5204, %v5197
    %v5709 = vpack.c.b16 %v5205, %v5198
    %v5710 = vpack.c.b16 %v5206, %v5199
    %v5711 = vpack.c.b16 %v5207, %v5200
    %v5712 = vpack.c.b16 %v5208, %v5201
    %v5713 = vpack.c.b16 %v5209, %v5202
    %v5714 = vpack.c.b16 %v5217, %v5210
    %v5715 = vpack.c.b16 %v5218, %v5211
    %v5716 = vpack.c.b16 %v5219, %v5212
    %v5717 = vpack.c.b16 %v5220, %v5213
    %v5718 = vpack.c.b16 %v5221, %v5214
    %v5719 = vpack.c.b16 %v5222, %v5215
    %v5720 = vpack.c.b16 %v5223, %v5216
    %v5721 = vpack.c.b16 %v5231, %v5224
    %v5722 = vpack.c.b16 %v5232, %v5225
    %v5723 = vpack.c.b16 %v5233, %v5226
    %v5724 = vpack.c.b16 %v5234, %v5227
    %v5725 = vpack.c.b16 %v5235, %v5228
    %v5726 = vpack.c.b16 %v5236, %v5229
    %v5727 = vpack.c.b16 %v5237, %v5230
    %v5728 = vpack.c.b16 %v5245, %v5238
    %v5729 = vpack.c.b16 %v5246, %v5239
    %v5730 = vpack.c.b16 %v5247, %v5240
    %v5731 = vpack.c.b16 %v5248, %v5241
    %v5732 = vpack.c.b16 %v5249, %v5242
    %v5733 = vpack.c.b16 %v5250, %v5243
    %v5734 = vpack.c.b16 %v5251, %v5244
    %v5735 = vpack.c.b16 %v5259, %v5252
    %v5736 = vpack.c.b16 %v5260, %v5253
    %v5737 = vpack.c.b16 %v5261, %v5254
    %v5738 = vpack.c.b16 %v5262, %v5255
    %v5739 = vpack.c.b16 %v5263, %v5256
    %v5740 = vpack.c.b16 %v5264, %v5257
    %v5741 = vpack.c.b16 %v5265, %v5258
    %v5742 = vpack.c.b16 %v5273, %v5266
    %v5743 = vpack.c.b16 %v5274, %v5267
    %v5744 = vpack.c.b16 %v5275, %v5268
    %v5745 = vpack.c.b16 %v5276, %v5269
    %v5746 = vpack.c.b16 %v5277, %v5270
    %v5747 = vpack.c.b16 %v5278, %v5271
    %v5748 = vpack.c.b16 %v5279, %v5272
    %v5749 = vpack.c.b16 %v5287, %v5280
    %v5750 = vpack.c.b16 %v5288, %v5281
    %v5751 = vpack.c.b16 %v5289, %v5282
    %v5752 = vpack.c.b16 %v5290, %v5283
    %v5753 = vpack.c.b16 %v5291, %v5284
    %v5754 = vpack.c.b16 %v5292, %v5285
    %v5755 = vpack.c.b16 %v5293, %v5286
    %v5756 = vpack.c.b16 %v5301, %v5294
    %v5757 = vpack.c.b16 %v5302, %v5295
    %v5758 = vpack.c.b16 %v5303, %v5296
    %v5759 = vpack.c.b16 %v5304, %v5297
    %v5760 = vpack.c.b16 %v5305, %v5298
    %v5761 = vpack.c.b16 %v5306, %v5299
    %v5762 = vpack.c.b16 %v5307, %v5300
    %v5763 = vpack.c.b16 %v5315, %v5308
    %v5764 = vpack.c.b16 %v5316, %v5309
    %v5765 = vpack.c.b16 %v5317, %v5310
    %v5766 = vpack.c.b16 %v5318, %v5311
    %v5767 = vpack.c.b16 %v5319, %v5312
    %v5768 = vpack.c.b16 %v5320, %v5313
    %v5769 = vpack.c.b16 %v5321, %v5314
    %6218 = vmatprep.subr.bf16.mxu0 %v5323
    %6219 = vmatpush1.bf16.msra.mxu0 %v5322
    %6220 = vmatprep.subr.bf16.mxu0 %v5330
    %6221 = vmatpush1.bf16.msra.mxu0 %v5329
    %6222 = vmatprep.subr.bf16.mxu0 %v5337
    %6223 = vmatpush1.bf16.msra.mxu0 %v5336
    %6224 = vmatprep.subr.bf16.mxu0 %v5344
    %6225 = vmatpush1.bf16.msra.mxu0 %v5343
    %6226 = vmatprep.subr.bf16.mxu0 %v5351
    %6227 = vmatpush1.bf16.msra.mxu0 %v5350
    %6228 = vmatprep.subr.bf16.mxu0 %v5358
    %6229 = vmatpush1.bf16.msra.mxu0 %v5357
    %6230 = vmatprep.subr.bf16.mxu0 %v5365
    %6231 = vmatpush1.bf16.msra.mxu0 %v5364
    %6232 = vmatprep.subr.bf16.mxu0 %v5372
    %6233 = vmatpush1.bf16.msra.mxu0 %v5371
    %6234 = vmatprep.subr.bf16.mxu0 %v5379
    %6235 = vmatpush1.bf16.msra.mxu0 %v5378
    %6236 = vmatprep.subr.bf16.mxu0 %v5386
    %6237 = vmatpush1.bf16.msra.mxu0 %v5385
    %6238 = vmatprep.subr.bf16.mxu0 %v5393
    %6239 = vmatpush1.bf16.msra.mxu0 %v5392
    %6240 = vmatprep.subr.bf16.mxu0 %v5400
    %6241 = vmatpush1.bf16.msra.mxu0 %v5399
    %6242 = vmatprep.subr.bf16.mxu0 %v5407
    %6243 = vmatpush1.bf16.msra.mxu0 %v5406
    %6244 = vmatprep.subr.bf16.mxu0 %v5414
    %6245 = vmatpush1.bf16.msra.mxu0 %v5413
    %6246 = vmatprep.subr.bf16.mxu0 %v5421
    %6247 = vmatpush1.bf16.msra.mxu0 %v5420
    %6248 = vmatprep.subr.bf16.mxu0 %v5428
    %6249 = vmatpush1.bf16.msra.mxu0 %v5427
    %6250 = vmatprep.mubr.bf16.mxu0 %v3359
    %6251 = vmatmul.mubr.bf16.gmra.mrb[0].mxu0 %v3358
    %v6252 = vpop.f32.mrb[0].mxu0
    %v6253 = vadd.f32 %v3882, %v6252
    %v6254 = vpop.f32.mrb[0].mxu0
    %v6255 = vadd.f32 %v3886, %v6254
    %v6256 = vpop.f32.mrb[0].mxu0
    %v6257 = vpop.f32.mrb[0].mxu0
    %6258 = vdwg.mxu0
    %6259 = vmatprep.subr.bf16.mxu0 %v5435
    %6260 = vmatpush1.bf16.msra.mxu0 %v5434
    %6261 = vmatprep.subr.bf16.mxu0 %v5442
    %6262 = vmatpush1.bf16.msra.mxu0 %v5441
    %6263 = vmatprep.subr.bf16.mxu0 %v5449
    %6264 = vmatpush1.bf16.msra.mxu0 %v5448
    %6265 = vmatprep.subr.bf16.mxu0 %v5456
    %6266 = vmatpush1.bf16.msra.mxu0 %v5455
    %6267 = vmatprep.subr.bf16.mxu0 %v5463
    %6268 = vmatpush1.bf16.msra.mxu0 %v5462
    %6269 = vmatprep.subr.bf16.mxu0 %v5470
    %6270 = vmatpush1.bf16.msra.mxu0 %v5469
    %6271 = vmatprep.subr.bf16.mxu0 %v5477
    %6272 = vmatpush1.bf16.msra.mxu0 %v5476
    %6273 = vmatprep.subr.bf16.mxu0 %v5484
    %6274 = vmatpush1.bf16.msra.mxu0 %v5483
    %6275 = vmatprep.subr.bf16.mxu0 %v5491
    %6276 = vmatpush1.bf16.msra.mxu0 %v5490
    %6277 = vmatprep.subr.bf16.mxu0 %v5498
    %6278 = vmatpush1.bf16.msra.mxu0 %v5497
    %6279 = vmatprep.subr.bf16.mxu0 %v5505
    %6280 = vmatpush1.bf16.msra.mxu0 %v5504
    %6281 = vmatprep.subr.bf16.mxu0 %v5512
    %6282 = vmatpush1.bf16.msra.mxu0 %v5511
    %6283 = vmatprep.subr.bf16.mxu0 %v5519
    %6284 = vmatpush1.bf16.msra.mxu0 %v5518
    %6285 = vmatprep.subr.bf16.mxu0 %v5526
    %6286 = vmatpush1.bf16.msra.mxu0 %v5525
    %6287 = vmatprep.subr.bf16.mxu0 %v5533
    %6288 = vmatpush1.bf16.msra.mxu0 %v5532
    %6289 = vmatprep.subr.bf16.mxu0 %v5540
    %6290 = vmatpush1.bf16.msra.mxu0 %v5539
    %6291 = vmatprep.mubr.bf16.mxu0 %v3361
    %6292 = vmatmul.mubr.bf16.gmra.mrb[0].mxu0 %v3360
    %v6293 = vpop.f32.mrb[0].mxu0
    %v6294 = vadd.f32 %v6253, %v6293
    %v6295 = vpop.f32.mrb[0].mxu0
    %v6296 = vadd.f32 %v6255, %v6295
    %v6297 = vpop.f32.mrb[0].mxu0
    %v6298 = vpop.f32.mrb[0].mxu0
    %6299 = vdwg.mxu0
    %6300 = vmatprep.subr.bf16.mxu0 %v5547
    %6301 = vmatpush1.bf16.msra.mxu0 %v5546
    %6302 = vmatprep.subr.bf16.mxu0 %v5554
    %6303 = vmatpush1.bf16.msra.mxu0 %v5553
    %6304 = vmatprep.subr.bf16.mxu0 %v5561
    %6305 = vmatpush1.bf16.msra.mxu0 %v5560
    %6306 = vmatprep.subr.bf16.mxu0 %v5568
    %6307 = vmatpush1.bf16.msra.mxu0 %v5567
    %6308 = vmatprep.subr.bf16.mxu0 %v5575
    %6309 = vmatpush1.bf16.msra.mxu0 %v5574
    %6310 = vmatprep.subr.bf16.mxu0 %v5582
    %6311 = vmatpush1.bf16.msra.mxu0 %v5581
    %6312 = vmatprep.subr.bf16.mxu0 %v5589
    %6313 = vmatpush1.bf16.msra.mxu0 %v5588
    %6314 = vmatprep.subr.bf16.mxu0 %v5596
    %6315 = vmatpush1.bf16.msra.mxu0 %v5595
    %6316 = vmatprep.subr.bf16.mxu0 %v5603
    %6317 = vmatpush1.bf16.msra.mxu0 %v5602
    %6318 = vmatprep.subr.bf16.mxu0 %v5610
    %6319 = vmatpush1.bf16.msra.mxu0 %v5609
    %6320 = vmatprep.subr.bf16.mxu0 %v5617
    %6321 = vmatpush1.bf16.msra.mxu0 %v5616
    %6322 = vmatprep.subr.bf16.mxu0 %v5624
    %6323 = vmatpush1.bf16.msra.mxu0 %v5623
    %6324 = vmatprep.subr.bf16.mxu0 %v5631
    %6325 = vmatpush1.bf16.msra.mxu0 %v5630
    %6326 = vmatprep.subr.bf16.mxu0 %v5638
    %6327 = vmatpush1.bf16.msra.mxu0 %v5637
    %6328 = vmatprep.subr.bf16.mxu0 %v5645
    %6329 = vmatpush1.bf16.msra.mxu0 %v5644
    %6330 = vmatprep.subr.bf16.mxu0 %v5652
    %6331 = vmatpush1.bf16.msra.mxu0 %v5651
    %6332 = vmatprep.mubr.bf16.mxu0 %v3363
    %6333 = vmatmul.mubr.bf16.gmra.mrb[0].mxu0 %v3362
    %v6334 = vpop.f32.mrb[0].mxu0
    %v6335 = vadd.f32 %v6294, %v6334
    %v6336 = vpop.f32.mrb[0].mxu0
    %v6337 = vadd.f32 %v6296, %v6336
    %v6338 = vpop.f32.mrb[0].mxu0
    %v6339 = vpop.f32.mrb[0].mxu0
    %6340 = vdwg.mxu0
    %6341 = vmatprep.subr.bf16.mxu0 %v5659
    %6342 = vmatpush1.bf16.msra.mxu0 %v5658
    %6343 = vmatprep.subr.bf16.mxu0 %v5666
    %6344 = vmatpush1.bf16.msra.mxu0 %v5665
    %6345 = vmatprep.subr.bf16.mxu0 %v5673
    %6346 = vmatpush1.bf16.msra.mxu0 %v5672
    %6347 = vmatprep.subr.bf16.mxu0 %v5680
    %6348 = vmatpush1.bf16.msra.mxu0 %v5679
    %6349 = vmatprep.subr.bf16.mxu0 %v5687
    %6350 = vmatpush1.bf16.msra.mxu0 %v5686
    %6351 = vmatprep.subr.bf16.mxu0 %v5694
    %6352 = vmatpush1.bf16.msra.mxu0 %v5693
    %6353 = vmatprep.subr.bf16.mxu0 %v5701
    %6354 = vmatpush1.bf16.msra.mxu0 %v5700
    %6355 = vmatprep.subr.bf16.mxu0 %v5708
    %6356 = vmatpush1.bf16.msra.mxu0 %v5707
    %6357 = vmatprep.subr.bf16.mxu0 %v5715
    %6358 = vmatpush1.bf16.msra.mxu0 %v5714
    %6359 = vmatprep.subr.bf16.mxu0 %v5722
    %6360 = vmatpush1.bf16.msra.mxu0 %v5721
    %6361 = vmatprep.subr.bf16.mxu0 %v5729
    %6362 = vmatpush1.bf16.msra.mxu0 %v5728
    %6363 = vmatprep.subr.bf16.mxu0 %v5736
    %6364 = vmatpush1.bf16.msra.mxu0 %v5735
    %6365 = vmatprep.subr.bf16.mxu0 %v5743
    %6366 = vmatpush1.bf16.msra.mxu0 %v5742
    %6367 = vmatprep.subr.bf16.mxu0 %v5750
    %6368 = vmatpush1.bf16.msra.mxu0 %v5749
    %6369 = vmatprep.subr.bf16.mxu0 %v5757
    %6370 = vmatpush1.bf16.msra.mxu0 %v5756
    %6371 = vmatprep.subr.bf16.mxu0 %v5764
    %6372 = vmatpush1.bf16.msra.mxu0 %v5763
    %6373 = vmatprep.mubr.bf16.mxu0 %v3365
    %6374 = vmatmul.mubr.bf16.gmra.mrb[0].mxu0 %v3364
    %v6375 = vpop.f32.mrb[0].mxu0
    %v6376 = vadd.f32 %v6335, %v6375
    %v6377 = vpop.f32.mrb[0].mxu0
    %v6378 = vadd.f32 %v6337, %v6377
    %v6379 = vpop.f32.mrb[0].mxu0
    %v6380 = vpop.f32.mrb[0].mxu0
    %6381 = vdwg.mxu0
    %6382 = vmatprep.subr.bf16.mxu0 %v5325
    %6383 = vmatpush1.bf16.msra.mxu0 %v5324
    %6384 = vmatprep.subr.bf16.mxu0 %v5332
    %6385 = vmatpush1.bf16.msra.mxu0 %v5331
    %6386 = vmatprep.subr.bf16.mxu0 %v5339
    %6387 = vmatpush1.bf16.msra.mxu0 %v5338
    %6388 = vmatprep.subr.bf16.mxu0 %v5346
    %6389 = vmatpush1.bf16.msra.mxu0 %v5345
    %6390 = vmatprep.subr.bf16.mxu0 %v5353
    %6391 = vmatpush1.bf16.msra.mxu0 %v5352
    %6392 = vmatprep.subr.bf16.mxu0 %v5360
    %6393 = vmatpush1.bf16.msra.mxu0 %v5359
    %6394 = vmatprep.subr.bf16.mxu0 %v5367
    %6395 = vmatpush1.bf16.msra.mxu0 %v5366
    %6396 = vmatprep.subr.bf16.mxu0 %v5374
    %6397 = vmatpush1.bf16.msra.mxu0 %v5373
    %6398 = vmatprep.subr.bf16.mxu0 %v5381
    %6399 = vmatpush1.bf16.msra.mxu0 %v5380
    %6400 = vmatprep.subr.bf16.mxu0 %v5388
    %6401 = vmatpush1.bf16.msra.mxu0 %v5387
    %6402 = vmatprep.subr.bf16.mxu0 %v5395
    %6403 = vmatpush1.bf16.msra.mxu0 %v5394
    %6404 = vmatprep.subr.bf16.mxu0 %v5402
    %6405 = vmatpush1.bf16.msra.mxu0 %v5401
    %6406 = vmatprep.subr.bf16.mxu0 %v5409
    %6407 = vmatpush1.bf16.msra.mxu0 %v5408
    %6408 = vmatprep.subr.bf16.mxu0 %v5416
    %6409 = vmatpush1.bf16.msra.mxu0 %v5415
    %6410 = vmatprep.subr.bf16.mxu0 %v5423
    %6411 = vmatpush1.bf16.msra.mxu0 %v5422
    %6412 = vmatprep.subr.bf16.mxu0 %v5430
    %6413 = vmatpush1.bf16.msra.mxu0 %v5429
    %6414 = vmatprep.mubr.bf16.mxu0 %v3359
    %6415 = vmatmul.mubr.bf16.gmra.mrb[0].mxu0 %v3358
    %v6416 = vpop.f32.mrb[0].mxu0
    %v6417 = vadd.f32 %v3890, %v6416
    %v6418 = vpop.f32.mrb[0].mxu0
    %v6419 = vadd.f32 %v3894, %v6418
    %v6420 = vpop.f32.mrb[0].mxu0
    %v6421 = vpop.f32.mrb[0].mxu0
    %6422 = vdwg.mxu0
    %6423 = vmatprep.subr.bf16.mxu0 %v5437
    %6424 = vmatpush1.bf16.msra.mxu0 %v5436
    %6425 = vmatprep.subr.bf16.mxu0 %v5444
    %6426 = vmatpush1.bf16.msra.mxu0 %v5443
    %6427 = vmatprep.subr.bf16.mxu0 %v5451
    %6428 = vmatpush1.bf16.msra.mxu0 %v5450
    %6429 = vmatprep.subr.bf16.mxu0 %v5458
    %6430 = vmatpush1.bf16.msra.mxu0 %v5457
    %6431 = vmatprep.subr.bf16.mxu0 %v5465
    %6432 = vmatpush1.bf16.msra.mxu0 %v5464
    %6433 = vmatprep.subr.bf16.mxu0 %v5472
    %6434 = vmatpush1.bf16.msra.mxu0 %v5471
    %6435 = vmatprep.subr.bf16.mxu0 %v5479
    %6436 = vmatpush1.bf16.msra.mxu0 %v5478
    %6437 = vmatprep.subr.bf16.mxu0 %v5486
    %6438 = vmatpush1.bf16.msra.mxu0 %v5485
    %6439 = vmatprep.subr.bf16.mxu0 %v5493
    %6440 = vmatpush1.bf16.msra.mxu0 %v5492
    %6441 = vmatprep.subr.bf16.mxu0 %v5500
    %6442 = vmatpush1.bf16.msra.mxu0 %v5499
    %6443 = vmatprep.subr.bf16.mxu0 %v5507
    %6444 = vmatpush1.bf16.msra.mxu0 %v5506
    %6445 = vmatprep.subr.bf16.mxu0 %v5514
    %6446 = vmatpush1.bf16.msra.mxu0 %v5513
    %6447 = vmatprep.subr.bf16.mxu0 %v5521
    %6448 = vmatpush1.bf16.msra.mxu0 %v5520
    %6449 = vmatprep.subr.bf16.mxu0 %v5528
    %6450 = vmatpush1.bf16.msra.mxu0 %v5527
    %6451 = vmatprep.subr.bf16.mxu0 %v5535
    %6452 = vmatpush1.bf16.msra.mxu0 %v5534
    %6453 = vmatprep.subr.bf16.mxu0 %v5542
    %6454 = vmatpush1.bf16.msra.mxu0 %v5541
    %6455 = vmatprep.mubr.bf16.mxu0 %v3361
    %6456 = vmatmul.mubr.bf16.gmra.mrb[0].mxu0 %v3360
    %v6457 = vpop.f32.mrb[0].mxu0
    %v6458 = vadd.f32 %v6417, %v6457
    %v6459 = vpop.f32.mrb[0].mxu0
    %v6460 = vadd.f32 %v6419, %v6459
    %v6461 = vpop.f32.mrb[0].mxu0
    %v6462 = vpop.f32.mrb[0].mxu0
    %6463 = vdwg.mxu0
    %6464 = vmatprep.subr.bf16.mxu0 %v5549
    %6465 = vmatpush1.bf16.msra.mxu0 %v5548
    %6466 = vmatprep.subr.bf16.mxu0 %v5556
    %6467 = vmatpush1.bf16.msra.mxu0 %v5555
    %6468 = vmatprep.subr.bf16.mxu0 %v5563
    %6469 = vmatpush1.bf16.msra.mxu0 %v5562
    %6470 = vmatprep.subr.bf16.mxu0 %v5570
    %6471 = vmatpush1.bf16.msra.mxu0 %v5569
    %6472 = vmatprep.subr.bf16.mxu0 %v5577
    %6473 = vmatpush1.bf16.msra.mxu0 %v5576
    %6474 = vmatprep.subr.bf16.mxu0 %v5584
    %6475 = vmatpush1.bf16.msra.mxu0 %v5583
    %6476 = vmatprep.subr.bf16.mxu0 %v5591
    %6477 = vmatpush1.bf16.msra.mxu0 %v5590
    %6478 = vmatprep.subr.bf16.mxu0 %v5598
    %6479 = vmatpush1.bf16.msra.mxu0 %v5597
    %6480 = vmatprep.subr.bf16.mxu0 %v5605
    %6481 = vmatpush1.bf16.msra.mxu0 %v5604
    %6482 = vmatprep.subr.bf16.mxu0 %v5612
    %6483 = vmatpush1.bf16.msra.mxu0 %v5611
    %6484 = vmatprep.subr.bf16.mxu0 %v5619
    %6485 = vmatpush1.bf16.msra.mxu0 %v5618
    %6486 = vmatprep.subr.bf16.mxu0 %v5626
    %6487 = vmatpush1.bf16.msra.mxu0 %v5625
    %6488 = vmatprep.subr.bf16.mxu0 %v5633
    %6489 = vmatpush1.bf16.msra.mxu0 %v5632
    %6490 = vmatprep.subr.bf16.mxu0 %v5640
    %6491 = vmatpush1.bf16.msra.mxu0 %v5639
    %6492 = vmatprep.subr.bf16.mxu0 %v5647
    %6493 = vmatpush1.bf16.msra.mxu0 %v5646
    %6494 = vmatprep.subr.bf16.mxu0 %v5654
    %6495 = vmatpush1.bf16.msra.mxu0 %v5653
    %6496 = vmatprep.mubr.bf16.mxu0 %v3363
    %6497 = vmatmul.mubr.bf16.gmra.mrb[0].mxu0 %v3362
    %v6498 = vpop.f32.mrb[0].mxu0
    %v6499 = vadd.f32 %v6458, %v6498
    %v6500 = vpop.f32.mrb[0].mxu0
    %v6501 = vadd.f32 %v6460, %v6500
    %v6502 = vpop.f32.mrb[0].mxu0
    %v6503 = vpop.f32.mrb[0].mxu0
    %6504 = vdwg.mxu0
    %6505 = vmatprep.subr.bf16.mxu0 %v5661
    %6506 = vmatpush1.bf16.msra.mxu0 %v5660
    %6507 = vmatprep.subr.bf16.mxu0 %v5668
    %6508 = vmatpush1.bf16.msra.mxu0 %v5667
    %6509 = vmatprep.subr.bf16.mxu0 %v5675
    %6510 = vmatpush1.bf16.msra.mxu0 %v5674
    %6511 = vmatprep.subr.bf16.mxu0 %v5682
    %6512 = vmatpush1.bf16.msra.mxu0 %v5681
    %6513 = vmatprep.subr.bf16.mxu0 %v5689
    %6514 = vmatpush1.bf16.msra.mxu0 %v5688
    %6515 = vmatprep.subr.bf16.mxu0 %v5696
    %6516 = vmatpush1.bf16.msra.mxu0 %v5695
    %6517 = vmatprep.subr.bf16.mxu0 %v5703
    %6518 = vmatpush1.bf16.msra.mxu0 %v5702
    %6519 = vmatprep.subr.bf16.mxu0 %v5710
    %6520 = vmatpush1.bf16.msra.mxu0 %v5709
    %6521 = vmatprep.subr.bf16.mxu0 %v5717
    %6522 = vmatpush1.bf16.msra.mxu0 %v5716
    %6523 = vmatprep.subr.bf16.mxu0 %v5724
    %6524 = vmatpush1.bf16.msra.mxu0 %v5723
    %6525 = vmatprep.subr.bf16.mxu0 %v5731
    %6526 = vmatpush1.bf16.msra.mxu0 %v5730
    %6527 = vmatprep.subr.bf16.mxu0 %v5738
    %6528 = vmatpush1.bf16.msra.mxu0 %v5737
    %6529 = vmatprep.subr.bf16.mxu0 %v5745
    %6530 = vmatpush1.bf16.msra.mxu0 %v5744
    %6531 = vmatprep.subr.bf16.mxu0 %v5752
    %6532 = vmatpush1.bf16.msra.mxu0 %v5751
    %6533 = vmatprep.subr.bf16.mxu0 %v5759
    %6534 = vmatpush1.bf16.msra.mxu0 %v5758
    %6535 = vmatprep.subr.bf16.mxu0 %v5766
    %6536 = vmatpush1.bf16.msra.mxu0 %v5765
    %6537 = vmatprep.mubr.bf16.mxu0 %v3365
    %6538 = vmatmul.mubr.bf16.gmra.mrb[0].mxu0 %v3364
    %v6539 = vpop.f32.mrb[0].mxu0
    %v6540 = vadd.f32 %v6499, %v6539
    %v6541 = vpop.f32.mrb[0].mxu0
    %v6542 = vadd.f32 %v6501, %v6541
    %v6543 = vpop.f32.mrb[0].mxu0
    %v6544 = vpop.f32.mrb[0].mxu0
    %6545 = vdwg.mxu0
    %6546 = vmatprep.subr.bf16.mxu0 %v5327
    %6547 = vmatpush1.bf16.msra.mxu0 %v5326
    %6548 = vmatprep.subr.bf16.mxu0 %v5334
    %6549 = vmatpush1.bf16.msra.mxu0 %v5333
    %6550 = vmatprep.subr.bf16.mxu0 %v5341
    %6551 = vmatpush1.bf16.msra.mxu0 %v5340
    %6552 = vmatprep.subr.bf16.mxu0 %v5348
    %6553 = vmatpush1.bf16.msra.mxu0 %v5347
    %6554 = vmatprep.subr.bf16.mxu0 %v5355
    %6555 = vmatpush1.bf16.msra.mxu0 %v5354
    %6556 = vmatprep.subr.bf16.mxu0 %v5362
    %6557 = vmatpush1.bf16.msra.mxu0 %v5361
    %6558 = vmatprep.subr.bf16.mxu0 %v5369
    %6559 = vmatpush1.bf16.msra.mxu0 %v5368
    %6560 = vmatprep.subr.bf16.mxu0 %v5376
    %6561 = vmatpush1.bf16.msra.mxu0 %v5375
    %6562 = vmatprep.subr.bf16.mxu0 %v5383
    %6563 = vmatpush1.bf16.msra.mxu0 %v5382
    %6564 = vmatprep.subr.bf16.mxu0 %v5390
    %6565 = vmatpush1.bf16.msra.mxu0 %v5389
    %6566 = vmatprep.subr.bf16.mxu0 %v5397
    %6567 = vmatpush1.bf16.msra.mxu0 %v5396
    %6568 = vmatprep.subr.bf16.mxu0 %v5404
    %6569 = vmatpush1.bf16.msra.mxu0 %v5403
    %6570 = vmatprep.subr.bf16.mxu0 %v5411
    %6571 = vmatpush1.bf16.msra.mxu0 %v5410
    %6572 = vmatprep.subr.bf16.mxu0 %v5418
    %6573 = vmatpush1.bf16.msra.mxu0 %v5417
    %6574 = vmatprep.subr.bf16.mxu0 %v5425
    %6575 = vmatpush1.bf16.msra.mxu0 %v5424
    %6576 = vmatprep.subr.bf16.mxu0 %v5432
    %6577 = vmatpush1.bf16.msra.mxu0 %v5431
    %6578 = vmatprep.mubr.bf16.mxu0 %v3359
    %6579 = vmatmul.mubr.bf16.gmra.mrb[0].mxu0 %v3358
    %v6580 = vpop.f32.mrb[0].mxu0
    %v6581 = vadd.f32 %v3898, %v6580
    %v6582 = vpop.f32.mrb[0].mxu0
    %v6583 = vadd.f32 %v3902, %v6582
    %v6584 = vpop.f32.mrb[0].mxu0
    %v6585 = vpop.f32.mrb[0].mxu0
    %6586 = vdwg.mxu0
    %6587 = vmatprep.subr.bf16.mxu0 %v5439
    %6588 = vmatpush1.bf16.msra.mxu0 %v5438
    %6589 = vmatprep.subr.bf16.mxu0 %v5446
    %6590 = vmatpush1.bf16.msra.mxu0 %v5445
    %6591 = vmatprep.subr.bf16.mxu0 %v5453
    %6592 = vmatpush1.bf16.msra.mxu0 %v5452
    %6593 = vmatprep.subr.bf16.mxu0 %v5460
    %6594 = vmatpush1.bf16.msra.mxu0 %v5459
    %6595 = vmatprep.subr.bf16.mxu0 %v5467
    %6596 = vmatpush1.bf16.msra.mxu0 %v5466
    %6597 = vmatprep.subr.bf16.mxu0 %v5474
    %6598 = vmatpush1.bf16.msra.mxu0 %v5473
    %6599 = vmatprep.subr.bf16.mxu0 %v5481
    %6600 = vmatpush1.bf16.msra.mxu0 %v5480
    %6601 = vmatprep.subr.bf16.mxu0 %v5488
    %6602 = vmatpush1.bf16.msra.mxu0 %v5487
    %6603 = vmatprep.subr.bf16.mxu0 %v5495
    %6604 = vmatpush1.bf16.msra.mxu0 %v5494
    %6605 = vmatprep.subr.bf16.mxu0 %v5502
    %6606 = vmatpush1.bf16.msra.mxu0 %v5501
    %6607 = vmatprep.subr.bf16.mxu0 %v5509
    %6608 = vmatpush1.bf16.msra.mxu0 %v5508
    %6609 = vmatprep.subr.bf16.mxu0 %v5516
    %6610 = vmatpush1.bf16.msra.mxu0 %v5515
    %6611 = vmatprep.subr.bf16.mxu0 %v5523
    %6612 = vmatpush1.bf16.msra.mxu0 %v5522
    %6613 = vmatprep.subr.bf16.mxu0 %v5530
    %6614 = vmatpush1.bf16.msra.mxu0 %v5529
    %6615 = vmatprep.subr.bf16.mxu0 %v5537
    %6616 = vmatpush1.bf16.msra.mxu0 %v5536
    %6617 = vmatprep.subr.bf16.mxu0 %v5544
    %6618 = vmatpush1.bf16.msra.mxu0 %v5543
    %6619 = vmatprep.mubr.bf16.mxu0 %v3361
    %6620 = vmatmul.mubr.bf16.gmra.mrb[0].mxu0 %v3360
    %v6621 = vpop.f32.mrb[0].mxu0
    %v6622 = vadd.f32 %v6581, %v6621
    %v6623 = vpop.f32.mrb[0].mxu0
    %v6624 = vadd.f32 %v6583, %v6623
    %v6625 = vpop.f32.mrb[0].mxu0
    %v6626 = vpop.f32.mrb[0].mxu0
    %6627 = vdwg.mxu0
    %6628 = vmatprep.subr.bf16.mxu0 %v5551
    %6629 = vmatpush1.bf16.msra.mxu0 %v5550
    %6630 = vmatprep.subr.bf16.mxu0 %v5558
    %6631 = vmatpush1.bf16.msra.mxu0 %v5557
    %6632 = vmatprep.subr.bf16.mxu0 %v5565
    %6633 = vmatpush1.bf16.msra.mxu0 %v5564
    %6634 = vmatprep.subr.bf16.mxu0 %v5572
    %6635 = vmatpush1.bf16.msra.mxu0 %v5571
    %6636 = vmatprep.subr.bf16.mxu0 %v5579
    %6637 = vmatpush1.bf16.msra.mxu0 %v5578
    %6638 = vmatprep.subr.bf16.mxu0 %v5586
    %6639 = vmatpush1.bf16.msra.mxu0 %v5585
    %6640 = vmatprep.subr.bf16.mxu0 %v5593
    %6641 = vmatpush1.bf16.msra.mxu0 %v5592
    %6642 = vmatprep.subr.bf16.mxu0 %v5600
    %6643 = vmatpush1.bf16.msra.mxu0 %v5599
    %6644 = vmatprep.subr.bf16.mxu0 %v5607
    %6645 = vmatpush1.bf16.msra.mxu0 %v5606
    %6646 = vmatprep.subr.bf16.mxu0 %v5614
    %6647 = vmatpush1.bf16.msra.mxu0 %v5613
    %6648 = vmatprep.subr.bf16.mxu0 %v5621
    %6649 = vmatpush1.bf16.msra.mxu0 %v5620
    %6650 = vmatprep.subr.bf16.mxu0 %v5628
    %6651 = vmatpush1.bf16.msra.mxu0 %v5627
    %6652 = vmatprep.subr.bf16.mxu0 %v5635
    %6653 = vmatpush1.bf16.msra.mxu0 %v5634
    %6654 = vmatprep.subr.bf16.mxu0 %v5642
    %6655 = vmatpush1.bf16.msra.mxu0 %v5641
    %6656 = vmatprep.subr.bf16.mxu0 %v5649
    %6657 = vmatpush1.bf16.msra.mxu0 %v5648
    %6658 = vmatprep.subr.bf16.mxu0 %v5656
    %6659 = vmatpush1.bf16.msra.mxu0 %v5655
    %6660 = vmatprep.mubr.bf16.mxu0 %v3363
    %6661 = vmatmul.mubr.bf16.gmra.mrb[0].mxu0 %v3362
    %v6662 = vpop.f32.mrb[0].mxu0
    %v6663 = vadd.f32 %v6622, %v6662
    %v6664 = vpop.f32.mrb[0].mxu0
    %v6665 = vadd.f32 %v6624, %v6664
    %v6666 = vpop.f32.mrb[0].mxu0
    %v6667 = vpop.f32.mrb[0].mxu0
    %6668 = vdwg.mxu0
    %6669 = vmatprep.subr.bf16.mxu0 %v5663
    %6670 = vmatpush1.bf16.msra.mxu0 %v5662
    %6671 = vmatprep.subr.bf16.mxu0 %v5670
    %6672 = vmatpush1.bf16.msra.mxu0 %v5669
    %6673 = vmatprep.subr.bf16.mxu0 %v5677
    %6674 = vmatpush1.bf16.msra.mxu0 %v5676
    %6675 = vmatprep.subr.bf16.mxu0 %v5684
    %6676 = vmatpush1.bf16.msra.mxu0 %v5683
    %6677 = vmatprep.subr.bf16.mxu0 %v5691
    %6678 = vmatpush1.bf16.msra.mxu0 %v5690
    %6679 = vmatprep.subr.bf16.mxu0 %v5698
    %6680 = vmatpush1.bf16.msra.mxu0 %v5697
    %6681 = vmatprep.subr.bf16.mxu0 %v5705
    %6682 = vmatpush1.bf16.msra.mxu0 %v5704
    %6683 = vmatprep.subr.bf16.mxu0 %v5712
    %6684 = vmatpush1.bf16.msra.mxu0 %v5711
    %6685 = vmatprep.subr.bf16.mxu0 %v5719
    %6686 = vmatpush1.bf16.msra.mxu0 %v5718
    %6687 = vmatprep.subr.bf16.mxu0 %v5726
    %6688 = vmatpush1.bf16.msra.mxu0 %v5725
    %6689 = vmatprep.subr.bf16.mxu0 %v5733
    %6690 = vmatpush1.bf16.msra.mxu0 %v5732
    %6691 = vmatprep.subr.bf16.mxu0 %v5740
    %6692 = vmatpush1.bf16.msra.mxu0 %v5739
    %6693 = vmatprep.subr.bf16.mxu0 %v5747
    %6694 = vmatpush1.bf16.msra.mxu0 %v5746
    %6695 = vmatprep.subr.bf16.mxu0 %v5754
    %6696 = vmatpush1.bf16.msra.mxu0 %v5753
    %6697 = vmatprep.subr.bf16.mxu0 %v5761
    %6698 = vmatpush1.bf16.msra.mxu0 %v5760
    %6699 = vmatprep.subr.bf16.mxu0 %v5768
    %6700 = vmatpush1.bf16.msra.mxu0 %v5767
    %6701 = vmatprep.mubr.bf16.mxu0 %v3365
    %6702 = vmatmul.mubr.bf16.gmra.mrb[0].mxu0 %v3364
    %v6703 = vpop.f32.mrb[0].mxu0
    %v6704 = vadd.f32 %v6663, %v6703
    %v6705 = vpop.f32.mrb[0].mxu0
    %v6706 = vadd.f32 %v6665, %v6705
    %v6707 = vpop.f32.mrb[0].mxu0
    %v6708 = vpop.f32.mrb[0].mxu0
    %6709 = vdwg.mxu0
    %6710 = vmatprep.subr.bf16.mxu0 0
    %6711 = vmatpush1.bf16.msra.mxu0 %v5328
    %6712 = vmatprep.subr.bf16.mxu0 0
    %6713 = vmatpush1.bf16.msra.mxu0 %v5335
    %6714 = vmatprep.subr.bf16.mxu0 0
    %6715 = vmatpush1.bf16.msra.mxu0 %v5342
    %6716 = vmatprep.subr.bf16.mxu0 0
    %6717 = vmatpush1.bf16.msra.mxu0 %v5349
    %6718 = vmatprep.subr.bf16.mxu0 0
    %6719 = vmatpush1.bf16.msra.mxu0 %v5356
    %6720 = vmatprep.subr.bf16.mxu0 0
    %6721 = vmatpush1.bf16.msra.mxu0 %v5363
    %6722 = vmatprep.subr.bf16.mxu0 0
    %6723 = vmatpush1.bf16.msra.mxu0 %v5370
    %6724 = vmatprep.subr.bf16.mxu0 0
    %6725 = vmatpush1.bf16.msra.mxu0 %v5377
    %6726 = vmatprep.subr.bf16.mxu0 0
    %6727 = vmatpush1.bf16.msra.mxu0 %v5384
    %6728 = vmatprep.subr.bf16.mxu0 0
    %6729 = vmatpush1.bf16.msra.mxu0 %v5391
    %6730 = vmatprep.subr.bf16.mxu0 0
    %6731 = vmatpush1.bf16.msra.mxu0 %v5398
    %6732 = vmatprep.subr.bf16.mxu0 0
    %6733 = vmatpush1.bf16.msra.mxu0 %v5405
    %6734 = vmatprep.subr.bf16.mxu0 0
    %6735 = vmatpush1.bf16.msra.mxu0 %v5412
    %6736 = vmatprep.subr.bf16.mxu0 0
    %6737 = vmatpush1.bf16.msra.mxu0 %v5419
    %6738 = vmatprep.subr.bf16.mxu0 0
    %6739 = vmatpush1.bf16.msra.mxu0 %v5426
    %6740 = vmatprep.subr.bf16.mxu0 0
    %6741 = vmatpush1.bf16.msra.mxu0 %v5433
    %6742 = vmatprep.mubr.bf16.mxu0 %v3359
    %6743 = vmatmul.mubr.bf16.gmra.mrb[0].mxu0 %v3358
    %v6744 = vpop.f32.mrb[0].mxu0
    %v6745 = vadd.f32 %v3906, %v6744
    %v6746 = vpop.f32.mrb[0].mxu0
    %v6747 = vpop.f32.mrb[0].mxu0
    %v6748 = vpop.f32.mrb[0].mxu0
    %6749 = vdwg.mxu0
    %6750 = vmatprep.subr.bf16.mxu0 0
    %6751 = vmatpush1.bf16.msra.mxu0 %v5440
    %6752 = vmatprep.subr.bf16.mxu0 0
    %6753 = vmatpush1.bf16.msra.mxu0 %v5447
    %6754 = vmatprep.subr.bf16.mxu0 0
    %6755 = vmatpush1.bf16.msra.mxu0 %v5454
    %6756 = vmatprep.subr.bf16.mxu0 0
    %6757 = vmatpush1.bf16.msra.mxu0 %v5461
    %6758 = vmatprep.subr.bf16.mxu0 0
    %6759 = vmatpush1.bf16.msra.mxu0 %v5468
    %6760 = vmatprep.subr.bf16.mxu0 0
    %6761 = vmatpush1.bf16.msra.mxu0 %v5475
    %6762 = vmatprep.subr.bf16.mxu0 0
    %6763 = vmatpush1.bf16.msra.mxu0 %v5482
    %6764 = vmatprep.subr.bf16.mxu0 0
    %6765 = vmatpush1.bf16.msra.mxu0 %v5489
    %6766 = vmatprep.subr.bf16.mxu0 0
    %6767 = vmatpush1.bf16.msra.mxu0 %v5496
    %6768 = vmatprep.subr.bf16.mxu0 0
    %6769 = vmatpush1.bf16.msra.mxu0 %v5503
    %6770 = vmatprep.subr.bf16.mxu0 0
    %6771 = vmatpush1.bf16.msra.mxu0 %v5510
    %6772 = vmatprep.subr.bf16.mxu0 0
    %6773 = vmatpush1.bf16.msra.mxu0 %v5517
    %6774 = vmatprep.subr.bf16.mxu0 0
    %6775 = vmatpush1.bf16.msra.mxu0 %v5524
    %6776 = vmatprep.subr.bf16.mxu0 0
    %6777 = vmatpush1.bf16.msra.mxu0 %v5531
    %6778 = vmatprep.subr.bf16.mxu0 0
    %6779 = vmatpush1.bf16.msra.mxu0 %v5538
    %6780 = vmatprep.subr.bf16.mxu0 0
    %6781 = vmatpush1.bf16.msra.mxu0 %v5545
    %6782 = vmatprep.mubr.bf16.mxu0 %v3361
    %6783 = vmatmul.mubr.bf16.gmra.mrb[0].mxu0 %v3360
    %v6784 = vpop.f32.mrb[0].mxu0
    %v6785 = vadd.f32 %v6745, %v6784
    %v6786 = vpop.f32.mrb[0].mxu0
    %v6787 = vpop.f32.mrb[0].mxu0
    %v6788 = vpop.f32.mrb[0].mxu0
    %6789 = vdwg.mxu0
    %6790 = vmatprep.subr.bf16.mxu0 0
    %6791 = vmatpush1.bf16.msra.mxu0 %v5552
    %6792 = vmatprep.subr.bf16.mxu0 0
    %6793 = vmatpush1.bf16.msra.mxu0 %v5559
    %6794 = vmatprep.subr.bf16.mxu0 0
    %6795 = vmatpush1.bf16.msra.mxu0 %v5566
    %6796 = vmatprep.subr.bf16.mxu0 0
    %6797 = vmatpush1.bf16.msra.mxu0 %v5573
    %6798 = vmatprep.subr.bf16.mxu0 0
    %6799 = vmatpush1.bf16.msra.mxu0 %v5580
    %6800 = vmatprep.subr.bf16.mxu0 0
    %6801 = vmatpush1.bf16.msra.mxu0 %v5587
    %6802 = vmatprep.subr.bf16.mxu0 0
    %6803 = vmatpush1.bf16.msra.mxu0 %v5594
    %6804 = vmatprep.subr.bf16.mxu0 0
    %6805 = vmatpush1.bf16.msra.mxu0 %v5601
    %6806 = vmatprep.subr.bf16.mxu0 0
    %6807 = vmatpush1.bf16.msra.mxu0 %v5608
    %6808 = vmatprep.subr.bf16.mxu0 0
    %6809 = vmatpush1.bf16.msra.mxu0 %v5615
    %6810 = vmatprep.subr.bf16.mxu0 0
    %6811 = vmatpush1.bf16.msra.mxu0 %v5622
    %6812 = vmatprep.subr.bf16.mxu0 0
    %6813 = vmatpush1.bf16.msra.mxu0 %v5629
    %6814 = vmatprep.subr.bf16.mxu0 0
    %6815 = vmatpush1.bf16.msra.mxu0 %v5636
    %6816 = vmatprep.subr.bf16.mxu0 0
    %6817 = vmatpush1.bf16.msra.mxu0 %v5643
    %6818 = vmatprep.subr.bf16.mxu0 0
    %6819 = vmatpush1.bf16.msra.mxu0 %v5650
    %6820 = vmatprep.subr.bf16.mxu0 0
    %6821 = vmatpush1.bf16.msra.mxu0 %v5657
    %6822 = vmatprep.mubr.bf16.mxu0 %v3363
    %6823 = vmatmul.mubr.bf16.gmra.mrb[0].mxu0 %v3362
    %v6824 = vpop.f32.mrb[0].mxu0
    %v6825 = vadd.f32 %v6785, %v6824
    %v6826 = vpop.f32.mrb[0].mxu0
    %v6827 = vpop.f32.mrb[0].mxu0
    %v6828 = vpop.f32.mrb[0].mxu0
    %6829 = vdwg.mxu0
    %6830 = vmatprep.subr.bf16.mxu0 0
    %6831 = vmatpush1.bf16.msra.mxu0 %v5664
    %6832 = vmatprep.subr.bf16.mxu0 0
    %6833 = vmatpush1.bf16.msra.mxu0 %v5671
    %6834 = vmatprep.subr.bf16.mxu0 0
    %6835 = vmatpush1.bf16.msra.mxu0 %v5678
    %6836 = vmatprep.subr.bf16.mxu0 0
    %6837 = vmatpush1.bf16.msra.mxu0 %v5685
    %6838 = vmatprep.subr.bf16.mxu0 0
    %6839 = vmatpush1.bf16.msra.mxu0 %v5692
    %6840 = vmatprep.subr.bf16.mxu0 0
    %6841 = vmatpush1.bf16.msra.mxu0 %v5699
    %6842 = vmatprep.subr.bf16.mxu0 0
    %6843 = vmatpush1.bf16.msra.mxu0 %v5706
    %6844 = vmatprep.subr.bf16.mxu0 0
    %6845 = vmatpush1.bf16.msra.mxu0 %v5713
    %6846 = vmatprep.subr.bf16.mxu0 0
    %6847 = vmatpush1.bf16.msra.mxu0 %v5720
    %6848 = vmatprep.subr.bf16.mxu0 0
    %6849 = vmatpush1.bf16.msra.mxu0 %v5727
    %6850 = vmatprep.subr.bf16.mxu0 0
    %6851 = vmatpush1.bf16.msra.mxu0 %v5734
    %6852 = vmatprep.subr.bf16.mxu0 0
    %6853 = vmatpush1.bf16.msra.mxu0 %v5741
    %6854 = vmatprep.subr.bf16.mxu0 0
    %6855 = vmatpush1.bf16.msra.mxu0 %v5748
    %6856 = vmatprep.subr.bf16.mxu0 0
    %6857 = vmatpush1.bf16.msra.mxu0 %v5755
    %6858 = vmatprep.subr.bf16.mxu0 0
    %6859 = vmatpush1.bf16.msra.mxu0 %v5762
    %6860 = vmatprep.subr.bf16.mxu0 0
    %6861 = vmatpush1.bf16.msra.mxu0 %v5769
    %6862 = vmatprep.mubr.bf16.mxu0 %v3365
    %6863 = vmatmul.mubr.bf16.gmra.mrb[0].mxu0 %v3364
    %v6864 = vpop.f32.mrb[0].mxu0
    %v6865 = vadd.f32 %v6825, %v6864
    %v6866 = vpop.f32.mrb[0].mxu0
    %v6867 = vpop.f32.mrb[0].mxu0
    %v6868 = vpop.f32.mrb[0].mxu0
    %6869 = vdwg.mxu0
    %v6870 = vxor.u32 %v6376, 2147483648
    %v6871 = vxor.u32 %v6378, 2147483648
    %v6872 = vxor.u32 %v6540, 2147483648
    %v6873 = vxor.u32 %v6542, 2147483648
    %v6874 = vxor.u32 %v6704, 2147483648
    %v6875 = vxor.u32 %v6706, 2147483648
    %v6876 = vxor.u32 %v6865, 2147483648
    %v6877 = vmul.f32 %v6870, 1.442695
    %v6878 = vpow.pop %v6877
    %v6879 = vmul.f32 %v6871, 1.442695
    %v6880 = vpow.pop %v6879
    %v6881 = vmul.f32 %v6872, 1.442695
    %v6882 = vpow.pop %v6881
    %v6883 = vmul.f32 %v6873, 1.442695
    %v6884 = vpow.pop %v6883
    %v6885 = vmul.f32 %v6874, 1.442695
    %v6886 = vpow.pop %v6885
    %v6887 = vmul.f32 %v6875, 1.442695
    %v6888 = vpow.pop %v6887
    %v6889 = vmul.f32 %v6876, 1.442695
    %v6890 = vpow.pop %v6889
    %v6891 = vadd.f32 %v6878, 1.0
    %v6892 = vadd.f32 %v6880, 1.0
    %v6893 = vadd.f32 %v6882, 1.0
    %v6894 = vadd.f32 %v6884, 1.0
    %v6895 = vadd.f32 %v6886, 1.0
    %v6896 = vadd.f32 %v6888, 1.0
    %v6897 = vadd.f32 %v6890, 1.0
    %v6898 = vrcp.pop %v6891
    %v6899 = vmul.f32 1.0, %v6898
    %v6900 = vrcp.pop %v6892
    %v6901 = vmul.f32 1.0, %v6900
    %v6902 = vrcp.pop %v6893
    %v6903 = vmul.f32 1.0, %v6902
    %v6904 = vrcp.pop %v6894
    %v6905 = vmul.f32 1.0, %v6904
    %v6906 = vrcp.pop %v6895
    %v6907 = vmul.f32 1.0, %v6906
    %v6908 = vrcp.pop %v6896
    %v6909 = vmul.f32 1.0, %v6908
    %v6910 = vrcp.pop %v6897
    %v6911 = vmul.f32 1.0, %v6910
    %6912 = vst [vmem:[#allocation2] sm:$0xff] %v6899
    %6913 = vst [vmem:[#allocation2 + $0x8] sm:$0xff] %v6901
    %6914 = vst [vmem:[#allocation2 + $0x10] sm:$0xff] %v6903
    %6915 = vst [vmem:[#allocation2 + $0x18] sm:$0xff] %v6905
    %6916 = vst [vmem:[#allocation2 + $0x20] sm:$0xff] %v6907
    %6917 = vst [vmem:[#allocation2 + $0x28] sm:$0xff] %v6909
    %vm6918 = vcmask 130048
    %6919 = vst.msk [vmem:[#allocation2 + $0x30] sm:$0xff] %vm6918, %v6911
    // Predicated region
    $region30: #{tpu_custom_call.1} parent=1 // pred_check
      _
    $region31: #{tpu_custom_call.1} parent=1 // pred_check_branch
      %6921 = sbr.rel (0) target = $region33
    $region32: #{tpu_custom_call.1} parent=1 // pred_region
      %s6923 = ssub.s32 896, 896
      %6924 = vsyncadd [#allocation3], %s6923
      %s6926 = sshll.u32 [#allocation2], 4
      %s6927 = int_to_ptr.vmem [resolvable:$true] %s6926
      %6929 = dma.vmem_to_hbm [thread:$0]  %s6927, 896, %s7, [#allocation3]
    $region33: #{tpu_custom_call.1} parent=1 // pred_fallthru
      _
    // Predicated region
    $region34: #{tpu_custom_call.1} parent=1 // pred_check
      _
    $region35: #{tpu_custom_call.1} parent=1 // pred_check_branch
      %6931 = sbr.rel (0) target = $region37
    $region36: #{tpu_custom_call.1} parent=1 // pred_region
      %6932 = dma.done [#allocation3], 896
    $region37: #{tpu_custom_call.1} parent=1 // pred_fallthru
      _
    %6933 = vsyncpa [#allocation3], 1

</llo_original>
